<compile_context>
chip_gen: v7x
topology: tpu7x:2x2x1
jax: 0.10.0
libtpu: 0.0.40
codegen_flags: <defaults>
</compile_context>

<pallas_src>
import functools
import math

import jax
import jax.numpy as jnp
from jax.experimental import pallas as pl
from jax.experimental.pallas import tpu as pltpu

IN_DIM = 1024
MID_DIM = 768
OUT_DIM = 768


def _round_up(x, n):
    return ((x + n - 1) // n) * n


def pooler_kernel(x_ref, w1_ref, b_ref, w2_ref, o_ref, *, compute_dtype):
    # x_ref: (tm, 1024)   w1_ref: (1024, 768)   b_ref: (2, 768) f32
    # w2_ref: (768, 768)  o_ref: (tm, 768)
    x = x_ref[...].astype(compute_dtype)
    h = jnp.dot(x, w1_ref[...], preferred_element_type=jnp.float32)
    h = h + b_ref[0:1, :]                                   # bias 1 (f32), broadcast rows
    y = jnp.dot(h.astype(compute_dtype), w2_ref[...],
                preferred_element_type=jnp.float32)
    y = y + b_ref[1:2, :]                                   # bias 2 (f32)
    o_ref[...] = jnp.tanh(y).astype(o_ref.dtype)


def _resident(shape):
    # Grid-invariant operand: constant index_map, fetched once -> single buffer.
    return pl.BlockSpec(shape, lambda i: (0, 0), pipeline_mode=pl.Buffered(1))


def pooler_forward(x, w1, b1, w2, b2, *, tile_m=512,
                   compute_dtype=jnp.bfloat16, out_dtype=None):
    """x: (..., 1024) -> (..., 768) = tanh((x @ W1 + b1) @ W2 + b2).

    tile_m:        row tile; sweep per chip (128/256 on v5e, 256/512 on v6e/v7x).
    compute_dtype: matmul operand dtype (bf16 default, f32 accumulation always).
    out_dtype:     output dtype (defaults to x.dtype, i.e. f32 like the PyTorch module).
    """
    lead_shape = x.shape[:-1]
    assert x.shape[-1] == IN_DIM, x.shape
    m = math.prod(lead_shape) if lead_shape else 1
    x2d = x.reshape(m, IN_DIM)

    if out_dtype is None:
        out_dtype = x.dtype

    # Weights stored (in, out) = transpose of PyTorch's (out, in); cast once here.
    w1c = w1.astype(compute_dtype)
    w2c = w2.astype(compute_dtype)
    # Fold both biases into one resident f32 operand (MID_DIM == OUT_DIM == 768).
    b = jnp.stack([b1, b2], axis=0).astype(jnp.float32)     # (2, 768)

    # Row tile: multiple of 8 (sublane), clamped to the problem size.  The ragged last
    # tile (when tm does not divide m) is masked by Pallas on writeback -- no jnp.pad.
    tm = max(8, min(_round_up(tile_m, 8), _round_up(m, 8)))
    grid = (pl.cdiv(m, tm),)

    out = pl.pallas_call(
        functools.partial(pooler_kernel, compute_dtype=compute_dtype),
        out_shape=jax.ShapeDtypeStruct((m, OUT_DIM), out_dtype),
        grid=grid,
        in_specs=[
            pl.BlockSpec((tm, IN_DIM), lambda i: (i, 0)),   # x row tile (double-buffered)
            _resident((IN_DIM, MID_DIM)),                   # W1  (resident, 1 buffer)
            _resident((2, MID_DIM)),                        # [b1; b2]
            _resident((MID_DIM, OUT_DIM)),                  # W2  (resident, 1 buffer)
        ],
        out_specs=pl.BlockSpec((tm, OUT_DIM), lambda i: (i, 0)),
        compiler_params=pltpu.CompilerParams(
            dimension_semantics=("parallel",),              # rows shard across v7x's 2 TCs
        ),
    )(x2d, w1c, b, w2c)

    return out.reshape(*lead_shape, OUT_DIM)


def init_params(key):
    """Deterministic PyTorch-style init: U(-1/sqrt(fan_in), 1/sqrt(fan_in))."""
    k1, k2, k3, k4 = jax.random.split(key, 4)
    bound1 = 1.0 / jnp.sqrt(IN_DIM)
    bound2 = 1.0 / jnp.sqrt(MID_DIM)
    # Stored as (in, out) = transpose of PyTorch's (out, in) weight.
    w1 = jax.random.uniform(k1, (IN_DIM, MID_DIM), jnp.float32, -bound1, bound1)
    b1 = jax.random.uniform(k2, (MID_DIM,), jnp.float32, -bound1, bound1)
    w2 = jax.random.uniform(k3, (MID_DIM, OUT_DIM), jnp.float32, -bound2, bound2)
    b2 = jax.random.uniform(k4, (OUT_DIM,), jnp.float32, -bound2, bound2)
    return w1, b1, w2, b2


if __name__ == "__main__":
    key = jax.random.PRNGKey(0)
    kx, kp = jax.random.split(key)

    # Small input consistent with the module: (batch=2, seq=8, hidden=1024).
    x = jax.random.normal(kx, (2, 8, IN_DIM), dtype=jnp.float32)
    w1, b1, w2, b2 = init_params(kp)

    # --- exact f32 path ------------------------------------------------------
    out_f32 = pooler_forward(x, w1, b1, w2, b2, compute_dtype=jnp.float32)
    out_f32 = jax.block_until_ready(out_f32)
    ref_f32 = jnp.tanh((x @ w1 + b1) @ w2 + b2)
    assert out_f32.shape == (2, 8, OUT_DIM), out_f32.shape
    assert jnp.allclose(out_f32, ref_f32, atol=1e-5, rtol=1e-5), \
        float(jnp.abs(out_f32 - ref_f32).max())

    # --- default fast path: bf16 operands, f32 accumulation ------------------
    out_fast = pooler_forward(x, w1, b1, w2, b2)            # compute_dtype=bfloat16
    out_fast = jax.block_until_ready(out_fast)
    # Matched-precision reference (bf16 operands, f32 accumulation, f32 bias/tanh).
    xb = x.reshape(-1, IN_DIM).astype(jnp.bfloat16)
    h = jnp.dot(xb, w1.astype(jnp.bfloat16), preferred_element_type=jnp.float32) + b1
    ref_bf16 = jnp.tanh(
        jnp.dot(h.astype(jnp.bfloat16), w2.astype(jnp.bfloat16),
                preferred_element_type=jnp.float32) + b2
    ).reshape(2, 8, OUT_DIM)
    assert out_fast.shape == (2, 8, OUT_DIM), out_fast.shape
    assert jnp.allclose(out_fast, ref_bf16, atol=2e-3, rtol=2e-3), \
        float(jnp.abs(out_fast - ref_bf16).max())
    # Loose sanity check vs. the full-f32 reference (tanh output in [-1, 1]).
    assert jnp.allclose(out_fast, ref_f32, atol=5e-2), \
        float(jnp.abs(out_fast - ref_f32).max())

    print("KERNEL_OK")
</pallas_src>

<mosaic_0001>
module attributes {stable_mosaic.version = 11 : i64} {
  func.func @pooler_kernel(%arg0: i32, %arg1: memref<16x1024xf32, #tpu.memory_space<vmem>>, %arg2: memref<1024x768xf32, #tpu.memory_space<vmem>>, %arg3: memref<2x768xf32, #tpu.memory_space<vmem>>, %arg4: memref<768x768xf32, #tpu.memory_space<vmem>>, %arg5: memref<16x768xf32, #tpu.memory_space<vmem>>) attributes {dimension_semantics = [#tpu.dimension_semantics<parallel>], iteration_bounds = array<i64: 1>, scalar_prefetch = 0 : i64, scratch_operands = 0 : i64, tpu.core_type = #tpu.core_type<tc>, window_params = [{transform_indices = @transform_0, window_bounds = array<i64: 16, 1024>}, {pipeline_mode = #tpu.pipeline_mode<synchronous>, transform_indices = @transform_1, window_bounds = array<i64: 1024, 768>}, {pipeline_mode = #tpu.pipeline_mode<synchronous>, transform_indices = @transform_2, window_bounds = array<i64: 2, 768>}, {pipeline_mode = #tpu.pipeline_mode<synchronous>, transform_indices = @transform_3, window_bounds = array<i64: 768, 768>}, {transform_indices = @transform_4, window_bounds = array<i64: 16, 768>}]} {
    %c0 = arith.constant 0 : index
    %c0_0 = arith.constant 0 : index
    %0 = vector.load %arg1[%c0, %c0_0] : memref<16x1024xf32, #tpu.memory_space<vmem>>, vector<16x1024xf32>
    %c0_1 = arith.constant 0 : index
    %c0_2 = arith.constant 0 : index
    %1 = vector.load %arg2[%c0_1, %c0_2] : memref<1024x768xf32, #tpu.memory_space<vmem>>, vector<1024x768xf32>
    %cst = arith.constant dense<0.000000e+00> : vector<16x768xf32>
    %2 = tpu.matmul %0, %1, %cst {dimension_numbers = #tpu.dot_dimension_numbers<[1], [0], [0], [1], [0, 0, 1, 1], [], []>} : vector<16x1024xf32>, vector<1024x768xf32>, vector<16x768xf32> -> vector<16x768xf32>
    %c0_3 = arith.constant 0 : index
    %c0_4 = arith.constant 0 : index
    %3 = vector.load %arg3[%c0_3, %c0_4] : memref<2x768xf32, #tpu.memory_space<vmem>>, vector<1x768xf32>
    %4 = vector.broadcast %3 : vector<1x768xf32> to vector<16x768xf32>
    %5 = arith.addf %2, %4 : vector<16x768xf32>
    %c0_5 = arith.constant 0 : index
    %c0_6 = arith.constant 0 : index
    %6 = vector.load %arg4[%c0_5, %c0_6] : memref<768x768xf32, #tpu.memory_space<vmem>>, vector<768x768xf32>
    %cst_7 = arith.constant dense<0.000000e+00> : vector<16x768xf32>
    %7 = tpu.matmul %5, %6, %cst_7 {dimension_numbers = #tpu.dot_dimension_numbers<[1], [0], [0], [1], [0, 0, 1, 1], [], []>} : vector<16x768xf32>, vector<768x768xf32>, vector<16x768xf32> -> vector<16x768xf32>
    %c1 = arith.constant 1 : index
    %c0_8 = arith.constant 0 : index
    %8 = vector.load %arg3[%c1, %c0_8] : memref<2x768xf32, #tpu.memory_space<vmem>>, vector<1x768xf32>
    %9 = vector.broadcast %8 : vector<1x768xf32> to vector<16x768xf32>
    %10 = arith.addf %7, %9 : vector<16x768xf32>
    %11 = math.tanh %10 : vector<16x768xf32>
    %c0_9 = arith.constant 0 : index
    %c0_10 = arith.constant 0 : index
    %12 = vector.load %arg5[%c0_9, %c0_10] : memref<16x768xf32, #tpu.memory_space<vmem>>, vector<16x768xf32>
    tpu.vector_store %arg5[%c0_9, %c0_10], %11 {strides = array<i32>} : memref<16x768xf32, #tpu.memory_space<vmem>>, vector<16x768xf32>,
    return
  }
  func.func @transform_0(%arg0: i32) -> (i32, i32) {
    %c0_i32 = arith.constant 0 : i32
    %c0_i32_0 = arith.constant 0 : i32
    return %arg0, %c0_i32 : i32, i32
  }
  func.func @transform_1(%arg0: i32) -> (i32, i32) {
    %c0_i32 = arith.constant 0 : i32
    %c0_i32_0 = arith.constant 0 : i32
    %c0_i32_1 = arith.constant 0 : i32
    return %c0_i32, %c0_i32_0 : i32, i32
  }
  func.func @transform_2(%arg0: i32) -> (i32, i32) {
    %c0_i32 = arith.constant 0 : i32
    %c0_i32_0 = arith.constant 0 : i32
    %c0_i32_1 = arith.constant 0 : i32
    return %c0_i32, %c0_i32_0 : i32, i32
  }
  func.func @transform_3(%arg0: i32) -> (i32, i32) {
    %c0_i32 = arith.constant 0 : i32
    %c0_i32_0 = arith.constant 0 : i32
    %c0_i32_1 = arith.constant 0 : i32
    return %c0_i32, %c0_i32_0 : i32, i32
  }
  func.func @transform_4(%arg0: i32) -> (i32, i32) {
    %c0_i32 = arith.constant 0 : i32
    %c0_i32_0 = arith.constant 0 : i32
    return %arg0, %c0_i32 : i32, i32
  }
}

</mosaic_0001>

<llo_original>
// kernel: tpu_custom_call.1
$region0: #{tpu_custom_call.1}
  #allocation0 [shape = 'u32[]', space=smem, size = 0x4, offset = 0x4, fixed_abs, tag = 'smem constant byte address 0x4 - core index']
  #allocation1 [shape = 'u32[144,128]{1,0:T(1,128)}', space=vmem, size = 0x12000, scoped, tag = 'internal scratch']
  %s0 = inlined_call_operand.hbm [shape: f32[16,1024], index: 0, kind: input, shape index: {}]
  %s1 = inlined_call_operand.hbm [shape: f32[1024,768], index: 1, kind: input, shape index: {}]
  %s2 = inlined_call_operand.hbm [shape: f32[2,768], index: 2, kind: input, shape index: {}]
  %s3 = inlined_call_operand.hbm [shape: f32[768,768], index: 3, kind: input, shape index: {}]
  %s4 = inlined_call_operand.hbm [shape: f32[16,768], index: 4, kind: output, shape index: {}]
  %s5 = sld [smem:[#allocation0]]
  $region42: #{tpu_custom_call.1} parent=0
    _
  %s7 = ssub.s32 1, %s5
  %s8 = scalar_select 0, %s7, %s5
  $region1: #{tpu_custom_call.1} parent=0
    #allocation2 [shape = 'u8[65536]{0}', space=vmem, size = 0x10000, scoped, tag = 'input window, operand 0, single buffered']
    #allocation3 [shape = 's32[1]{0}', space=sflag, size = 0x4, scoped, tag = 'scoped memory for tpu_custom_call.1']
    #allocation4 [shape = 's32[1]{0}', space=sflag, size = 0x4, scoped, tag = 'scoped memory for tpu_custom_call.1']
    #allocation5 [shape = 'u8[3145728]{0}', space=vmem, size = 0x300000, scoped, tag = 'input window, operand 1, single buffered']
    #allocation6 [shape = 's32[1]{0}', space=sflag, size = 0x4, scoped, tag = 'scoped memory for tpu_custom_call.1']
    #allocation7 [shape = 'u8[6144]{0}', space=vmem, size = 0x1800, scoped, tag = 'input window, operand 2, single buffered']
    #allocation8 [shape = 'u8[2359296]{0}', space=vmem, size = 0x240000, scoped, tag = 'input window, operand 3, single buffered']
    #allocation9 [shape = 's32[1]{0}', space=sflag, size = 0x4, scoped, tag = 'scoped memory for tpu_custom_call.1']
    #allocation10 [shape = 'u8[49152]{0}', space=vmem, size = 0xc000, scoped, tag = 'output window, operand 0, single buffered']
    %9 = vsyncpa [#allocation3], 0
    %10 = vsyncpa [#allocation6], 0
    %11 = vsyncpa [#allocation9], 0
    %12 = vsyncpa [#allocation4], 0
    // Predicated region
    $region2: #{tpu_custom_call.1} parent=1 // pred_check
      _
    $region3: #{tpu_custom_call.1} parent=1 // pred_check_branch
      %14 = sbr.rel (0) target = $region5
    $region4: #{tpu_custom_call.1} parent=1 // pred_region
      %s16 = ssub.s32 2048, 2048
      %17 = vsyncadd [#allocation3], %s16
      %s18 = sshll.u32 [#allocation2], 4
      %s19 = int_to_ptr.vmem [resolvable:$true] %s18
      %24 = dma.hbm_to_vmem [thread:$0]  %s0, 2048, %s19, [#allocation3], 1024, 1024, 64
    $region5: #{tpu_custom_call.1} parent=1 // pred_fallthru
      _
    // Predicated region
    $region6: #{tpu_custom_call.1} parent=1 // pred_check
      _
    $region7: #{tpu_custom_call.1} parent=1 // pred_check_branch
      %26 = sbr.rel (0) target = $region9
    $region8: #{tpu_custom_call.1} parent=1 // pred_region
      %s28 = ssub.s32 98304, 98304
      %29 = vsyncadd [#allocation6], %s28
      %s30 = sshll.u32 [#allocation5], 4
      %s31 = int_to_ptr.vmem [resolvable:$true] %s30
      %36 = dma.hbm_to_vmem [thread:$0]  %s1, 98304, %s31, [#allocation6], 768, 768, 48
    $region9: #{tpu_custom_call.1} parent=1 // pred_fallthru
      _
    // Predicated region
    $region10: #{tpu_custom_call.1} parent=1 // pred_check
      _
    $region11: #{tpu_custom_call.1} parent=1 // pred_check_branch
      %38 = sbr.rel (0) target = $region13
    $region12: #{tpu_custom_call.1} parent=1 // pred_region
      %s40 = ssub.s32 192, 192
      %41 = vsyncadd [#allocation6], %s40
      %s43 = sshll.u32 [#allocation7], 4
      %s44 = int_to_ptr.vmem [resolvable:$true] %s43
      %46 = dma.hbm_to_vmem [thread:$0]  %s2, 192, %s44, [#allocation6]
    $region13: #{tpu_custom_call.1} parent=1 // pred_fallthru
      _
    // Predicated region
    $region14: #{tpu_custom_call.1} parent=1 // pred_check
      _
    $region15: #{tpu_custom_call.1} parent=1 // pred_check_branch
      %48 = sbr.rel (0) target = $region17
    $region16: #{tpu_custom_call.1} parent=1 // pred_region
      %s50 = ssub.s32 73728, 73728
      %51 = vsyncadd [#allocation9], %s50
      %s52 = sshll.u32 [#allocation8], 4
      %s53 = int_to_ptr.vmem [resolvable:$true] %s52
      %58 = dma.hbm_to_vmem [thread:$0]  %s3, 73728, %s53, [#allocation9], 768, 768, 48
    $region17: #{tpu_custom_call.1} parent=1 // pred_fallthru
      _
    // Predicated region
    $region18: #{tpu_custom_call.1} parent=1 // pred_check
      _
    $region19: #{tpu_custom_call.1} parent=1 // pred_check_branch
      %60 = sbr.rel (0) target = $region21
    $region20: #{tpu_custom_call.1} parent=1 // pred_region
      %61 = dma.done [#allocation3], 2048
    $region21: #{tpu_custom_call.1} parent=1 // pred_fallthru
      _
    // Predicated region
    $region22: #{tpu_custom_call.1} parent=1 // pred_check
      _
    $region23: #{tpu_custom_call.1} parent=1 // pred_check_branch
      %63 = sbr.rel (0) target = $region25
    $region24: #{tpu_custom_call.1} parent=1 // pred_region
      %64 = dma.done [#allocation6], 98304
    $region25: #{tpu_custom_call.1} parent=1 // pred_fallthru
      _
    // Predicated region
    $region26: #{tpu_custom_call.1} parent=1 // pred_check
      _
    $region27: #{tpu_custom_call.1} parent=1 // pred_check_branch
      %66 = sbr.rel (0) target = $region29
    $region28: #{tpu_custom_call.1} parent=1 // pred_region
      %67 = dma.done [#allocation6], 192
    $region29: #{tpu_custom_call.1} parent=1 // pred_fallthru
      _
    // Predicated region
    $region30: #{tpu_custom_call.1} parent=1 // pred_check
      _
    $region31: #{tpu_custom_call.1} parent=1 // pred_check_branch
      %69 = sbr.rel (0) target = $region33
    $region32: #{tpu_custom_call.1} parent=1 // pred_region
      %70 = dma.done [#allocation9], 73728
    $region33: #{tpu_custom_call.1} parent=1 // pred_fallthru
      _
    %v71 = vld [vmem:[#allocation2] sm:$0xff]
    %v72 = vld [vmem:[#allocation2 + $0x8] sm:$0xff]
    %v73 = vld [vmem:[#allocation2 + $0x10] sm:$0xff]
    %v74 = vld [vmem:[#allocation2 + $0x18] sm:$0xff]
    %v75 = vld [vmem:[#allocation2 + $0x20] sm:$0xff]
    %v76 = vld [vmem:[#allocation2 + $0x28] sm:$0xff]
    %v77 = vld [vmem:[#allocation2 + $0x30] sm:$0xff]
    %v78 = vld [vmem:[#allocation2 + $0x38] sm:$0xff]
    %v79 = vld [vmem:[#allocation2 + $0x40] sm:$0xff]
    %v80 = vld [vmem:[#allocation2 + $0x48] sm:$0xff]
    %v81 = vld [vmem:[#allocation2 + $0x50] sm:$0xff]
    %v82 = vld [vmem:[#allocation2 + $0x58] sm:$0xff]
    %v83 = vld [vmem:[#allocation2 + $0x60] sm:$0xff]
    %v84 = vld [vmem:[#allocation2 + $0x68] sm:$0xff]
    %v85 = vld [vmem:[#allocation2 + $0x70] sm:$0xff]
    %v86 = vld [vmem:[#allocation2 + $0x78] sm:$0xff]
    %v87 = vld [vmem:[#allocation5] sm:$0xff]
    %v88 = vld [vmem:[#allocation5 + $0x8] sm:$0xff]
    %v89 = vld [vmem:[#allocation5 + $0x10] sm:$0xff]
    %v90 = vld [vmem:[#allocation5 + $0x18] sm:$0xff]
    %v91 = vld [vmem:[#allocation5 + $0x20] sm:$0xff]
    %v92 = vld [vmem:[#allocation5 + $0x28] sm:$0xff]
    %v93 = vld [vmem:[#allocation5 + $0x30] sm:$0xff]
    %v94 = vld [vmem:[#allocation5 + $0x38] sm:$0xff]
    %v95 = vld [vmem:[#allocation5 + $0x40] sm:$0xff]
    %v96 = vld [vmem:[#allocation5 + $0x48] sm:$0xff]
    %v97 = vld [vmem:[#allocation5 + $0x50] sm:$0xff]
    %v98 = vld [vmem:[#allocation5 + $0x58] sm:$0xff]
    %v99 = vld [vmem:[#allocation5 + $0x60] sm:$0xff]
    %v100 = vld [vmem:[#allocation5 + $0x68] sm:$0xff]
    %v101 = vld [vmem:[#allocation5 + $0x70] sm:$0xff]
    %v102 = vld [vmem:[#allocation5 + $0x78] sm:$0xff]
    %v103 = vld [vmem:[#allocation5 + $0x80] sm:$0xff]
    %v104 = vld [vmem:[#allocation5 + $0x88] sm:$0xff]
    %v105 = vld [vmem:[#allocation5 + $0x90] sm:$0xff]
    %v106 = vld [vmem:[#allocation5 + $0x98] sm:$0xff]
    %v107 = vld [vmem:[#allocation5 + $0xa0] sm:$0xff]
    %v108 = vld [vmem:[#allocation5 + $0xa8] sm:$0xff]
    %v109 = vld [vmem:[#allocation5 + $0xb0] sm:$0xff]
    %v110 = vld [vmem:[#allocation5 + $0xb8] sm:$0xff]
    %v111 = vld [vmem:[#allocation5 + $0xc0] sm:$0xff]
    %v112 = vld [vmem:[#allocation5 + $0xc8] sm:$0xff]
    %v113 = vld [vmem:[#allocation5 + $0xd0] sm:$0xff]
    %v114 = vld [vmem:[#allocation5 + $0xd8] sm:$0xff]
    %v115 = vld [vmem:[#allocation5 + $0xe0] sm:$0xff]
    %v116 = vld [vmem:[#allocation5 + $0xe8] sm:$0xff]
    %v117 = vld [vmem:[#allocation5 + $0xf0] sm:$0xff]
    %v118 = vld [vmem:[#allocation5 + $0xf8] sm:$0xff]
    %v119 = vld [vmem:[#allocation5 + $0x100] sm:$0xff]
    %v120 = vld [vmem:[#allocation5 + $0x108] sm:$0xff]
    %v121 = vld [vmem:[#allocation5 + $0x110] sm:$0xff]
    %v122 = vld [vmem:[#allocation5 + $0x118] sm:$0xff]
    %v123 = vld [vmem:[#allocation5 + $0x120] sm:$0xff]
    %v124 = vld [vmem:[#allocation5 + $0x128] sm:$0xff]
    %v125 = vld [vmem:[#allocation5 + $0x130] sm:$0xff]
    %v126 = vld [vmem:[#allocation5 + $0x138] sm:$0xff]
    %v127 = vld [vmem:[#allocation5 + $0x140] sm:$0xff]
    %v128 = vld [vmem:[#allocation5 + $0x148] sm:$0xff]
    %v129 = vld [vmem:[#allocation5 + $0x150] sm:$0xff]
    %v130 = vld [vmem:[#allocation5 + $0x158] sm:$0xff]
    %v131 = vld [vmem:[#allocation5 + $0x160] sm:$0xff]
    %v132 = vld [vmem:[#allocation5 + $0x168] sm:$0xff]
    %v133 = vld [vmem:[#allocation5 + $0x170] sm:$0xff]
    %v134 = vld [vmem:[#allocation5 + $0x178] sm:$0xff]
    %v135 = vld [vmem:[#allocation5 + $0x180] sm:$0xff]
    %v136 = vld [vmem:[#allocation5 + $0x188] sm:$0xff]
    %v137 = vld [vmem:[#allocation5 + $0x190] sm:$0xff]
    %v138 = vld [vmem:[#allocation5 + $0x198] sm:$0xff]
    %v139 = vld [vmem:[#allocation5 + $0x1a0] sm:$0xff]
    %v140 = vld [vmem:[#allocation5 + $0x1a8] sm:$0xff]
    %v141 = vld [vmem:[#allocation5 + $0x1b0] sm:$0xff]
    %v142 = vld [vmem:[#allocation5 + $0x1b8] sm:$0xff]
    %v143 = vld [vmem:[#allocation5 + $0x1c0] sm:$0xff]
    %v144 = vld [vmem:[#allocation5 + $0x1c8] sm:$0xff]
    %v145 = vld [vmem:[#allocation5 + $0x1d0] sm:$0xff]
    %v146 = vld [vmem:[#allocation5 + $0x1d8] sm:$0xff]
    %v147 = vld [vmem:[#allocation5 + $0x1e0] sm:$0xff]
    %v148 = vld [vmem:[#allocation5 + $0x1e8] sm:$0xff]
    %v149 = vld [vmem:[#allocation5 + $0x1f0] sm:$0xff]
    %v150 = vld [vmem:[#allocation5 + $0x1f8] sm:$0xff]
    %v151 = vld [vmem:[#allocation5 + $0x200] sm:$0xff]
    %v152 = vld [vmem:[#allocation5 + $0x208] sm:$0xff]
    %v153 = vld [vmem:[#allocation5 + $0x210] sm:$0xff]
    %v154 = vld [vmem:[#allocation5 + $0x218] sm:$0xff]
    %v155 = vld [vmem:[#allocation5 + $0x220] sm:$0xff]
    %v156 = vld [vmem:[#allocation5 + $0x228] sm:$0xff]
    %v157 = vld [vmem:[#allocation5 + $0x230] sm:$0xff]
    %v158 = vld [vmem:[#allocation5 + $0x238] sm:$0xff]
    %v159 = vld [vmem:[#allocation5 + $0x240] sm:$0xff]
    %v160 = vld [vmem:[#allocation5 + $0x248] sm:$0xff]
    %v161 = vld [vmem:[#allocation5 + $0x250] sm:$0xff]
    %v162 = vld [vmem:[#allocation5 + $0x258] sm:$0xff]
    %v163 = vld [vmem:[#allocation5 + $0x260] sm:$0xff]
    %v164 = vld [vmem:[#allocation5 + $0x268] sm:$0xff]
    %v165 = vld [vmem:[#allocation5 + $0x270] sm:$0xff]
    %v166 = vld [vmem:[#allocation5 + $0x278] sm:$0xff]
    %v167 = vld [vmem:[#allocation5 + $0x280] sm:$0xff]
    %v168 = vld [vmem:[#allocation5 + $0x288] sm:$0xff]
    %v169 = vld [vmem:[#allocation5 + $0x290] sm:$0xff]
    %v170 = vld [vmem:[#allocation5 + $0x298] sm:$0xff]
    %v171 = vld [vmem:[#allocation5 + $0x2a0] sm:$0xff]
    %v172 = vld [vmem:[#allocation5 + $0x2a8] sm:$0xff]
    %v173 = vld [vmem:[#allocation5 + $0x2b0] sm:$0xff]
    %v174 = vld [vmem:[#allocation5 + $0x2b8] sm:$0xff]
    %v175 = vld [vmem:[#allocation5 + $0x2c0] sm:$0xff]
    %v176 = vld [vmem:[#allocation5 + $0x2c8] sm:$0xff]
    %v177 = vld [vmem:[#allocation5 + $0x2d0] sm:$0xff]
    %v178 = vld [vmem:[#allocation5 + $0x2d8] sm:$0xff]
    %v179 = vld [vmem:[#allocation5 + $0x2e0] sm:$0xff]
    %v180 = vld [vmem:[#allocation5 + $0x2e8] sm:$0xff]
    %v181 = vld [vmem:[#allocation5 + $0x2f0] sm:$0xff]
    %v182 = vld [vmem:[#allocation5 + $0x2f8] sm:$0xff]
    %v183 = vld [vmem:[#allocation5 + $0x300] sm:$0xff]
    %v184 = vld [vmem:[#allocation5 + $0x308] sm:$0xff]
    %v185 = vld [vmem:[#allocation5 + $0x310] sm:$0xff]
    %v186 = vld [vmem:[#allocation5 + $0x318] sm:$0xff]
    %v187 = vld [vmem:[#allocation5 + $0x320] sm:$0xff]
    %v188 = vld [vmem:[#allocation5 + $0x328] sm:$0xff]
    %v189 = vld [vmem:[#allocation5 + $0x330] sm:$0xff]
    %v190 = vld [vmem:[#allocation5 + $0x338] sm:$0xff]
    %v191 = vld [vmem:[#allocation5 + $0x340] sm:$0xff]
    %v192 = vld [vmem:[#allocation5 + $0x348] sm:$0xff]
    %v193 = vld [vmem:[#allocation5 + $0x350] sm:$0xff]
    %v194 = vld [vmem:[#allocation5 + $0x358] sm:$0xff]
    %v195 = vld [vmem:[#allocation5 + $0x360] sm:$0xff]
    %v196 = vld [vmem:[#allocation5 + $0x368] sm:$0xff]
    %v197 = vld [vmem:[#allocation5 + $0x370] sm:$0xff]
    %v198 = vld [vmem:[#allocation5 + $0x378] sm:$0xff]
    %v199 = vld [vmem:[#allocation5 + $0x380] sm:$0xff]
    %v200 = vld [vmem:[#allocation5 + $0x388] sm:$0xff]
    %v201 = vld [vmem:[#allocation5 + $0x390] sm:$0xff]
    %v202 = vld [vmem:[#allocation5 + $0x398] sm:$0xff]
    %v203 = vld [vmem:[#allocation5 + $0x3a0] sm:$0xff]
    %v204 = vld [vmem:[#allocation5 + $0x3a8] sm:$0xff]
    %v205 = vld [vmem:[#allocation5 + $0x3b0] sm:$0xff]
    %v206 = vld [vmem:[#allocation5 + $0x3b8] sm:$0xff]
    %v207 = vld [vmem:[#allocation5 + $0x3c0] sm:$0xff]
    %v208 = vld [vmem:[#allocation5 + $0x3c8] sm:$0xff]
    %v209 = vld [vmem:[#allocation5 + $0x3d0] sm:$0xff]
    %v210 = vld [vmem:[#allocation5 + $0x3d8] sm:$0xff]
    %v211 = vld [vmem:[#allocation5 + $0x3e0] sm:$0xff]
    %v212 = vld [vmem:[#allocation5 + $0x3e8] sm:$0xff]
    %v213 = vld [vmem:[#allocation5 + $0x3f0] sm:$0xff]
    %v214 = vld [vmem:[#allocation5 + $0x3f8] sm:$0xff]
    %v215 = vld [vmem:[#allocation5 + $0x400] sm:$0xff]
    %v216 = vld [vmem:[#allocation5 + $0x408] sm:$0xff]
    %v217 = vld [vmem:[#allocation5 + $0x410] sm:$0xff]
    %v218 = vld [vmem:[#allocation5 + $0x418] sm:$0xff]
    %v219 = vld [vmem:[#allocation5 + $0x420] sm:$0xff]
    %v220 = vld [vmem:[#allocation5 + $0x428] sm:$0xff]
    %v221 = vld [vmem:[#allocation5 + $0x430] sm:$0xff]
    %v222 = vld [vmem:[#allocation5 + $0x438] sm:$0xff]
    %v223 = vld [vmem:[#allocation5 + $0x440] sm:$0xff]
    %v224 = vld [vmem:[#allocation5 + $0x448] sm:$0xff]
    %v225 = vld [vmem:[#allocation5 + $0x450] sm:$0xff]
    %v226 = vld [vmem:[#allocation5 + $0x458] sm:$0xff]
    %v227 = vld [vmem:[#allocation5 + $0x460] sm:$0xff]
    %v228 = vld [vmem:[#allocation5 + $0x468] sm:$0xff]
    %v229 = vld [vmem:[#allocation5 + $0x470] sm:$0xff]
    %v230 = vld [vmem:[#allocation5 + $0x478] sm:$0xff]
    %v231 = vld [vmem:[#allocation5 + $0x480] sm:$0xff]
    %v232 = vld [vmem:[#allocation5 + $0x488] sm:$0xff]
    %v233 = vld [vmem:[#allocation5 + $0x490] sm:$0xff]
    %v234 = vld [vmem:[#allocation5 + $0x498] sm:$0xff]
    %v235 = vld [vmem:[#allocation5 + $0x4a0] sm:$0xff]
    %v236 = vld [vmem:[#allocation5 + $0x4a8] sm:$0xff]
    %v237 = vld [vmem:[#allocation5 + $0x4b0] sm:$0xff]
    %v238 = vld [vmem:[#allocation5 + $0x4b8] sm:$0xff]
    %v239 = vld [vmem:[#allocation5 + $0x4c0] sm:$0xff]
    %v240 = vld [vmem:[#allocation5 + $0x4c8] sm:$0xff]
    %v241 = vld [vmem:[#allocation5 + $0x4d0] sm:$0xff]
    %v242 = vld [vmem:[#allocation5 + $0x4d8] sm:$0xff]
    %v243 = vld [vmem:[#allocation5 + $0x4e0] sm:$0xff]
    %v244 = vld [vmem:[#allocation5 + $0x4e8] sm:$0xff]
    %v245 = vld [vmem:[#allocation5 + $0x4f0] sm:$0xff]
    %v246 = vld [vmem:[#allocation5 + $0x4f8] sm:$0xff]
    %v247 = vld [vmem:[#allocation5 + $0x500] sm:$0xff]
    %v248 = vld [vmem:[#allocation5 + $0x508] sm:$0xff]
    %v249 = vld [vmem:[#allocation5 + $0x510] sm:$0xff]
    %v250 = vld [vmem:[#allocation5 + $0x518] sm:$0xff]
    %v251 = vld [vmem:[#allocation5 + $0x520] sm:$0xff]
    %v252 = vld [vmem:[#allocation5 + $0x528] sm:$0xff]
    %v253 = vld [vmem:[#allocation5 + $0x530] sm:$0xff]
    %v254 = vld [vmem:[#allocation5 + $0x538] sm:$0xff]
    %v255 = vld [vmem:[#allocation5 + $0x540] sm:$0xff]
    %v256 = vld [vmem:[#allocation5 + $0x548] sm:$0xff]
    %v257 = vld [vmem:[#allocation5 + $0x550] sm:$0xff]
    %v258 = vld [vmem:[#allocation5 + $0x558] sm:$0xff]
    %v259 = vld [vmem:[#allocation5 + $0x560] sm:$0xff]
    %v260 = vld [vmem:[#allocation5 + $0x568] sm:$0xff]
    %v261 = vld [vmem:[#allocation5 + $0x570] sm:$0xff]
    %v262 = vld [vmem:[#allocation5 + $0x578] sm:$0xff]
    %v263 = vld [vmem:[#allocation5 + $0x580] sm:$0xff]
    %v264 = vld [vmem:[#allocation5 + $0x588] sm:$0xff]
    %v265 = vld [vmem:[#allocation5 + $0x590] sm:$0xff]
    %v266 = vld [vmem:[#allocation5 + $0x598] sm:$0xff]
    %v267 = vld [vmem:[#allocation5 + $0x5a0] sm:$0xff]
    %v268 = vld [vmem:[#allocation5 + $0x5a8] sm:$0xff]
    %v269 = vld [vmem:[#allocation5 + $0x5b0] sm:$0xff]
    %v270 = vld [vmem:[#allocation5 + $0x5b8] sm:$0xff]
    %v271 = vld [vmem:[#allocation5 + $0x5c0] sm:$0xff]
    %v272 = vld [vmem:[#allocation5 + $0x5c8] sm:$0xff]
    %v273 = vld [vmem:[#allocation5 + $0x5d0] sm:$0xff]
    %v274 = vld [vmem:[#allocation5 + $0x5d8] sm:$0xff]
    %v275 = vld [vmem:[#allocation5 + $0x5e0] sm:$0xff]
    %v276 = vld [vmem:[#allocation5 + $0x5e8] sm:$0xff]
    %v277 = vld [vmem:[#allocation5 + $0x5f0] sm:$0xff]
    %v278 = vld [vmem:[#allocation5 + $0x5f8] sm:$0xff]
    %v279 = vld [vmem:[#allocation5 + $0x600] sm:$0xff]
    %v280 = vld [vmem:[#allocation5 + $0x608] sm:$0xff]
    %v281 = vld [vmem:[#allocation5 + $0x610] sm:$0xff]
    %v282 = vld [vmem:[#allocation5 + $0x618] sm:$0xff]
    %v283 = vld [vmem:[#allocation5 + $0x620] sm:$0xff]
    %v284 = vld [vmem:[#allocation5 + $0x628] sm:$0xff]
    %v285 = vld [vmem:[#allocation5 + $0x630] sm:$0xff]
    %v286 = vld [vmem:[#allocation5 + $0x638] sm:$0xff]
    %v287 = vld [vmem:[#allocation5 + $0x640] sm:$0xff]
    %v288 = vld [vmem:[#allocation5 + $0x648] sm:$0xff]
    %v289 = vld [vmem:[#allocation5 + $0x650] sm:$0xff]
    %v290 = vld [vmem:[#allocation5 + $0x658] sm:$0xff]
    %v291 = vld [vmem:[#allocation5 + $0x660] sm:$0xff]
    %v292 = vld [vmem:[#allocation5 + $0x668] sm:$0xff]
    %v293 = vld [vmem:[#allocation5 + $0x670] sm:$0xff]
    %v294 = vld [vmem:[#allocation5 + $0x678] sm:$0xff]
    %v295 = vld [vmem:[#allocation5 + $0x680] sm:$0xff]
    %v296 = vld [vmem:[#allocation5 + $0x688] sm:$0xff]
    %v297 = vld [vmem:[#allocation5 + $0x690] sm:$0xff]
    %v298 = vld [vmem:[#allocation5 + $0x698] sm:$0xff]
    %v299 = vld [vmem:[#allocation5 + $0x6a0] sm:$0xff]
    %v300 = vld [vmem:[#allocation5 + $0x6a8] sm:$0xff]
    %v301 = vld [vmem:[#allocation5 + $0x6b0] sm:$0xff]
    %v302 = vld [vmem:[#allocation5 + $0x6b8] sm:$0xff]
    %v303 = vld [vmem:[#allocation5 + $0x6c0] sm:$0xff]
    %v304 = vld [vmem:[#allocation5 + $0x6c8] sm:$0xff]
    %v305 = vld [vmem:[#allocation5 + $0x6d0] sm:$0xff]
    %v306 = vld [vmem:[#allocation5 + $0x6d8] sm:$0xff]
    %v307 = vld [vmem:[#allocation5 + $0x6e0] sm:$0xff]
    %v308 = vld [vmem:[#allocation5 + $0x6e8] sm:$0xff]
    %v309 = vld [vmem:[#allocation5 + $0x6f0] sm:$0xff]
    %v310 = vld [vmem:[#allocation5 + $0x6f8] sm:$0xff]
    %v311 = vld [vmem:[#allocation5 + $0x700] sm:$0xff]
    %v312 = vld [vmem:[#allocation5 + $0x708] sm:$0xff]
    %v313 = vld [vmem:[#allocation5 + $0x710] sm:$0xff]
    %v314 = vld [vmem:[#allocation5 + $0x718] sm:$0xff]
    %v315 = vld [vmem:[#allocation5 + $0x720] sm:$0xff]
    %v316 = vld [vmem:[#allocation5 + $0x728] sm:$0xff]
    %v317 = vld [vmem:[#allocation5 + $0x730] sm:$0xff]
    %v318 = vld [vmem:[#allocation5 + $0x738] sm:$0xff]
    %v319 = vld [vmem:[#allocation5 + $0x740] sm:$0xff]
    %v320 = vld [vmem:[#allocation5 + $0x748] sm:$0xff]
    %v321 = vld [vmem:[#allocation5 + $0x750] sm:$0xff]
    %v322 = vld [vmem:[#allocation5 + $0x758] sm:$0xff]
    %v323 = vld [vmem:[#allocation5 + $0x760] sm:$0xff]
    %v324 = vld [vmem:[#allocation5 + $0x768] sm:$0xff]
    %v325 = vld [vmem:[#allocation5 + $0x770] sm:$0xff]
    %v326 = vld [vmem:[#allocation5 + $0x778] sm:$0xff]
    %v327 = vld [vmem:[#allocation5 + $0x780] sm:$0xff]
    %v328 = vld [vmem:[#allocation5 + $0x788] sm:$0xff]
    %v329 = vld [vmem:[#allocation5 + $0x790] sm:$0xff]
    %v330 = vld [vmem:[#allocation5 + $0x798] sm:$0xff]
    %v331 = vld [vmem:[#allocation5 + $0x7a0] sm:$0xff]
    %v332 = vld [vmem:[#allocation5 + $0x7a8] sm:$0xff]
    %v333 = vld [vmem:[#allocation5 + $0x7b0] sm:$0xff]
    %v334 = vld [vmem:[#allocation5 + $0x7b8] sm:$0xff]
    %v335 = vld [vmem:[#allocation5 + $0x7c0] sm:$0xff]
    %v336 = vld [vmem:[#allocation5 + $0x7c8] sm:$0xff]
    %v337 = vld [vmem:[#allocation5 + $0x7d0] sm:$0xff]
    %v338 = vld [vmem:[#allocation5 + $0x7d8] sm:$0xff]
    %v339 = vld [vmem:[#allocation5 + $0x7e0] sm:$0xff]
    %v340 = vld [vmem:[#allocation5 + $0x7e8] sm:$0xff]
    %v341 = vld [vmem:[#allocation5 + $0x7f0] sm:$0xff]
    %v342 = vld [vmem:[#allocation5 + $0x7f8] sm:$0xff]
    %v343 = vld [vmem:[#allocation5 + $0x800] sm:$0xff]
    %v344 = vld [vmem:[#allocation5 + $0x808] sm:$0xff]
    %v345 = vld [vmem:[#allocation5 + $0x810] sm:$0xff]
    %v346 = vld [vmem:[#allocation5 + $0x818] sm:$0xff]
    %v347 = vld [vmem:[#allocation5 + $0x820] sm:$0xff]
    %v348 = vld [vmem:[#allocation5 + $0x828] sm:$0xff]
    %v349 = vld [vmem:[#allocation5 + $0x830] sm:$0xff]
    %v350 = vld [vmem:[#allocation5 + $0x838] sm:$0xff]
    %v351 = vld [vmem:[#allocation5 + $0x840] sm:$0xff]
    %v352 = vld [vmem:[#allocation5 + $0x848] sm:$0xff]
    %v353 = vld [vmem:[#allocation5 + $0x850] sm:$0xff]
    %v354 = vld [vmem:[#allocation5 + $0x858] sm:$0xff]
    %v355 = vld [vmem:[#allocation5 + $0x860] sm:$0xff]
    %v356 = vld [vmem:[#allocation5 + $0x868] sm:$0xff]
    %v357 = vld [vmem:[#allocation5 + $0x870] sm:$0xff]
    %v358 = vld [vmem:[#allocation5 + $0x878] sm:$0xff]
    %v359 = vld [vmem:[#allocation5 + $0x880] sm:$0xff]
    %v360 = vld [vmem:[#allocation5 + $0x888] sm:$0xff]
    %v361 = vld [vmem:[#allocation5 + $0x890] sm:$0xff]
    %v362 = vld [vmem:[#allocation5 + $0x898] sm:$0xff]
    %v363 = vld [vmem:[#allocation5 + $0x8a0] sm:$0xff]
    %v364 = vld [vmem:[#allocation5 + $0x8a8] sm:$0xff]
    %v365 = vld [vmem:[#allocation5 + $0x8b0] sm:$0xff]
    %v366 = vld [vmem:[#allocation5 + $0x8b8] sm:$0xff]
    %v367 = vld [vmem:[#allocation5 + $0x8c0] sm:$0xff]
    %v368 = vld [vmem:[#allocation5 + $0x8c8] sm:$0xff]
    %v369 = vld [vmem:[#allocation5 + $0x8d0] sm:$0xff]
    %v370 = vld [vmem:[#allocation5 + $0x8d8] sm:$0xff]
    %v371 = vld [vmem:[#allocation5 + $0x8e0] sm:$0xff]
    %v372 = vld [vmem:[#allocation5 + $0x8e8] sm:$0xff]
    %v373 = vld [vmem:[#allocation5 + $0x8f0] sm:$0xff]
    %v374 = vld [vmem:[#allocation5 + $0x8f8] sm:$0xff]
    %v375 = vld [vmem:[#allocation5 + $0x900] sm:$0xff]
    %v376 = vld [vmem:[#allocation5 + $0x908] sm:$0xff]
    %v377 = vld [vmem:[#allocation5 + $0x910] sm:$0xff]
    %v378 = vld [vmem:[#allocation5 + $0x918] sm:$0xff]
    %v379 = vld [vmem:[#allocation5 + $0x920] sm:$0xff]
    %v380 = vld [vmem:[#allocation5 + $0x928] sm:$0xff]
    %v381 = vld [vmem:[#allocation5 + $0x930] sm:$0xff]
    %v382 = vld [vmem:[#allocation5 + $0x938] sm:$0xff]
    %v383 = vld [vmem:[#allocation5 + $0x940] sm:$0xff]
    %v384 = vld [vmem:[#allocation5 + $0x948] sm:$0xff]
    %v385 = vld [vmem:[#allocation5 + $0x950] sm:$0xff]
    %v386 = vld [vmem:[#allocation5 + $0x958] sm:$0xff]
    %v387 = vld [vmem:[#allocation5 + $0x960] sm:$0xff]
    %v388 = vld [vmem:[#allocation5 + $0x968] sm:$0xff]
    %v389 = vld [vmem:[#allocation5 + $0x970] sm:$0xff]
    %v390 = vld [vmem:[#allocation5 + $0x978] sm:$0xff]
    %v391 = vld [vmem:[#allocation5 + $0x980] sm:$0xff]
    %v392 = vld [vmem:[#allocation5 + $0x988] sm:$0xff]
    %v393 = vld [vmem:[#allocation5 + $0x990] sm:$0xff]
    %v394 = vld [vmem:[#allocation5 + $0x998] sm:$0xff]
    %v395 = vld [vmem:[#allocation5 + $0x9a0] sm:$0xff]
    %v396 = vld [vmem:[#allocation5 + $0x9a8] sm:$0xff]
    %v397 = vld [vmem:[#allocation5 + $0x9b0] sm:$0xff]
    %v398 = vld [vmem:[#allocation5 + $0x9b8] sm:$0xff]
    %v399 = vld [vmem:[#allocation5 + $0x9c0] sm:$0xff]
    %v400 = vld [vmem:[#allocation5 + $0x9c8] sm:$0xff]
    %v401 = vld [vmem:[#allocation5 + $0x9d0] sm:$0xff]
    %v402 = vld [vmem:[#allocation5 + $0x9d8] sm:$0xff]
    %v403 = vld [vmem:[#allocation5 + $0x9e0] sm:$0xff]
    %v404 = vld [vmem:[#allocation5 + $0x9e8] sm:$0xff]
    %v405 = vld [vmem:[#allocation5 + $0x9f0] sm:$0xff]
    %v406 = vld [vmem:[#allocation5 + $0x9f8] sm:$0xff]
    %v407 = vld [vmem:[#allocation5 + $0xa00] sm:$0xff]
    %v408 = vld [vmem:[#allocation5 + $0xa08] sm:$0xff]
    %v409 = vld [vmem:[#allocation5 + $0xa10] sm:$0xff]
    %v410 = vld [vmem:[#allocation5 + $0xa18] sm:$0xff]
    %v411 = vld [vmem:[#allocation5 + $0xa20] sm:$0xff]
    %v412 = vld [vmem:[#allocation5 + $0xa28] sm:$0xff]
    %v413 = vld [vmem:[#allocation5 + $0xa30] sm:$0xff]
    %v414 = vld [vmem:[#allocation5 + $0xa38] sm:$0xff]
    %v415 = vld [vmem:[#allocation5 + $0xa40] sm:$0xff]
    %v416 = vld [vmem:[#allocation5 + $0xa48] sm:$0xff]
    %v417 = vld [vmem:[#allocation5 + $0xa50] sm:$0xff]
    %v418 = vld [vmem:[#allocation5 + $0xa58] sm:$0xff]
    %v419 = vld [vmem:[#allocation5 + $0xa60] sm:$0xff]
    %v420 = vld [vmem:[#allocation5 + $0xa68] sm:$0xff]
    %v421 = vld [vmem:[#allocation5 + $0xa70] sm:$0xff]
    %v422 = vld [vmem:[#allocation5 + $0xa78] sm:$0xff]
    %v423 = vld [vmem:[#allocation5 + $0xa80] sm:$0xff]
    %v424 = vld [vmem:[#allocation5 + $0xa88] sm:$0xff]
    %v425 = vld [vmem:[#allocation5 + $0xa90] sm:$0xff]
    %v426 = vld [vmem:[#allocation5 + $0xa98] sm:$0xff]
    %v427 = vld [vmem:[#allocation5 + $0xaa0] sm:$0xff]
    %v428 = vld [vmem:[#allocation5 + $0xaa8] sm:$0xff]
    %v429 = vld [vmem:[#allocation5 + $0xab0] sm:$0xff]
    %v430 = vld [vmem:[#allocation5 + $0xab8] sm:$0xff]
    %v431 = vld [vmem:[#allocation5 + $0xac0] sm:$0xff]
    %v432 = vld [vmem:[#allocation5 + $0xac8] sm:$0xff]
    %v433 = vld [vmem:[#allocation5 + $0xad0] sm:$0xff]
    %v434 = vld [vmem:[#allocation5 + $0xad8] sm:$0xff]
    %v435 = vld [vmem:[#allocation5 + $0xae0] sm:$0xff]
    %v436 = vld [vmem:[#allocation5 + $0xae8] sm:$0xff]
    %v437 = vld [vmem:[#allocation5 + $0xaf0] sm:$0xff]
    %v438 = vld [vmem:[#allocation5 + $0xaf8] sm:$0xff]
    %v439 = vld [vmem:[#allocation5 + $0xb00] sm:$0xff]
    %v440 = vld [vmem:[#allocation5 + $0xb08] sm:$0xff]
    %v441 = vld [vmem:[#allocation5 + $0xb10] sm:$0xff]
    %v442 = vld [vmem:[#allocation5 + $0xb18] sm:$0xff]
    %v443 = vld [vmem:[#allocation5 + $0xb20] sm:$0xff]
    %v444 = vld [vmem:[#allocation5 + $0xb28] sm:$0xff]
    %v445 = vld [vmem:[#allocation5 + $0xb30] sm:$0xff]
    %v446 = vld [vmem:[#allocation5 + $0xb38] sm:$0xff]
    %v447 = vld [vmem:[#allocation5 + $0xb40] sm:$0xff]
    %v448 = vld [vmem:[#allocation5 + $0xb48] sm:$0xff]
    %v449 = vld [vmem:[#allocation5 + $0xb50] sm:$0xff]
    %v450 = vld [vmem:[#allocation5 + $0xb58] sm:$0xff]
    %v451 = vld [vmem:[#allocation5 + $0xb60] sm:$0xff]
    %v452 = vld [vmem:[#allocation5 + $0xb68] sm:$0xff]
    %v453 = vld [vmem:[#allocation5 + $0xb70] sm:$0xff]
    %v454 = vld [vmem:[#allocation5 + $0xb78] sm:$0xff]
    %v455 = vld [vmem:[#allocation5 + $0xb80] sm:$0xff]
    %v456 = vld [vmem:[#allocation5 + $0xb88] sm:$0xff]
    %v457 = vld [vmem:[#allocation5 + $0xb90] sm:$0xff]
    %v458 = vld [vmem:[#allocation5 + $0xb98] sm:$0xff]
    %v459 = vld [vmem:[#allocation5 + $0xba0] sm:$0xff]
    %v460 = vld [vmem:[#allocation5 + $0xba8] sm:$0xff]
    %v461 = vld [vmem:[#allocation5 + $0xbb0] sm:$0xff]
    %v462 = vld [vmem:[#allocation5 + $0xbb8] sm:$0xff]
    %v463 = vld [vmem:[#allocation5 + $0xbc0] sm:$0xff]
    %v464 = vld [vmem:[#allocation5 + $0xbc8] sm:$0xff]
    %v465 = vld [vmem:[#allocation5 + $0xbd0] sm:$0xff]
    %v466 = vld [vmem:[#allocation5 + $0xbd8] sm:$0xff]
    %v467 = vld [vmem:[#allocation5 + $0xbe0] sm:$0xff]
    %v468 = vld [vmem:[#allocation5 + $0xbe8] sm:$0xff]
    %v469 = vld [vmem:[#allocation5 + $0xbf0] sm:$0xff]
    %v470 = vld [vmem:[#allocation5 + $0xbf8] sm:$0xff]
    %v471 = vld [vmem:[#allocation5 + $0xc00] sm:$0xff]
    %v472 = vld [vmem:[#allocation5 + $0xc08] sm:$0xff]
    %v473 = vld [vmem:[#allocation5 + $0xc10] sm:$0xff]
    %v474 = vld [vmem:[#allocation5 + $0xc18] sm:$0xff]
    %v475 = vld [vmem:[#allocation5 + $0xc20] sm:$0xff]
    %v476 = vld [vmem:[#allocation5 + $0xc28] sm:$0xff]
    %v477 = vld [vmem:[#allocation5 + $0xc30] sm:$0xff]
    %v478 = vld [vmem:[#allocation5 + $0xc38] sm:$0xff]
    %v479 = vld [vmem:[#allocation5 + $0xc40] sm:$0xff]
    %v480 = vld [vmem:[#allocation5 + $0xc48] sm:$0xff]
    %v481 = vld [vmem:[#allocation5 + $0xc50] sm:$0xff]
    %v482 = vld [vmem:[#allocation5 + $0xc58] sm:$0xff]
    %v483 = vld [vmem:[#allocation5 + $0xc60] sm:$0xff]
    %v484 = vld [vmem:[#allocation5 + $0xc68] sm:$0xff]
    %v485 = vld [vmem:[#allocation5 + $0xc70] sm:$0xff]
    %v486 = vld [vmem:[#allocation5 + $0xc78] sm:$0xff]
    %v487 = vld [vmem:[#allocation5 + $0xc80] sm:$0xff]
    %v488 = vld [vmem:[#allocation5 + $0xc88] sm:$0xff]
    %v489 = vld [vmem:[#allocation5 + $0xc90] sm:$0xff]
    %v490 = vld [vmem:[#allocation5 + $0xc98] sm:$0xff]
    %v491 = vld [vmem:[#allocation5 + $0xca0] sm:$0xff]
    %v492 = vld [vmem:[#allocation5 + $0xca8] sm:$0xff]
    %v493 = vld [vmem:[#allocation5 + $0xcb0] sm:$0xff]
    %v494 = vld [vmem:[#allocation5 + $0xcb8] sm:$0xff]
    %v495 = vld [vmem:[#allocation5 + $0xcc0] sm:$0xff]
    %v496 = vld [vmem:[#allocation5 + $0xcc8] sm:$0xff]
    %v497 = vld [vmem:[#allocation5 + $0xcd0] sm:$0xff]
    %v498 = vld [vmem:[#allocation5 + $0xcd8] sm:$0xff]
    %v499 = vld [vmem:[#allocation5 + $0xce0] sm:$0xff]
    %v500 = vld [vmem:[#allocation5 + $0xce8] sm:$0xff]
    %v501 = vld [vmem:[#allocation5 + $0xcf0] sm:$0xff]
    %v502 = vld [vmem:[#allocation5 + $0xcf8] sm:$0xff]
    %v503 = vld [vmem:[#allocation5 + $0xd00] sm:$0xff]
    %v504 = vld [vmem:[#allocation5 + $0xd08] sm:$0xff]
    %v505 = vld [vmem:[#allocation5 + $0xd10] sm:$0xff]
    %v506 = vld [vmem:[#allocation5 + $0xd18] sm:$0xff]
    %v507 = vld [vmem:[#allocation5 + $0xd20] sm:$0xff]
    %v508 = vld [vmem:[#allocation5 + $0xd28] sm:$0xff]
    %v509 = vld [vmem:[#allocation5 + $0xd30] sm:$0xff]
    %v510 = vld [vmem:[#allocation5 + $0xd38] sm:$0xff]
    %v511 = vld [vmem:[#allocation5 + $0xd40] sm:$0xff]
    %v512 = vld [vmem:[#allocation5 + $0xd48] sm:$0xff]
    %v513 = vld [vmem:[#allocation5 + $0xd50] sm:$0xff]
    %v514 = vld [vmem:[#allocation5 + $0xd58] sm:$0xff]
    %v515 = vld [vmem:[#allocation5 + $0xd60] sm:$0xff]
    %v516 = vld [vmem:[#allocation5 + $0xd68] sm:$0xff]
    %v517 = vld [vmem:[#allocation5 + $0xd70] sm:$0xff]
    %v518 = vld [vmem:[#allocation5 + $0xd78] sm:$0xff]
    %v519 = vld [vmem:[#allocation5 + $0xd80] sm:$0xff]
    %v520 = vld [vmem:[#allocation5 + $0xd88] sm:$0xff]
    %v521 = vld [vmem:[#allocation5 + $0xd90] sm:$0xff]
    %v522 = vld [vmem:[#allocation5 + $0xd98] sm:$0xff]
    %v523 = vld [vmem:[#allocation5 + $0xda0] sm:$0xff]
    %v524 = vld [vmem:[#allocation5 + $0xda8] sm:$0xff]
    %v525 = vld [vmem:[#allocation5 + $0xdb0] sm:$0xff]
    %v526 = vld [vmem:[#allocation5 + $0xdb8] sm:$0xff]
    %v527 = vld [vmem:[#allocation5 + $0xdc0] sm:$0xff]
    %v528 = vld [vmem:[#allocation5 + $0xdc8] sm:$0xff]
    %v529 = vld [vmem:[#allocation5 + $0xdd0] sm:$0xff]
    %v530 = vld [vmem:[#allocation5 + $0xdd8] sm:$0xff]
    %v531 = vld [vmem:[#allocation5 + $0xde0] sm:$0xff]
    %v532 = vld [vmem:[#allocation5 + $0xde8] sm:$0xff]
    %v533 = vld [vmem:[#allocation5 + $0xdf0] sm:$0xff]
    %v534 = vld [vmem:[#allocation5 + $0xdf8] sm:$0xff]
    %v535 = vld [vmem:[#allocation5 + $0xe00] sm:$0xff]
    %v536 = vld [vmem:[#allocation5 + $0xe08] sm:$0xff]
    %v537 = vld [vmem:[#allocation5 + $0xe10] sm:$0xff]
    %v538 = vld [vmem:[#allocation5 + $0xe18] sm:$0xff]
    %v539 = vld [vmem:[#allocation5 + $0xe20] sm:$0xff]
    %v540 = vld [vmem:[#allocation5 + $0xe28] sm:$0xff]
    %v541 = vld [vmem:[#allocation5 + $0xe30] sm:$0xff]
    %v542 = vld [vmem:[#allocation5 + $0xe38] sm:$0xff]
    %v543 = vld [vmem:[#allocation5 + $0xe40] sm:$0xff]
    %v544 = vld [vmem:[#allocation5 + $0xe48] sm:$0xff]
    %v545 = vld [vmem:[#allocation5 + $0xe50] sm:$0xff]
    %v546 = vld [vmem:[#allocation5 + $0xe58] sm:$0xff]
    %v547 = vld [vmem:[#allocation5 + $0xe60] sm:$0xff]
    %v548 = vld [vmem:[#allocation5 + $0xe68] sm:$0xff]
    %v549 = vld [vmem:[#allocation5 + $0xe70] sm:$0xff]
    %v550 = vld [vmem:[#allocation5 + $0xe78] sm:$0xff]
    %v551 = vld [vmem:[#allocation5 + $0xe80] sm:$0xff]
    %v552 = vld [vmem:[#allocation5 + $0xe88] sm:$0xff]
    %v553 = vld [vmem:[#allocation5 + $0xe90] sm:$0xff]
    %v554 = vld [vmem:[#allocation5 + $0xe98] sm:$0xff]
    %v555 = vld [vmem:[#allocation5 + $0xea0] sm:$0xff]
    %v556 = vld [vmem:[#allocation5 + $0xea8] sm:$0xff]
    %v557 = vld [vmem:[#allocation5 + $0xeb0] sm:$0xff]
    %v558 = vld [vmem:[#allocation5 + $0xeb8] sm:$0xff]
    %v559 = vld [vmem:[#allocation5 + $0xec0] sm:$0xff]
    %v560 = vld [vmem:[#allocation5 + $0xec8] sm:$0xff]
    %v561 = vld [vmem:[#allocation5 + $0xed0] sm:$0xff]
    %v562 = vld [vmem:[#allocation5 + $0xed8] sm:$0xff]
    %v563 = vld [vmem:[#allocation5 + $0xee0] sm:$0xff]
    %v564 = vld [vmem:[#allocation5 + $0xee8] sm:$0xff]
    %v565 = vld [vmem:[#allocation5 + $0xef0] sm:$0xff]
    %v566 = vld [vmem:[#allocation5 + $0xef8] sm:$0xff]
    %v567 = vld [vmem:[#allocation5 + $0xf00] sm:$0xff]
    %v568 = vld [vmem:[#allocation5 + $0xf08] sm:$0xff]
    %v569 = vld [vmem:[#allocation5 + $0xf10] sm:$0xff]
    %v570 = vld [vmem:[#allocation5 + $0xf18] sm:$0xff]
    %v571 = vld [vmem:[#allocation5 + $0xf20] sm:$0xff]
    %v572 = vld [vmem:[#allocation5 + $0xf28] sm:$0xff]
    %v573 = vld [vmem:[#allocation5 + $0xf30] sm:$0xff]
    %v574 = vld [vmem:[#allocation5 + $0xf38] sm:$0xff]
    %v575 = vld [vmem:[#allocation5 + $0xf40] sm:$0xff]
    %v576 = vld [vmem:[#allocation5 + $0xf48] sm:$0xff]
    %v577 = vld [vmem:[#allocation5 + $0xf50] sm:$0xff]
    %v578 = vld [vmem:[#allocation5 + $0xf58] sm:$0xff]
    %v579 = vld [vmem:[#allocation5 + $0xf60] sm:$0xff]
    %v580 = vld [vmem:[#allocation5 + $0xf68] sm:$0xff]
    %v581 = vld [vmem:[#allocation5 + $0xf70] sm:$0xff]
    %v582 = vld [vmem:[#allocation5 + $0xf78] sm:$0xff]
    %v583 = vld [vmem:[#allocation5 + $0xf80] sm:$0xff]
    %v584 = vld [vmem:[#allocation5 + $0xf88] sm:$0xff]
    %v585 = vld [vmem:[#allocation5 + $0xf90] sm:$0xff]
    %v586 = vld [vmem:[#allocation5 + $0xf98] sm:$0xff]
    %v587 = vld [vmem:[#allocation5 + $0xfa0] sm:$0xff]
    %v588 = vld [vmem:[#allocation5 + $0xfa8] sm:$0xff]
    %v589 = vld [vmem:[#allocation5 + $0xfb0] sm:$0xff]
    %v590 = vld [vmem:[#allocation5 + $0xfb8] sm:$0xff]
    %v591 = vld [vmem:[#allocation5 + $0xfc0] sm:$0xff]
    %v592 = vld [vmem:[#allocation5 + $0xfc8] sm:$0xff]
    %v593 = vld [vmem:[#allocation5 + $0xfd0] sm:$0xff]
    %v594 = vld [vmem:[#allocation5 + $0xfd8] sm:$0xff]
    %v595 = vld [vmem:[#allocation5 + $0xfe0] sm:$0xff]
    %v596 = vld [vmem:[#allocation5 + $0xfe8] sm:$0xff]
    %v597 = vld [vmem:[#allocation5 + $0xff0] sm:$0xff]
    %v598 = vld [vmem:[#allocation5 + $0xff8] sm:$0xff]
    %v599 = vld [vmem:[#allocation5 + $0x1000] sm:$0xff]
    %v600 = vld [vmem:[#allocation5 + $0x1008] sm:$0xff]
    %v601 = vld [vmem:[#allocation5 + $0x1010] sm:$0xff]
    %v602 = vld [vmem:[#allocation5 + $0x1018] sm:$0xff]
    %v603 = vld [vmem:[#allocation5 + $0x1020] sm:$0xff]
    %v604 = vld [vmem:[#allocation5 + $0x1028] sm:$0xff]
    %v605 = vld [vmem:[#allocation5 + $0x1030] sm:$0xff]
    %v606 = vld [vmem:[#allocation5 + $0x1038] sm:$0xff]
    %v607 = vld [vmem:[#allocation5 + $0x1040] sm:$0xff]
    %v608 = vld [vmem:[#allocation5 + $0x1048] sm:$0xff]
    %v609 = vld [vmem:[#allocation5 + $0x1050] sm:$0xff]
    %v610 = vld [vmem:[#allocation5 + $0x1058] sm:$0xff]
    %v611 = vld [vmem:[#allocation5 + $0x1060] sm:$0xff]
    %v612 = vld [vmem:[#allocation5 + $0x1068] sm:$0xff]
    %v613 = vld [vmem:[#allocation5 + $0x1070] sm:$0xff]
    %v614 = vld [vmem:[#allocation5 + $0x1078] sm:$0xff]
    %v615 = vld [vmem:[#allocation5 + $0x1080] sm:$0xff]
    %v616 = vld [vmem:[#allocation5 + $0x1088] sm:$0xff]
    %v617 = vld [vmem:[#allocation5 + $0x1090] sm:$0xff]
    %v618 = vld [vmem:[#allocation5 + $0x1098] sm:$0xff]
    %v619 = vld [vmem:[#allocation5 + $0x10a0] sm:$0xff]
    %v620 = vld [vmem:[#allocation5 + $0x10a8] sm:$0xff]
    %v621 = vld [vmem:[#allocation5 + $0x10b0] sm:$0xff]
    %v622 = vld [vmem:[#allocation5 + $0x10b8] sm:$0xff]
    %v623 = vld [vmem:[#allocation5 + $0x10c0] sm:$0xff]
    %v624 = vld [vmem:[#allocation5 + $0x10c8] sm:$0xff]
    %v625 = vld [vmem:[#allocation5 + $0x10d0] sm:$0xff]
    %v626 = vld [vmem:[#allocation5 + $0x10d8] sm:$0xff]
    %v627 = vld [vmem:[#allocation5 + $0x10e0] sm:$0xff]
    %v628 = vld [vmem:[#allocation5 + $0x10e8] sm:$0xff]
    %v629 = vld [vmem:[#allocation5 + $0x10f0] sm:$0xff]
    %v630 = vld [vmem:[#allocation5 + $0x10f8] sm:$0xff]
    %v631 = vld [vmem:[#allocation5 + $0x1100] sm:$0xff]
    %v632 = vld [vmem:[#allocation5 + $0x1108] sm:$0xff]
    %v633 = vld [vmem:[#allocation5 + $0x1110] sm:$0xff]
    %v634 = vld [vmem:[#allocation5 + $0x1118] sm:$0xff]
    %v635 = vld [vmem:[#allocation5 + $0x1120] sm:$0xff]
    %v636 = vld [vmem:[#allocation5 + $0x1128] sm:$0xff]
    %v637 = vld [vmem:[#allocation5 + $0x1130] sm:$0xff]
    %v638 = vld [vmem:[#allocation5 + $0x1138] sm:$0xff]
    %v639 = vld [vmem:[#allocation5 + $0x1140] sm:$0xff]
    %v640 = vld [vmem:[#allocation5 + $0x1148] sm:$0xff]
    %v641 = vld [vmem:[#allocation5 + $0x1150] sm:$0xff]
    %v642 = vld [vmem:[#allocation5 + $0x1158] sm:$0xff]
    %v643 = vld [vmem:[#allocation5 + $0x1160] sm:$0xff]
    %v644 = vld [vmem:[#allocation5 + $0x1168] sm:$0xff]
    %v645 = vld [vmem:[#allocation5 + $0x1170] sm:$0xff]
    %v646 = vld [vmem:[#allocation5 + $0x1178] sm:$0xff]
    %v647 = vld [vmem:[#allocation5 + $0x1180] sm:$0xff]
    %v648 = vld [vmem:[#allocation5 + $0x1188] sm:$0xff]
    %v649 = vld [vmem:[#allocation5 + $0x1190] sm:$0xff]
    %v650 = vld [vmem:[#allocation5 + $0x1198] sm:$0xff]
    %v651 = vld [vmem:[#allocation5 + $0x11a0] sm:$0xff]
    %v652 = vld [vmem:[#allocation5 + $0x11a8] sm:$0xff]
    %v653 = vld [vmem:[#allocation5 + $0x11b0] sm:$0xff]
    %v654 = vld [vmem:[#allocation5 + $0x11b8] sm:$0xff]
    %v655 = vld [vmem:[#allocation5 + $0x11c0] sm:$0xff]
    %v656 = vld [vmem:[#allocation5 + $0x11c8] sm:$0xff]
    %v657 = vld [vmem:[#allocation5 + $0x11d0] sm:$0xff]
    %v658 = vld [vmem:[#allocation5 + $0x11d8] sm:$0xff]
    %v659 = vld [vmem:[#allocation5 + $0x11e0] sm:$0xff]
    %v660 = vld [vmem:[#allocation5 + $0x11e8] sm:$0xff]
    %v661 = vld [vmem:[#allocation5 + $0x11f0] sm:$0xff]
    %v662 = vld [vmem:[#allocation5 + $0x11f8] sm:$0xff]
    %v663 = vld [vmem:[#allocation5 + $0x1200] sm:$0xff]
    %v664 = vld [vmem:[#allocation5 + $0x1208] sm:$0xff]
    %v665 = vld [vmem:[#allocation5 + $0x1210] sm:$0xff]
    %v666 = vld [vmem:[#allocation5 + $0x1218] sm:$0xff]
    %v667 = vld [vmem:[#allocation5 + $0x1220] sm:$0xff]
    %v668 = vld [vmem:[#allocation5 + $0x1228] sm:$0xff]
    %v669 = vld [vmem:[#allocation5 + $0x1230] sm:$0xff]
    %v670 = vld [vmem:[#allocation5 + $0x1238] sm:$0xff]
    %v671 = vld [vmem:[#allocation5 + $0x1240] sm:$0xff]
    %v672 = vld [vmem:[#allocation5 + $0x1248] sm:$0xff]
    %v673 = vld [vmem:[#allocation5 + $0x1250] sm:$0xff]
    %v674 = vld [vmem:[#allocation5 + $0x1258] sm:$0xff]
    %v675 = vld [vmem:[#allocation5 + $0x1260] sm:$0xff]
    %v676 = vld [vmem:[#allocation5 + $0x1268] sm:$0xff]
    %v677 = vld [vmem:[#allocation5 + $0x1270] sm:$0xff]
    %v678 = vld [vmem:[#allocation5 + $0x1278] sm:$0xff]
    %v679 = vld [vmem:[#allocation5 + $0x1280] sm:$0xff]
    %v680 = vld [vmem:[#allocation5 + $0x1288] sm:$0xff]
    %v681 = vld [vmem:[#allocation5 + $0x1290] sm:$0xff]
    %v682 = vld [vmem:[#allocation5 + $0x1298] sm:$0xff]
    %v683 = vld [vmem:[#allocation5 + $0x12a0] sm:$0xff]
    %v684 = vld [vmem:[#allocation5 + $0x12a8] sm:$0xff]
    %v685 = vld [vmem:[#allocation5 + $0x12b0] sm:$0xff]
    %v686 = vld [vmem:[#allocation5 + $0x12b8] sm:$0xff]
    %v687 = vld [vmem:[#allocation5 + $0x12c0] sm:$0xff]
    %v688 = vld [vmem:[#allocation5 + $0x12c8] sm:$0xff]
    %v689 = vld [vmem:[#allocation5 + $0x12d0] sm:$0xff]
    %v690 = vld [vmem:[#allocation5 + $0x12d8] sm:$0xff]
    %v691 = vld [vmem:[#allocation5 + $0x12e0] sm:$0xff]
    %v692 = vld [vmem:[#allocation5 + $0x12e8] sm:$0xff]
    %v693 = vld [vmem:[#allocation5 + $0x12f0] sm:$0xff]
    %v694 = vld [vmem:[#allocation5 + $0x12f8] sm:$0xff]
    %v695 = vld [vmem:[#allocation5 + $0x1300] sm:$0xff]
    %v696 = vld [vmem:[#allocation5 + $0x1308] sm:$0xff]
    %v697 = vld [vmem:[#allocation5 + $0x1310] sm:$0xff]
    %v698 = vld [vmem:[#allocation5 + $0x1318] sm:$0xff]
    %v699 = vld [vmem:[#allocation5 + $0x1320] sm:$0xff]
    %v700 = vld [vmem:[#allocation5 + $0x1328] sm:$0xff]
    %v701 = vld [vmem:[#allocation5 + $0x1330] sm:$0xff]
    %v702 = vld [vmem:[#allocation5 + $0x1338] sm:$0xff]
    %v703 = vld [vmem:[#allocation5 + $0x1340] sm:$0xff]
    %v704 = vld [vmem:[#allocation5 + $0x1348] sm:$0xff]
    %v705 = vld [vmem:[#allocation5 + $0x1350] sm:$0xff]
    %v706 = vld [vmem:[#allocation5 + $0x1358] sm:$0xff]
    %v707 = vld [vmem:[#allocation5 + $0x1360] sm:$0xff]
    %v708 = vld [vmem:[#allocation5 + $0x1368] sm:$0xff]
    %v709 = vld [vmem:[#allocation5 + $0x1370] sm:$0xff]
    %v710 = vld [vmem:[#allocation5 + $0x1378] sm:$0xff]
    %v711 = vld [vmem:[#allocation5 + $0x1380] sm:$0xff]
    %v712 = vld [vmem:[#allocation5 + $0x1388] sm:$0xff]
    %v713 = vld [vmem:[#allocation5 + $0x1390] sm:$0xff]
    %v714 = vld [vmem:[#allocation5 + $0x1398] sm:$0xff]
    %v715 = vld [vmem:[#allocation5 + $0x13a0] sm:$0xff]
    %v716 = vld [vmem:[#allocation5 + $0x13a8] sm:$0xff]
    %v717 = vld [vmem:[#allocation5 + $0x13b0] sm:$0xff]
    %v718 = vld [vmem:[#allocation5 + $0x13b8] sm:$0xff]
    %v719 = vld [vmem:[#allocation5 + $0x13c0] sm:$0xff]
    %v720 = vld [vmem:[#allocation5 + $0x13c8] sm:$0xff]
    %v721 = vld [vmem:[#allocation5 + $0x13d0] sm:$0xff]
    %v722 = vld [vmem:[#allocation5 + $0x13d8] sm:$0xff]
    %v723 = vld [vmem:[#allocation5 + $0x13e0] sm:$0xff]
    %v724 = vld [vmem:[#allocation5 + $0x13e8] sm:$0xff]
    %v725 = vld [vmem:[#allocation5 + $0x13f0] sm:$0xff]
    %v726 = vld [vmem:[#allocation5 + $0x13f8] sm:$0xff]
    %v727 = vld [vmem:[#allocation5 + $0x1400] sm:$0xff]
    %v728 = vld [vmem:[#allocation5 + $0x1408] sm:$0xff]
    %v729 = vld [vmem:[#allocation5 + $0x1410] sm:$0xff]
    %v730 = vld [vmem:[#allocation5 + $0x1418] sm:$0xff]
    %v731 = vld [vmem:[#allocation5 + $0x1420] sm:$0xff]
    %v732 = vld [vmem:[#allocation5 + $0x1428] sm:$0xff]
    %v733 = vld [vmem:[#allocation5 + $0x1430] sm:$0xff]
    %v734 = vld [vmem:[#allocation5 + $0x1438] sm:$0xff]
    %v735 = vld [vmem:[#allocation5 + $0x1440] sm:$0xff]
    %v736 = vld [vmem:[#allocation5 + $0x1448] sm:$0xff]
    %v737 = vld [vmem:[#allocation5 + $0x1450] sm:$0xff]
    %v738 = vld [vmem:[#allocation5 + $0x1458] sm:$0xff]
    %v739 = vld [vmem:[#allocation5 + $0x1460] sm:$0xff]
    %v740 = vld [vmem:[#allocation5 + $0x1468] sm:$0xff]
    %v741 = vld [vmem:[#allocation5 + $0x1470] sm:$0xff]
    %v742 = vld [vmem:[#allocation5 + $0x1478] sm:$0xff]
    %v743 = vld [vmem:[#allocation5 + $0x1480] sm:$0xff]
    %v744 = vld [vmem:[#allocation5 + $0x1488] sm:$0xff]
    %v745 = vld [vmem:[#allocation5 + $0x1490] sm:$0xff]
    %v746 = vld [vmem:[#allocation5 + $0x1498] sm:$0xff]
    %v747 = vld [vmem:[#allocation5 + $0x14a0] sm:$0xff]
    %v748 = vld [vmem:[#allocation5 + $0x14a8] sm:$0xff]
    %v749 = vld [vmem:[#allocation5 + $0x14b0] sm:$0xff]
    %v750 = vld [vmem:[#allocation5 + $0x14b8] sm:$0xff]
    %v751 = vld [vmem:[#allocation5 + $0x14c0] sm:$0xff]
    %v752 = vld [vmem:[#allocation5 + $0x14c8] sm:$0xff]
    %v753 = vld [vmem:[#allocation5 + $0x14d0] sm:$0xff]
    %v754 = vld [vmem:[#allocation5 + $0x14d8] sm:$0xff]
    %v755 = vld [vmem:[#allocation5 + $0x14e0] sm:$0xff]
    %v756 = vld [vmem:[#allocation5 + $0x14e8] sm:$0xff]
    %v757 = vld [vmem:[#allocation5 + $0x14f0] sm:$0xff]
    %v758 = vld [vmem:[#allocation5 + $0x14f8] sm:$0xff]
    %v759 = vld [vmem:[#allocation5 + $0x1500] sm:$0xff]
    %v760 = vld [vmem:[#allocation5 + $0x1508] sm:$0xff]
    %v761 = vld [vmem:[#allocation5 + $0x1510] sm:$0xff]
    %v762 = vld [vmem:[#allocation5 + $0x1518] sm:$0xff]
    %v763 = vld [vmem:[#allocation5 + $0x1520] sm:$0xff]
    %v764 = vld [vmem:[#allocation5 + $0x1528] sm:$0xff]
    %v765 = vld [vmem:[#allocation5 + $0x1530] sm:$0xff]
    %v766 = vld [vmem:[#allocation5 + $0x1538] sm:$0xff]
    %v767 = vld [vmem:[#allocation5 + $0x1540] sm:$0xff]
    %v768 = vld [vmem:[#allocation5 + $0x1548] sm:$0xff]
    %v769 = vld [vmem:[#allocation5 + $0x1550] sm:$0xff]
    %v770 = vld [vmem:[#allocation5 + $0x1558] sm:$0xff]
    %v771 = vld [vmem:[#allocation5 + $0x1560] sm:$0xff]
    %v772 = vld [vmem:[#allocation5 + $0x1568] sm:$0xff]
    %v773 = vld [vmem:[#allocation5 + $0x1570] sm:$0xff]
    %v774 = vld [vmem:[#allocation5 + $0x1578] sm:$0xff]
    %v775 = vld [vmem:[#allocation5 + $0x1580] sm:$0xff]
    %v776 = vld [vmem:[#allocation5 + $0x1588] sm:$0xff]
    %v777 = vld [vmem:[#allocation5 + $0x1590] sm:$0xff]
    %v778 = vld [vmem:[#allocation5 + $0x1598] sm:$0xff]
    %v779 = vld [vmem:[#allocation5 + $0x15a0] sm:$0xff]
    %v780 = vld [vmem:[#allocation5 + $0x15a8] sm:$0xff]
    %v781 = vld [vmem:[#allocation5 + $0x15b0] sm:$0xff]
    %v782 = vld [vmem:[#allocation5 + $0x15b8] sm:$0xff]
    %v783 = vld [vmem:[#allocation5 + $0x15c0] sm:$0xff]
    %v784 = vld [vmem:[#allocation5 + $0x15c8] sm:$0xff]
    %v785 = vld [vmem:[#allocation5 + $0x15d0] sm:$0xff]
    %v786 = vld [vmem:[#allocation5 + $0x15d8] sm:$0xff]
    %v787 = vld [vmem:[#allocation5 + $0x15e0] sm:$0xff]
    %v788 = vld [vmem:[#allocation5 + $0x15e8] sm:$0xff]
    %v789 = vld [vmem:[#allocation5 + $0x15f0] sm:$0xff]
    %v790 = vld [vmem:[#allocation5 + $0x15f8] sm:$0xff]
    %v791 = vld [vmem:[#allocation5 + $0x1600] sm:$0xff]
    %v792 = vld [vmem:[#allocation5 + $0x1608] sm:$0xff]
    %v793 = vld [vmem:[#allocation5 + $0x1610] sm:$0xff]
    %v794 = vld [vmem:[#allocation5 + $0x1618] sm:$0xff]
    %v795 = vld [vmem:[#allocation5 + $0x1620] sm:$0xff]
    %v796 = vld [vmem:[#allocation5 + $0x1628] sm:$0xff]
    %v797 = vld [vmem:[#allocation5 + $0x1630] sm:$0xff]
    %v798 = vld [vmem:[#allocation5 + $0x1638] sm:$0xff]
    %v799 = vld [vmem:[#allocation5 + $0x1640] sm:$0xff]
    %v800 = vld [vmem:[#allocation5 + $0x1648] sm:$0xff]
    %v801 = vld [vmem:[#allocation5 + $0x1650] sm:$0xff]
    %v802 = vld [vmem:[#allocation5 + $0x1658] sm:$0xff]
    %v803 = vld [vmem:[#allocation5 + $0x1660] sm:$0xff]
    %v804 = vld [vmem:[#allocation5 + $0x1668] sm:$0xff]
    %v805 = vld [vmem:[#allocation5 + $0x1670] sm:$0xff]
    %v806 = vld [vmem:[#allocation5 + $0x1678] sm:$0xff]
    %v807 = vld [vmem:[#allocation5 + $0x1680] sm:$0xff]
    %v808 = vld [vmem:[#allocation5 + $0x1688] sm:$0xff]
    %v809 = vld [vmem:[#allocation5 + $0x1690] sm:$0xff]
    %v810 = vld [vmem:[#allocation5 + $0x1698] sm:$0xff]
    %v811 = vld [vmem:[#allocation5 + $0x16a0] sm:$0xff]
    %v812 = vld [vmem:[#allocation5 + $0x16a8] sm:$0xff]
    %v813 = vld [vmem:[#allocation5 + $0x16b0] sm:$0xff]
    %v814 = vld [vmem:[#allocation5 + $0x16b8] sm:$0xff]
    %v815 = vld [vmem:[#allocation5 + $0x16c0] sm:$0xff]
    %v816 = vld [vmem:[#allocation5 + $0x16c8] sm:$0xff]
    %v817 = vld [vmem:[#allocation5 + $0x16d0] sm:$0xff]
    %v818 = vld [vmem:[#allocation5 + $0x16d8] sm:$0xff]
    %v819 = vld [vmem:[#allocation5 + $0x16e0] sm:$0xff]
    %v820 = vld [vmem:[#allocation5 + $0x16e8] sm:$0xff]
    %v821 = vld [vmem:[#allocation5 + $0x16f0] sm:$0xff]
    %v822 = vld [vmem:[#allocation5 + $0x16f8] sm:$0xff]
    %v823 = vld [vmem:[#allocation5 + $0x1700] sm:$0xff]
    %v824 = vld [vmem:[#allocation5 + $0x1708] sm:$0xff]
    %v825 = vld [vmem:[#allocation5 + $0x1710] sm:$0xff]
    %v826 = vld [vmem:[#allocation5 + $0x1718] sm:$0xff]
    %v827 = vld [vmem:[#allocation5 + $0x1720] sm:$0xff]
    %v828 = vld [vmem:[#allocation5 + $0x1728] sm:$0xff]
    %v829 = vld [vmem:[#allocation5 + $0x1730] sm:$0xff]
    %v830 = vld [vmem:[#allocation5 + $0x1738] sm:$0xff]
    %v831 = vld [vmem:[#allocation5 + $0x1740] sm:$0xff]
    %v832 = vld [vmem:[#allocation5 + $0x1748] sm:$0xff]
    %v833 = vld [vmem:[#allocation5 + $0x1750] sm:$0xff]
    %v834 = vld [vmem:[#allocation5 + $0x1758] sm:$0xff]
    %v835 = vld [vmem:[#allocation5 + $0x1760] sm:$0xff]
    %v836 = vld [vmem:[#allocation5 + $0x1768] sm:$0xff]
    %v837 = vld [vmem:[#allocation5 + $0x1770] sm:$0xff]
    %v838 = vld [vmem:[#allocation5 + $0x1778] sm:$0xff]
    %v839 = vld [vmem:[#allocation5 + $0x1780] sm:$0xff]
    %v840 = vld [vmem:[#allocation5 + $0x1788] sm:$0xff]
    %v841 = vld [vmem:[#allocation5 + $0x1790] sm:$0xff]
    %v842 = vld [vmem:[#allocation5 + $0x1798] sm:$0xff]
    %v843 = vld [vmem:[#allocation5 + $0x17a0] sm:$0xff]
    %v844 = vld [vmem:[#allocation5 + $0x17a8] sm:$0xff]
    %v845 = vld [vmem:[#allocation5 + $0x17b0] sm:$0xff]
    %v846 = vld [vmem:[#allocation5 + $0x17b8] sm:$0xff]
    %v847 = vld [vmem:[#allocation5 + $0x17c0] sm:$0xff]
    %v848 = vld [vmem:[#allocation5 + $0x17c8] sm:$0xff]
    %v849 = vld [vmem:[#allocation5 + $0x17d0] sm:$0xff]
    %v850 = vld [vmem:[#allocation5 + $0x17d8] sm:$0xff]
    %v851 = vld [vmem:[#allocation5 + $0x17e0] sm:$0xff]
    %v852 = vld [vmem:[#allocation5 + $0x17e8] sm:$0xff]
    %v853 = vld [vmem:[#allocation5 + $0x17f0] sm:$0xff]
    %v854 = vld [vmem:[#allocation5 + $0x17f8] sm:$0xff]
    %v855 = vld [vmem:[#allocation7] ss:$2 sm:$0x3f]
    %v857 = vlaneseq
    %v858 = vshrl.u32 %v857, 7
    %v859 = vsub.s32 0, %v858
    %v860 = vrot.slane %v855, %v859
    %v861 = vlaneseq
    %v862 = vshrl.u32 %v861, 7
    %v863 = vsub.s32 1, %v862
    %v864 = vrot.slane %v855, %v863
    %v865 = vlaneseq
    %v866 = vshrl.u32 %v865, 7
    %v867 = vsub.s32 2, %v866
    %v868 = vrot.slane %v855, %v867
    %v869 = vlaneseq
    %v870 = vshrl.u32 %v869, 7
    %v871 = vsub.s32 3, %v870
    %v872 = vrot.slane %v855, %v871
    %v873 = vlaneseq
    %v874 = vshrl.u32 %v873, 7
    %v875 = vsub.s32 4, %v874
    %v876 = vrot.slane %v855, %v875
    %v877 = vlaneseq
    %v878 = vshrl.u32 %v877, 7
    %v879 = vsub.s32 5, %v878
    %v880 = vrot.slane %v855, %v879
    %887 = vmatprep.subr.mxu0 %v88
    %888 = vmatpush1.msra.mxu0 %v87
    %889 = vmatprep.subr.mxu0 %v94
    %890 = vmatpush1.msra.mxu0 %v93
    %891 = vmatprep.subr.mxu0 %v100
    %892 = vmatpush1.msra.mxu0 %v99
    %893 = vmatprep.subr.mxu0 %v106
    %894 = vmatpush1.msra.mxu0 %v105
    %895 = vmatprep.subr.mxu0 %v112
    %896 = vmatpush1.msra.mxu0 %v111
    %897 = vmatprep.subr.mxu0 %v118
    %898 = vmatpush1.msra.mxu0 %v117
    %899 = vmatprep.subr.mxu0 %v124
    %900 = vmatpush1.msra.mxu0 %v123
    %901 = vmatprep.subr.mxu0 %v130
    %902 = vmatpush1.msra.mxu0 %v129
    %903 = vmatprep.subr.mxu0 %v136
    %904 = vmatpush1.msra.mxu0 %v135
    %905 = vmatprep.subr.mxu0 %v142
    %906 = vmatpush1.msra.mxu0 %v141
    %907 = vmatprep.subr.mxu0 %v148
    %908 = vmatpush1.msra.mxu0 %v147
    %909 = vmatprep.subr.mxu0 %v154
    %910 = vmatpush1.msra.mxu0 %v153
    %911 = vmatprep.subr.mxu0 %v160
    %912 = vmatpush1.msra.mxu0 %v159
    %913 = vmatprep.subr.mxu0 %v166
    %914 = vmatpush1.msra.mxu0 %v165
    %915 = vmatprep.subr.mxu0 %v172
    %916 = vmatpush1.msra.mxu0 %v171
    %917 = vmatprep.subr.mxu0 %v178
    %918 = vmatpush1.msra.mxu0 %v177
    %919 = vmatprep.subr.mxu0 %v184
    %920 = vmatpush1.msra.mxu0 %v183
    %921 = vmatprep.subr.mxu0 %v190
    %922 = vmatpush1.msra.mxu0 %v189
    %923 = vmatprep.subr.mxu0 %v196
    %924 = vmatpush1.msra.mxu0 %v195
    %925 = vmatprep.subr.mxu0 %v202
    %926 = vmatpush1.msra.mxu0 %v201
    %927 = vmatprep.subr.mxu0 %v208
    %928 = vmatpush1.msra.mxu0 %v207
    %929 = vmatprep.subr.mxu0 %v214
    %930 = vmatpush1.msra.mxu0 %v213
    %931 = vmatprep.subr.mxu0 %v220
    %932 = vmatpush1.msra.mxu0 %v219
    %933 = vmatprep.subr.mxu0 %v226
    %934 = vmatpush1.msra.mxu0 %v225
    %935 = vmatprep.subr.mxu0 %v232
    %936 = vmatpush1.msra.mxu0 %v231
    %937 = vmatprep.subr.mxu0 %v238
    %938 = vmatpush1.msra.mxu0 %v237
    %939 = vmatprep.subr.mxu0 %v244
    %940 = vmatpush1.msra.mxu0 %v243
    %941 = vmatprep.subr.mxu0 %v250
    %942 = vmatpush1.msra.mxu0 %v249
    %943 = vmatprep.subr.mxu0 %v256
    %944 = vmatpush1.msra.mxu0 %v255
    %945 = vmatprep.subr.mxu0 %v262
    %946 = vmatpush1.msra.mxu0 %v261
    %947 = vmatprep.subr.mxu0 %v268
    %948 = vmatpush1.msra.mxu0 %v267
    %949 = vmatprep.subr.mxu0 %v274
    %950 = vmatpush1.msra.mxu0 %v273
    %951 = vmatprep.mubr.f32.mxu0 %v72
    %952 = vmatmul.mubr.f32.gmra.mrb[0].mxu0 %v71
    %v953 = vpop.f32.mrb[0].mxu0
    %v954 = vadd.f32 %v860, %v953
    %v955 = vpop.f32.mrb[0].mxu0
    %v956 = vadd.f32 %v864, %v955
    %957 = vmatprep.mubr.f32.mxu0 %v80
    %958 = vmatmul.mubr.f32.gmra.mrb[0].mxu0 %v79
    %v959 = vpop.f32.mrb[0].mxu0
    %v960 = vadd.f32 %v860, %v959
    %v961 = vpop.f32.mrb[0].mxu0
    %v962 = vadd.f32 %v864, %v961
    %963 = vdwg.mxu0
    %964 = vmatprep.subr.mxu0 %v280
    %965 = vmatpush1.msra.mxu0 %v279
    %966 = vmatprep.subr.mxu0 %v286
    %967 = vmatpush1.msra.mxu0 %v285
    %968 = vmatprep.subr.mxu0 %v292
    %969 = vmatpush1.msra.mxu0 %v291
    %970 = vmatprep.subr.mxu0 %v298
    %971 = vmatpush1.msra.mxu0 %v297
    %972 = vmatprep.subr.mxu0 %v304
    %973 = vmatpush1.msra.mxu0 %v303
    %974 = vmatprep.subr.mxu0 %v310
    %975 = vmatpush1.msra.mxu0 %v309
    %976 = vmatprep.subr.mxu0 %v316
    %977 = vmatpush1.msra.mxu0 %v315
    %978 = vmatprep.subr.mxu0 %v322
    %979 = vmatpush1.msra.mxu0 %v321
    %980 = vmatprep.subr.mxu0 %v328
    %981 = vmatpush1.msra.mxu0 %v327
    %982 = vmatprep.subr.mxu0 %v334
    %983 = vmatpush1.msra.mxu0 %v333
    %984 = vmatprep.subr.mxu0 %v340
    %985 = vmatpush1.msra.mxu0 %v339
    %986 = vmatprep.subr.mxu0 %v346
    %987 = vmatpush1.msra.mxu0 %v345
    %988 = vmatprep.subr.mxu0 %v352
    %989 = vmatpush1.msra.mxu0 %v351
    %990 = vmatprep.subr.mxu0 %v358
    %991 = vmatpush1.msra.mxu0 %v357
    %992 = vmatprep.subr.mxu0 %v364
    %993 = vmatpush1.msra.mxu0 %v363
    %994 = vmatprep.subr.mxu0 %v370
    %995 = vmatpush1.msra.mxu0 %v369
    %996 = vmatprep.subr.mxu0 %v376
    %997 = vmatpush1.msra.mxu0 %v375
    %998 = vmatprep.subr.mxu0 %v382
    %999 = vmatpush1.msra.mxu0 %v381
    %1000 = vmatprep.subr.mxu0 %v388
    %1001 = vmatpush1.msra.mxu0 %v387
    %1002 = vmatprep.subr.mxu0 %v394
    %1003 = vmatpush1.msra.mxu0 %v393
    %1004 = vmatprep.subr.mxu0 %v400
    %1005 = vmatpush1.msra.mxu0 %v399
    %1006 = vmatprep.subr.mxu0 %v406
    %1007 = vmatpush1.msra.mxu0 %v405
    %1008 = vmatprep.subr.mxu0 %v412
    %1009 = vmatpush1.msra.mxu0 %v411
    %1010 = vmatprep.subr.mxu0 %v418
    %1011 = vmatpush1.msra.mxu0 %v417
    %1012 = vmatprep.subr.mxu0 %v424
    %1013 = vmatpush1.msra.mxu0 %v423
    %1014 = vmatprep.subr.mxu0 %v430
    %1015 = vmatpush1.msra.mxu0 %v429
    %1016 = vmatprep.subr.mxu0 %v436
    %1017 = vmatpush1.msra.mxu0 %v435
    %1018 = vmatprep.subr.mxu0 %v442
    %1019 = vmatpush1.msra.mxu0 %v441
    %1020 = vmatprep.subr.mxu0 %v448
    %1021 = vmatpush1.msra.mxu0 %v447
    %1022 = vmatprep.subr.mxu0 %v454
    %1023 = vmatpush1.msra.mxu0 %v453
    %1024 = vmatprep.subr.mxu0 %v460
    %1025 = vmatpush1.msra.mxu0 %v459
    %1026 = vmatprep.subr.mxu0 %v466
    %1027 = vmatpush1.msra.mxu0 %v465
    %1028 = vmatprep.mubr.f32.mxu0 %v74
    %1029 = vmatmul.mubr.f32.gmra.mrb[0].mxu0 %v73
    %v1030 = vpop.f32.mrb[0].mxu0
    %v1031 = vadd.f32 %v954, %v1030
    %v1032 = vpop.f32.mrb[0].mxu0
    %v1033 = vadd.f32 %v956, %v1032
    %1034 = vmatprep.mubr.f32.mxu0 %v82
    %1035 = vmatmul.mubr.f32.gmra.mrb[0].mxu0 %v81
    %v1036 = vpop.f32.mrb[0].mxu0
    %v1037 = vadd.f32 %v960, %v1036
    %v1038 = vpop.f32.mrb[0].mxu0
    %v1039 = vadd.f32 %v962, %v1038
    %1040 = vdwg.mxu0
    %1041 = vmatprep.subr.mxu0 %v472
    %1042 = vmatpush1.msra.mxu0 %v471
    %1043 = vmatprep.subr.mxu0 %v478
    %1044 = vmatpush1.msra.mxu0 %v477
    %1045 = vmatprep.subr.mxu0 %v484
    %1046 = vmatpush1.msra.mxu0 %v483
    %1047 = vmatprep.subr.mxu0 %v490
    %1048 = vmatpush1.msra.mxu0 %v489
    %1049 = vmatprep.subr.mxu0 %v496
    %1050 = vmatpush1.msra.mxu0 %v495
    %1051 = vmatprep.subr.mxu0 %v502
    %1052 = vmatpush1.msra.mxu0 %v501
    %1053 = vmatprep.subr.mxu0 %v508
    %1054 = vmatpush1.msra.mxu0 %v507
    %1055 = vmatprep.subr.mxu0 %v514
    %1056 = vmatpush1.msra.mxu0 %v513
    %1057 = vmatprep.subr.mxu0 %v520
    %1058 = vmatpush1.msra.mxu0 %v519
    %1059 = vmatprep.subr.mxu0 %v526
    %1060 = vmatpush1.msra.mxu0 %v525
    %1061 = vmatprep.subr.mxu0 %v532
    %1062 = vmatpush1.msra.mxu0 %v531
    %1063 = vmatprep.subr.mxu0 %v538
    %1064 = vmatpush1.msra.mxu0 %v537
    %1065 = vmatprep.subr.mxu0 %v544
    %1066 = vmatpush1.msra.mxu0 %v543
    %1067 = vmatprep.subr.mxu0 %v550
    %1068 = vmatpush1.msra.mxu0 %v549
    %1069 = vmatprep.subr.mxu0 %v556
    %1070 = vmatpush1.msra.mxu0 %v555
    %1071 = vmatprep.subr.mxu0 %v562
    %1072 = vmatpush1.msra.mxu0 %v561
    %1073 = vmatprep.subr.mxu0 %v568
    %1074 = vmatpush1.msra.mxu0 %v567
    %1075 = vmatprep.subr.mxu0 %v574
    %1076 = vmatpush1.msra.mxu0 %v573
    %1077 = vmatprep.subr.mxu0 %v580
    %1078 = vmatpush1.msra.mxu0 %v579
    %1079 = vmatprep.subr.mxu0 %v586
    %1080 = vmatpush1.msra.mxu0 %v585
    %1081 = vmatprep.subr.mxu0 %v592
    %1082 = vmatpush1.msra.mxu0 %v591
    %1083 = vmatprep.subr.mxu0 %v598
    %1084 = vmatpush1.msra.mxu0 %v597
    %1085 = vmatprep.subr.mxu0 %v604
    %1086 = vmatpush1.msra.mxu0 %v603
    %1087 = vmatprep.subr.mxu0 %v610
    %1088 = vmatpush1.msra.mxu0 %v609
    %1089 = vmatprep.subr.mxu0 %v616
    %1090 = vmatpush1.msra.mxu0 %v615
    %1091 = vmatprep.subr.mxu0 %v622
    %1092 = vmatpush1.msra.mxu0 %v621
    %1093 = vmatprep.subr.mxu0 %v628
    %1094 = vmatpush1.msra.mxu0 %v627
    %1095 = vmatprep.subr.mxu0 %v634
    %1096 = vmatpush1.msra.mxu0 %v633
    %1097 = vmatprep.subr.mxu0 %v640
    %1098 = vmatpush1.msra.mxu0 %v639
    %1099 = vmatprep.subr.mxu0 %v646
    %1100 = vmatpush1.msra.mxu0 %v645
    %1101 = vmatprep.subr.mxu0 %v652
    %1102 = vmatpush1.msra.mxu0 %v651
    %1103 = vmatprep.subr.mxu0 %v658
    %1104 = vmatpush1.msra.mxu0 %v657
    %1105 = vmatprep.mubr.f32.mxu0 %v76
    %1106 = vmatmul.mubr.f32.gmra.mrb[0].mxu0 %v75
    %v1107 = vpop.f32.mrb[0].mxu0
    %v1108 = vadd.f32 %v1031, %v1107
    %v1109 = vpop.f32.mrb[0].mxu0
    %v1110 = vadd.f32 %v1033, %v1109
    %1111 = vmatprep.mubr.f32.mxu0 %v84
    %1112 = vmatmul.mubr.f32.gmra.mrb[0].mxu0 %v83
    %v1113 = vpop.f32.mrb[0].mxu0
    %v1114 = vadd.f32 %v1037, %v1113
    %v1115 = vpop.f32.mrb[0].mxu0
    %v1116 = vadd.f32 %v1039, %v1115
    %1117 = vdwg.mxu0
    %1118 = vmatprep.subr.mxu0 %v664
    %1119 = vmatpush1.msra.mxu0 %v663
    %1120 = vmatprep.subr.mxu0 %v670
    %1121 = vmatpush1.msra.mxu0 %v669
    %1122 = vmatprep.subr.mxu0 %v676
    %1123 = vmatpush1.msra.mxu0 %v675
    %1124 = vmatprep.subr.mxu0 %v682
    %1125 = vmatpush1.msra.mxu0 %v681
    %1126 = vmatprep.subr.mxu0 %v688
    %1127 = vmatpush1.msra.mxu0 %v687
    %1128 = vmatprep.subr.mxu0 %v694
    %1129 = vmatpush1.msra.mxu0 %v693
    %1130 = vmatprep.subr.mxu0 %v700
    %1131 = vmatpush1.msra.mxu0 %v699
    %1132 = vmatprep.subr.mxu0 %v706
    %1133 = vmatpush1.msra.mxu0 %v705
    %1134 = vmatprep.subr.mxu0 %v712
    %1135 = vmatpush1.msra.mxu0 %v711
    %1136 = vmatprep.subr.mxu0 %v718
    %1137 = vmatpush1.msra.mxu0 %v717
    %1138 = vmatprep.subr.mxu0 %v724
    %1139 = vmatpush1.msra.mxu0 %v723
    %1140 = vmatprep.subr.mxu0 %v730
    %1141 = vmatpush1.msra.mxu0 %v729
    %1142 = vmatprep.subr.mxu0 %v736
    %1143 = vmatpush1.msra.mxu0 %v735
    %1144 = vmatprep.subr.mxu0 %v742
    %1145 = vmatpush1.msra.mxu0 %v741
    %1146 = vmatprep.subr.mxu0 %v748
    %1147 = vmatpush1.msra.mxu0 %v747
    %1148 = vmatprep.subr.mxu0 %v754
    %1149 = vmatpush1.msra.mxu0 %v753
    %1150 = vmatprep.subr.mxu0 %v760
    %1151 = vmatpush1.msra.mxu0 %v759
    %1152 = vmatprep.subr.mxu0 %v766
    %1153 = vmatpush1.msra.mxu0 %v765
    %1154 = vmatprep.subr.mxu0 %v772
    %1155 = vmatpush1.msra.mxu0 %v771
    %1156 = vmatprep.subr.mxu0 %v778
    %1157 = vmatpush1.msra.mxu0 %v777
    %1158 = vmatprep.subr.mxu0 %v784
    %1159 = vmatpush1.msra.mxu0 %v783
    %1160 = vmatprep.subr.mxu0 %v790
    %1161 = vmatpush1.msra.mxu0 %v789
    %1162 = vmatprep.subr.mxu0 %v796
    %1163 = vmatpush1.msra.mxu0 %v795
    %1164 = vmatprep.subr.mxu0 %v802
    %1165 = vmatpush1.msra.mxu0 %v801
    %1166 = vmatprep.subr.mxu0 %v808
    %1167 = vmatpush1.msra.mxu0 %v807
    %1168 = vmatprep.subr.mxu0 %v814
    %1169 = vmatpush1.msra.mxu0 %v813
    %1170 = vmatprep.subr.mxu0 %v820
    %1171 = vmatpush1.msra.mxu0 %v819
    %1172 = vmatprep.subr.mxu0 %v826
    %1173 = vmatpush1.msra.mxu0 %v825
    %1174 = vmatprep.subr.mxu0 %v832
    %1175 = vmatpush1.msra.mxu0 %v831
    %1176 = vmatprep.subr.mxu0 %v838
    %1177 = vmatpush1.msra.mxu0 %v837
    %1178 = vmatprep.subr.mxu0 %v844
    %1179 = vmatpush1.msra.mxu0 %v843
    %1180 = vmatprep.subr.mxu0 %v850
    %1181 = vmatpush1.msra.mxu0 %v849
    %1182 = vmatprep.mubr.f32.mxu0 %v78
    %1183 = vmatmul.mubr.f32.gmra.mrb[0].mxu0 %v77
    %v1184 = vpop.f32.mrb[0].mxu0
    %v1185 = vadd.f32 %v1108, %v1184
    %v1186 = vpop.f32.mrb[0].mxu0
    %v1187 = vadd.f32 %v1110, %v1186
    %1188 = vmatprep.mubr.f32.mxu0 %v86
    %1189 = vmatmul.mubr.f32.gmra.mrb[0].mxu0 %v85
    %v1190 = vpop.f32.mrb[0].mxu0
    %v1191 = vadd.f32 %v1114, %v1190
    %v1192 = vpop.f32.mrb[0].mxu0
    %v1193 = vadd.f32 %v1116, %v1192
    %1194 = vdwg.mxu0
    %1195 = vmatprep.subr.mxu0 %v90
    %1196 = vmatpush1.msra.mxu0 %v89
    %1197 = vmatprep.subr.mxu0 %v96
    %1198 = vmatpush1.msra.mxu0 %v95
    %1199 = vmatprep.subr.mxu0 %v102
    %1200 = vmatpush1.msra.mxu0 %v101
    %1201 = vmatprep.subr.mxu0 %v108
    %1202 = vmatpush1.msra.mxu0 %v107
    %1203 = vmatprep.subr.mxu0 %v114
    %1204 = vmatpush1.msra.mxu0 %v113
    %1205 = vmatprep.subr.mxu0 %v120
    %1206 = vmatpush1.msra.mxu0 %v119
    %1207 = vmatprep.subr.mxu0 %v126
    %1208 = vmatpush1.msra.mxu0 %v125
    %1209 = vmatprep.subr.mxu0 %v132
    %1210 = vmatpush1.msra.mxu0 %v131
    %1211 = vmatprep.subr.mxu0 %v138
    %1212 = vmatpush1.msra.mxu0 %v137
    %1213 = vmatprep.subr.mxu0 %v144
    %1214 = vmatpush1.msra.mxu0 %v143
    %1215 = vmatprep.subr.mxu0 %v150
    %1216 = vmatpush1.msra.mxu0 %v149
    %1217 = vmatprep.subr.mxu0 %v156
    %1218 = vmatpush1.msra.mxu0 %v155
    %1219 = vmatprep.subr.mxu0 %v162
    %1220 = vmatpush1.msra.mxu0 %v161
    %1221 = vmatprep.subr.mxu0 %v168
    %1222 = vmatpush1.msra.mxu0 %v167
    %1223 = vmatprep.subr.mxu0 %v174
    %1224 = vmatpush1.msra.mxu0 %v173
    %1225 = vmatprep.subr.mxu0 %v180
    %1226 = vmatpush1.msra.mxu0 %v179
    %1227 = vmatprep.subr.mxu0 %v186
    %1228 = vmatpush1.msra.mxu0 %v185
    %1229 = vmatprep.subr.mxu0 %v192
    %1230 = vmatpush1.msra.mxu0 %v191
    %1231 = vmatprep.subr.mxu0 %v198
    %1232 = vmatpush1.msra.mxu0 %v197
    %1233 = vmatprep.subr.mxu0 %v204
    %1234 = vmatpush1.msra.mxu0 %v203
    %1235 = vmatprep.subr.mxu0 %v210
    %1236 = vmatpush1.msra.mxu0 %v209
    %1237 = vmatprep.subr.mxu0 %v216
    %1238 = vmatpush1.msra.mxu0 %v215
    %1239 = vmatprep.subr.mxu0 %v222
    %1240 = vmatpush1.msra.mxu0 %v221
    %1241 = vmatprep.subr.mxu0 %v228
    %1242 = vmatpush1.msra.mxu0 %v227
    %1243 = vmatprep.subr.mxu0 %v234
    %1244 = vmatpush1.msra.mxu0 %v233
    %1245 = vmatprep.subr.mxu0 %v240
    %1246 = vmatpush1.msra.mxu0 %v239
    %1247 = vmatprep.subr.mxu0 %v246
    %1248 = vmatpush1.msra.mxu0 %v245
    %1249 = vmatprep.subr.mxu0 %v252
    %1250 = vmatpush1.msra.mxu0 %v251
    %1251 = vmatprep.subr.mxu0 %v258
    %1252 = vmatpush1.msra.mxu0 %v257
    %1253 = vmatprep.subr.mxu0 %v264
    %1254 = vmatpush1.msra.mxu0 %v263
    %1255 = vmatprep.subr.mxu0 %v270
    %1256 = vmatpush1.msra.mxu0 %v269
    %1257 = vmatprep.subr.mxu0 %v276
    %1258 = vmatpush1.msra.mxu0 %v275
    %1259 = vmatprep.mubr.f32.mxu0 %v72
    %1260 = vmatmul.mubr.f32.gmra.mrb[0].mxu0 %v71
    %v1261 = vpop.f32.mrb[0].mxu0
    %v1262 = vadd.f32 %v868, %v1261
    %v1263 = vpop.f32.mrb[0].mxu0
    %v1264 = vadd.f32 %v872, %v1263
    %1265 = vmatprep.mubr.f32.mxu0 %v80
    %1266 = vmatmul.mubr.f32.gmra.mrb[0].mxu0 %v79
    %v1267 = vpop.f32.mrb[0].mxu0
    %v1268 = vadd.f32 %v868, %v1267
    %v1269 = vpop.f32.mrb[0].mxu0
    %v1270 = vadd.f32 %v872, %v1269
    %1271 = vdwg.mxu0
    %1272 = vmatprep.subr.mxu0 %v282
    %1273 = vmatpush1.msra.mxu0 %v281
    %1274 = vmatprep.subr.mxu0 %v288
    %1275 = vmatpush1.msra.mxu0 %v287
    %1276 = vmatprep.subr.mxu0 %v294
    %1277 = vmatpush1.msra.mxu0 %v293
    %1278 = vmatprep.subr.mxu0 %v300
    %1279 = vmatpush1.msra.mxu0 %v299
    %1280 = vmatprep.subr.mxu0 %v306
    %1281 = vmatpush1.msra.mxu0 %v305
    %1282 = vmatprep.subr.mxu0 %v312
    %1283 = vmatpush1.msra.mxu0 %v311
    %1284 = vmatprep.subr.mxu0 %v318
    %1285 = vmatpush1.msra.mxu0 %v317
    %1286 = vmatprep.subr.mxu0 %v324
    %1287 = vmatpush1.msra.mxu0 %v323
    %1288 = vmatprep.subr.mxu0 %v330
    %1289 = vmatpush1.msra.mxu0 %v329
    %1290 = vmatprep.subr.mxu0 %v336
    %1291 = vmatpush1.msra.mxu0 %v335
    %1292 = vmatprep.subr.mxu0 %v342
    %1293 = vmatpush1.msra.mxu0 %v341
    %1294 = vmatprep.subr.mxu0 %v348
    %1295 = vmatpush1.msra.mxu0 %v347
    %1296 = vmatprep.subr.mxu0 %v354
    %1297 = vmatpush1.msra.mxu0 %v353
    %1298 = vmatprep.subr.mxu0 %v360
    %1299 = vmatpush1.msra.mxu0 %v359
    %1300 = vmatprep.subr.mxu0 %v366
    %1301 = vmatpush1.msra.mxu0 %v365
    %1302 = vmatprep.subr.mxu0 %v372
    %1303 = vmatpush1.msra.mxu0 %v371
    %1304 = vmatprep.subr.mxu0 %v378
    %1305 = vmatpush1.msra.mxu0 %v377
    %1306 = vmatprep.subr.mxu0 %v384
    %1307 = vmatpush1.msra.mxu0 %v383
    %1308 = vmatprep.subr.mxu0 %v390
    %1309 = vmatpush1.msra.mxu0 %v389
    %1310 = vmatprep.subr.mxu0 %v396
    %1311 = vmatpush1.msra.mxu0 %v395
    %1312 = vmatprep.subr.mxu0 %v402
    %1313 = vmatpush1.msra.mxu0 %v401
    %1314 = vmatprep.subr.mxu0 %v408
    %1315 = vmatpush1.msra.mxu0 %v407
    %1316 = vmatprep.subr.mxu0 %v414
    %1317 = vmatpush1.msra.mxu0 %v413
    %1318 = vmatprep.subr.mxu0 %v420
    %1319 = vmatpush1.msra.mxu0 %v419
    %1320 = vmatprep.subr.mxu0 %v426
    %1321 = vmatpush1.msra.mxu0 %v425
    %1322 = vmatprep.subr.mxu0 %v432
    %1323 = vmatpush1.msra.mxu0 %v431
    %1324 = vmatprep.subr.mxu0 %v438
    %1325 = vmatpush1.msra.mxu0 %v437
    %1326 = vmatprep.subr.mxu0 %v444
    %1327 = vmatpush1.msra.mxu0 %v443
    %1328 = vmatprep.subr.mxu0 %v450
    %1329 = vmatpush1.msra.mxu0 %v449
    %1330 = vmatprep.subr.mxu0 %v456
    %1331 = vmatpush1.msra.mxu0 %v455
    %1332 = vmatprep.subr.mxu0 %v462
    %1333 = vmatpush1.msra.mxu0 %v461
    %1334 = vmatprep.subr.mxu0 %v468
    %1335 = vmatpush1.msra.mxu0 %v467
    %1336 = vmatprep.mubr.f32.mxu0 %v74
    %1337 = vmatmul.mubr.f32.gmra.mrb[0].mxu0 %v73
    %v1338 = vpop.f32.mrb[0].mxu0
    %v1339 = vadd.f32 %v1262, %v1338
    %v1340 = vpop.f32.mrb[0].mxu0
    %v1341 = vadd.f32 %v1264, %v1340
    %1342 = vmatprep.mubr.f32.mxu0 %v82
    %1343 = vmatmul.mubr.f32.gmra.mrb[0].mxu0 %v81
    %v1344 = vpop.f32.mrb[0].mxu0
    %v1345 = vadd.f32 %v1268, %v1344
    %v1346 = vpop.f32.mrb[0].mxu0
    %v1347 = vadd.f32 %v1270, %v1346
    %1348 = vdwg.mxu0
    %1349 = vmatprep.subr.mxu0 %v474
    %1350 = vmatpush1.msra.mxu0 %v473
    %1351 = vmatprep.subr.mxu0 %v480
    %1352 = vmatpush1.msra.mxu0 %v479
    %1353 = vmatprep.subr.mxu0 %v486
    %1354 = vmatpush1.msra.mxu0 %v485
    %1355 = vmatprep.subr.mxu0 %v492
    %1356 = vmatpush1.msra.mxu0 %v491
    %1357 = vmatprep.subr.mxu0 %v498
    %1358 = vmatpush1.msra.mxu0 %v497
    %1359 = vmatprep.subr.mxu0 %v504
    %1360 = vmatpush1.msra.mxu0 %v503
    %1361 = vmatprep.subr.mxu0 %v510
    %1362 = vmatpush1.msra.mxu0 %v509
    %1363 = vmatprep.subr.mxu0 %v516
    %1364 = vmatpush1.msra.mxu0 %v515
    %1365 = vmatprep.subr.mxu0 %v522
    %1366 = vmatpush1.msra.mxu0 %v521
    %1367 = vmatprep.subr.mxu0 %v528
    %1368 = vmatpush1.msra.mxu0 %v527
    %1369 = vmatprep.subr.mxu0 %v534
    %1370 = vmatpush1.msra.mxu0 %v533
    %1371 = vmatprep.subr.mxu0 %v540
    %1372 = vmatpush1.msra.mxu0 %v539
    %1373 = vmatprep.subr.mxu0 %v546
    %1374 = vmatpush1.msra.mxu0 %v545
    %1375 = vmatprep.subr.mxu0 %v552
    %1376 = vmatpush1.msra.mxu0 %v551
    %1377 = vmatprep.subr.mxu0 %v558
    %1378 = vmatpush1.msra.mxu0 %v557
    %1379 = vmatprep.subr.mxu0 %v564
    %1380 = vmatpush1.msra.mxu0 %v563
    %1381 = vmatprep.subr.mxu0 %v570
    %1382 = vmatpush1.msra.mxu0 %v569
    %1383 = vmatprep.subr.mxu0 %v576
    %1384 = vmatpush1.msra.mxu0 %v575
    %1385 = vmatprep.subr.mxu0 %v582
    %1386 = vmatpush1.msra.mxu0 %v581
    %1387 = vmatprep.subr.mxu0 %v588
    %1388 = vmatpush1.msra.mxu0 %v587
    %1389 = vmatprep.subr.mxu0 %v594
    %1390 = vmatpush1.msra.mxu0 %v593
    %1391 = vmatprep.subr.mxu0 %v600
    %1392 = vmatpush1.msra.mxu0 %v599
    %1393 = vmatprep.subr.mxu0 %v606
    %1394 = vmatpush1.msra.mxu0 %v605
    %1395 = vmatprep.subr.mxu0 %v612
    %1396 = vmatpush1.msra.mxu0 %v611
    %1397 = vmatprep.subr.mxu0 %v618
    %1398 = vmatpush1.msra.mxu0 %v617
    %1399 = vmatprep.subr.mxu0 %v624
    %1400 = vmatpush1.msra.mxu0 %v623
    %1401 = vmatprep.subr.mxu0 %v630
    %1402 = vmatpush1.msra.mxu0 %v629
    %1403 = vmatprep.subr.mxu0 %v636
    %1404 = vmatpush1.msra.mxu0 %v635
    %1405 = vmatprep.subr.mxu0 %v642
    %1406 = vmatpush1.msra.mxu0 %v641
    %1407 = vmatprep.subr.mxu0 %v648
    %1408 = vmatpush1.msra.mxu0 %v647
    %1409 = vmatprep.subr.mxu0 %v654
    %1410 = vmatpush1.msra.mxu0 %v653
    %1411 = vmatprep.subr.mxu0 %v660
    %1412 = vmatpush1.msra.mxu0 %v659
    %1413 = vmatprep.mubr.f32.mxu0 %v76
    %1414 = vmatmul.mubr.f32.gmra.mrb[0].mxu0 %v75
    %v1415 = vpop.f32.mrb[0].mxu0
    %v1416 = vadd.f32 %v1339, %v1415
    %v1417 = vpop.f32.mrb[0].mxu0
    %v1418 = vadd.f32 %v1341, %v1417
    %1419 = vmatprep.mubr.f32.mxu0 %v84
    %1420 = vmatmul.mubr.f32.gmra.mrb[0].mxu0 %v83
    %v1421 = vpop.f32.mrb[0].mxu0
    %v1422 = vadd.f32 %v1345, %v1421
    %v1423 = vpop.f32.mrb[0].mxu0
    %v1424 = vadd.f32 %v1347, %v1423
    %1425 = vdwg.mxu0
    %1426 = vmatprep.subr.mxu0 %v666
    %1427 = vmatpush1.msra.mxu0 %v665
    %1428 = vmatprep.subr.mxu0 %v672
    %1429 = vmatpush1.msra.mxu0 %v671
    %1430 = vmatprep.subr.mxu0 %v678
    %1431 = vmatpush1.msra.mxu0 %v677
    %1432 = vmatprep.subr.mxu0 %v684
    %1433 = vmatpush1.msra.mxu0 %v683
    %1434 = vmatprep.subr.mxu0 %v690
    %1435 = vmatpush1.msra.mxu0 %v689
    %1436 = vmatprep.subr.mxu0 %v696
    %1437 = vmatpush1.msra.mxu0 %v695
    %1438 = vmatprep.subr.mxu0 %v702
    %1439 = vmatpush1.msra.mxu0 %v701
    %1440 = vmatprep.subr.mxu0 %v708
    %1441 = vmatpush1.msra.mxu0 %v707
    %1442 = vmatprep.subr.mxu0 %v714
    %1443 = vmatpush1.msra.mxu0 %v713
    %1444 = vmatprep.subr.mxu0 %v720
    %1445 = vmatpush1.msra.mxu0 %v719
    %1446 = vmatprep.subr.mxu0 %v726
    %1447 = vmatpush1.msra.mxu0 %v725
    %1448 = vmatprep.subr.mxu0 %v732
    %1449 = vmatpush1.msra.mxu0 %v731
    %1450 = vmatprep.subr.mxu0 %v738
    %1451 = vmatpush1.msra.mxu0 %v737
    %1452 = vmatprep.subr.mxu0 %v744
    %1453 = vmatpush1.msra.mxu0 %v743
    %1454 = vmatprep.subr.mxu0 %v750
    %1455 = vmatpush1.msra.mxu0 %v749
    %1456 = vmatprep.subr.mxu0 %v756
    %1457 = vmatpush1.msra.mxu0 %v755
    %1458 = vmatprep.subr.mxu0 %v762
    %1459 = vmatpush1.msra.mxu0 %v761
    %1460 = vmatprep.subr.mxu0 %v768
    %1461 = vmatpush1.msra.mxu0 %v767
    %1462 = vmatprep.subr.mxu0 %v774
    %1463 = vmatpush1.msra.mxu0 %v773
    %1464 = vmatprep.subr.mxu0 %v780
    %1465 = vmatpush1.msra.mxu0 %v779
    %1466 = vmatprep.subr.mxu0 %v786
    %1467 = vmatpush1.msra.mxu0 %v785
    %1468 = vmatprep.subr.mxu0 %v792
    %1469 = vmatpush1.msra.mxu0 %v791
    %1470 = vmatprep.subr.mxu0 %v798
    %1471 = vmatpush1.msra.mxu0 %v797
    %1472 = vmatprep.subr.mxu0 %v804
    %1473 = vmatpush1.msra.mxu0 %v803
    %1474 = vmatprep.subr.mxu0 %v810
    %1475 = vmatpush1.msra.mxu0 %v809
    %1476 = vmatprep.subr.mxu0 %v816
    %1477 = vmatpush1.msra.mxu0 %v815
    %1478 = vmatprep.subr.mxu0 %v822
    %1479 = vmatpush1.msra.mxu0 %v821
    %1480 = vmatprep.subr.mxu0 %v828
    %1481 = vmatpush1.msra.mxu0 %v827
    %1482 = vmatprep.subr.mxu0 %v834
    %1483 = vmatpush1.msra.mxu0 %v833
    %1484 = vmatprep.subr.mxu0 %v840
    %1485 = vmatpush1.msra.mxu0 %v839
    %1486 = vmatprep.subr.mxu0 %v846
    %1487 = vmatpush1.msra.mxu0 %v845
    %1488 = vmatprep.subr.mxu0 %v852
    %1489 = vmatpush1.msra.mxu0 %v851
    %1490 = vmatprep.mubr.f32.mxu0 %v78
    %1491 = vmatmul.mubr.f32.gmra.mrb[0].mxu0 %v77
    %v1492 = vpop.f32.mrb[0].mxu0
    %v1493 = vadd.f32 %v1416, %v1492
    %v1494 = vpop.f32.mrb[0].mxu0
    %v1495 = vadd.f32 %v1418, %v1494
    %1496 = vmatprep.mubr.f32.mxu0 %v86
    %1497 = vmatmul.mubr.f32.gmra.mrb[0].mxu0 %v85
    %v1498 = vpop.f32.mrb[0].mxu0
    %v1499 = vadd.f32 %v1422, %v1498
    %v1500 = vpop.f32.mrb[0].mxu0
    %v1501 = vadd.f32 %v1424, %v1500
    %1502 = vdwg.mxu0
    %1503 = vmatprep.subr.mxu0 %v92
    %1504 = vmatpush1.msra.mxu0 %v91
    %1505 = vmatprep.subr.mxu0 %v98
    %1506 = vmatpush1.msra.mxu0 %v97
    %1507 = vmatprep.subr.mxu0 %v104
    %1508 = vmatpush1.msra.mxu0 %v103
    %1509 = vmatprep.subr.mxu0 %v110
    %1510 = vmatpush1.msra.mxu0 %v109
    %1511 = vmatprep.subr.mxu0 %v116
    %1512 = vmatpush1.msra.mxu0 %v115
    %1513 = vmatprep.subr.mxu0 %v122
    %1514 = vmatpush1.msra.mxu0 %v121
    %1515 = vmatprep.subr.mxu0 %v128
    %1516 = vmatpush1.msra.mxu0 %v127
    %1517 = vmatprep.subr.mxu0 %v134
    %1518 = vmatpush1.msra.mxu0 %v133
    %1519 = vmatprep.subr.mxu0 %v140
    %1520 = vmatpush1.msra.mxu0 %v139
    %1521 = vmatprep.subr.mxu0 %v146
    %1522 = vmatpush1.msra.mxu0 %v145
    %1523 = vmatprep.subr.mxu0 %v152
    %1524 = vmatpush1.msra.mxu0 %v151
    %1525 = vmatprep.subr.mxu0 %v158
    %1526 = vmatpush1.msra.mxu0 %v157
    %1527 = vmatprep.subr.mxu0 %v164
    %1528 = vmatpush1.msra.mxu0 %v163
    %1529 = vmatprep.subr.mxu0 %v170
    %1530 = vmatpush1.msra.mxu0 %v169
    %1531 = vmatprep.subr.mxu0 %v176
    %1532 = vmatpush1.msra.mxu0 %v175
    %1533 = vmatprep.subr.mxu0 %v182
    %1534 = vmatpush1.msra.mxu0 %v181
    %1535 = vmatprep.subr.mxu0 %v188
    %1536 = vmatpush1.msra.mxu0 %v187
    %1537 = vmatprep.subr.mxu0 %v194
    %1538 = vmatpush1.msra.mxu0 %v193
    %1539 = vmatprep.subr.mxu0 %v200
    %1540 = vmatpush1.msra.mxu0 %v199
    %1541 = vmatprep.subr.mxu0 %v206
    %1542 = vmatpush1.msra.mxu0 %v205
    %1543 = vmatprep.subr.mxu0 %v212
    %1544 = vmatpush1.msra.mxu0 %v211
    %1545 = vmatprep.subr.mxu0 %v218
    %1546 = vmatpush1.msra.mxu0 %v217
    %1547 = vmatprep.subr.mxu0 %v224
    %1548 = vmatpush1.msra.mxu0 %v223
    %1549 = vmatprep.subr.mxu0 %v230
    %1550 = vmatpush1.msra.mxu0 %v229
    %1551 = vmatprep.subr.mxu0 %v236
    %1552 = vmatpush1.msra.mxu0 %v235
    %1553 = vmatprep.subr.mxu0 %v242
    %1554 = vmatpush1.msra.mxu0 %v241
    %1555 = vmatprep.subr.mxu0 %v248
    %1556 = vmatpush1.msra.mxu0 %v247
    %1557 = vmatprep.subr.mxu0 %v254
    %1558 = vmatpush1.msra.mxu0 %v253
    %1559 = vmatprep.subr.mxu0 %v260
    %1560 = vmatpush1.msra.mxu0 %v259
    %1561 = vmatprep.subr.mxu0 %v266
    %1562 = vmatpush1.msra.mxu0 %v265
    %1563 = vmatprep.subr.mxu0 %v272
    %1564 = vmatpush1.msra.mxu0 %v271
    %1565 = vmatprep.subr.mxu0 %v278
    %1566 = vmatpush1.msra.mxu0 %v277
    %1567 = vmatprep.mubr.f32.mxu0 %v72
    %1568 = vmatmul.mubr.f32.gmra.mrb[0].mxu0 %v71
    %v1569 = vpop.f32.mrb[0].mxu0
    %v1570 = vadd.f32 %v876, %v1569
    %v1571 = vpop.f32.mrb[0].mxu0
    %v1572 = vadd.f32 %v880, %v1571
    %1573 = vmatprep.mubr.f32.mxu0 %v80
    %1574 = vmatmul.mubr.f32.gmra.mrb[0].mxu0 %v79
    %v1575 = vpop.f32.mrb[0].mxu0
    %v1576 = vadd.f32 %v876, %v1575
    %v1577 = vpop.f32.mrb[0].mxu0
    %v1578 = vadd.f32 %v880, %v1577
    %1579 = vdwg.mxu0
    %1580 = vmatprep.subr.mxu0 %v284
    %1581 = vmatpush1.msra.mxu0 %v283
    %1582 = vmatprep.subr.mxu0 %v290
    %1583 = vmatpush1.msra.mxu0 %v289
    %1584 = vmatprep.subr.mxu0 %v296
    %1585 = vmatpush1.msra.mxu0 %v295
    %1586 = vmatprep.subr.mxu0 %v302
    %1587 = vmatpush1.msra.mxu0 %v301
    %1588 = vmatprep.subr.mxu0 %v308
    %1589 = vmatpush1.msra.mxu0 %v307
    %1590 = vmatprep.subr.mxu0 %v314
    %1591 = vmatpush1.msra.mxu0 %v313
    %1592 = vmatprep.subr.mxu0 %v320
    %1593 = vmatpush1.msra.mxu0 %v319
    %1594 = vmatprep.subr.mxu0 %v326
    %1595 = vmatpush1.msra.mxu0 %v325
    %1596 = vmatprep.subr.mxu0 %v332
    %1597 = vmatpush1.msra.mxu0 %v331
    %1598 = vmatprep.subr.mxu0 %v338
    %1599 = vmatpush1.msra.mxu0 %v337
    %1600 = vmatprep.subr.mxu0 %v344
    %1601 = vmatpush1.msra.mxu0 %v343
    %1602 = vmatprep.subr.mxu0 %v350
    %1603 = vmatpush1.msra.mxu0 %v349
    %1604 = vmatprep.subr.mxu0 %v356
    %1605 = vmatpush1.msra.mxu0 %v355
    %1606 = vmatprep.subr.mxu0 %v362
    %1607 = vmatpush1.msra.mxu0 %v361
    %1608 = vmatprep.subr.mxu0 %v368
    %1609 = vmatpush1.msra.mxu0 %v367
    %1610 = vmatprep.subr.mxu0 %v374
    %1611 = vmatpush1.msra.mxu0 %v373
    %1612 = vmatprep.subr.mxu0 %v380
    %1613 = vmatpush1.msra.mxu0 %v379
    %1614 = vmatprep.subr.mxu0 %v386
    %1615 = vmatpush1.msra.mxu0 %v385
    %1616 = vmatprep.subr.mxu0 %v392
    %1617 = vmatpush1.msra.mxu0 %v391
    %1618 = vmatprep.subr.mxu0 %v398
    %1619 = vmatpush1.msra.mxu0 %v397
    %1620 = vmatprep.subr.mxu0 %v404
    %1621 = vmatpush1.msra.mxu0 %v403
    %1622 = vmatprep.subr.mxu0 %v410
    %1623 = vmatpush1.msra.mxu0 %v409
    %1624 = vmatprep.subr.mxu0 %v416
    %1625 = vmatpush1.msra.mxu0 %v415
    %1626 = vmatprep.subr.mxu0 %v422
    %1627 = vmatpush1.msra.mxu0 %v421
    %1628 = vmatprep.subr.mxu0 %v428
    %1629 = vmatpush1.msra.mxu0 %v427
    %1630 = vmatprep.subr.mxu0 %v434
    %1631 = vmatpush1.msra.mxu0 %v433
    %1632 = vmatprep.subr.mxu0 %v440
    %1633 = vmatpush1.msra.mxu0 %v439
    %1634 = vmatprep.subr.mxu0 %v446
    %1635 = vmatpush1.msra.mxu0 %v445
    %1636 = vmatprep.subr.mxu0 %v452
    %1637 = vmatpush1.msra.mxu0 %v451
    %1638 = vmatprep.subr.mxu0 %v458
    %1639 = vmatpush1.msra.mxu0 %v457
    %1640 = vmatprep.subr.mxu0 %v464
    %1641 = vmatpush1.msra.mxu0 %v463
    %1642 = vmatprep.subr.mxu0 %v470
    %1643 = vmatpush1.msra.mxu0 %v469
    %1644 = vmatprep.mubr.f32.mxu0 %v74
    %1645 = vmatmul.mubr.f32.gmra.mrb[0].mxu0 %v73
    %v1646 = vpop.f32.mrb[0].mxu0
    %v1647 = vadd.f32 %v1570, %v1646
    %v1648 = vpop.f32.mrb[0].mxu0
    %v1649 = vadd.f32 %v1572, %v1648
    %1650 = vmatprep.mubr.f32.mxu0 %v82
    %1651 = vmatmul.mubr.f32.gmra.mrb[0].mxu0 %v81
    %v1652 = vpop.f32.mrb[0].mxu0
    %v1653 = vadd.f32 %v1576, %v1652
    %v1654 = vpop.f32.mrb[0].mxu0
    %v1655 = vadd.f32 %v1578, %v1654
    %1656 = vdwg.mxu0
    %1657 = vmatprep.subr.mxu0 %v476
    %1658 = vmatpush1.msra.mxu0 %v475
    %1659 = vmatprep.subr.mxu0 %v482
    %1660 = vmatpush1.msra.mxu0 %v481
    %1661 = vmatprep.subr.mxu0 %v488
    %1662 = vmatpush1.msra.mxu0 %v487
    %1663 = vmatprep.subr.mxu0 %v494
    %1664 = vmatpush1.msra.mxu0 %v493
    %1665 = vmatprep.subr.mxu0 %v500
    %1666 = vmatpush1.msra.mxu0 %v499
    %1667 = vmatprep.subr.mxu0 %v506
    %1668 = vmatpush1.msra.mxu0 %v505
    %1669 = vmatprep.subr.mxu0 %v512
    %1670 = vmatpush1.msra.mxu0 %v511
    %1671 = vmatprep.subr.mxu0 %v518
    %1672 = vmatpush1.msra.mxu0 %v517
    %1673 = vmatprep.subr.mxu0 %v524
    %1674 = vmatpush1.msra.mxu0 %v523
    %1675 = vmatprep.subr.mxu0 %v530
    %1676 = vmatpush1.msra.mxu0 %v529
    %1677 = vmatprep.subr.mxu0 %v536
    %1678 = vmatpush1.msra.mxu0 %v535
    %1679 = vmatprep.subr.mxu0 %v542
    %1680 = vmatpush1.msra.mxu0 %v541
    %1681 = vmatprep.subr.mxu0 %v548
    %1682 = vmatpush1.msra.mxu0 %v547
    %1683 = vmatprep.subr.mxu0 %v554
    %1684 = vmatpush1.msra.mxu0 %v553
    %1685 = vmatprep.subr.mxu0 %v560
    %1686 = vmatpush1.msra.mxu0 %v559
    %1687 = vmatprep.subr.mxu0 %v566
    %1688 = vmatpush1.msra.mxu0 %v565
    %1689 = vmatprep.subr.mxu0 %v572
    %1690 = vmatpush1.msra.mxu0 %v571
    %1691 = vmatprep.subr.mxu0 %v578
    %1692 = vmatpush1.msra.mxu0 %v577
    %1693 = vmatprep.subr.mxu0 %v584
    %1694 = vmatpush1.msra.mxu0 %v583
    %1695 = vmatprep.subr.mxu0 %v590
    %1696 = vmatpush1.msra.mxu0 %v589
    %1697 = vmatprep.subr.mxu0 %v596
    %1698 = vmatpush1.msra.mxu0 %v595
    %1699 = vmatprep.subr.mxu0 %v602
    %1700 = vmatpush1.msra.mxu0 %v601
    %1701 = vmatprep.subr.mxu0 %v608
    %1702 = vmatpush1.msra.mxu0 %v607
    %1703 = vmatprep.subr.mxu0 %v614
    %1704 = vmatpush1.msra.mxu0 %v613
    %1705 = vmatprep.subr.mxu0 %v620
    %1706 = vmatpush1.msra.mxu0 %v619
    %1707 = vmatprep.subr.mxu0 %v626
    %1708 = vmatpush1.msra.mxu0 %v625
    %1709 = vmatprep.subr.mxu0 %v632
    %1710 = vmatpush1.msra.mxu0 %v631
    %1711 = vmatprep.subr.mxu0 %v638
    %1712 = vmatpush1.msra.mxu0 %v637
    %1713 = vmatprep.subr.mxu0 %v644
    %1714 = vmatpush1.msra.mxu0 %v643
    %1715 = vmatprep.subr.mxu0 %v650
    %1716 = vmatpush1.msra.mxu0 %v649
    %1717 = vmatprep.subr.mxu0 %v656
    %1718 = vmatpush1.msra.mxu0 %v655
    %1719 = vmatprep.subr.mxu0 %v662
    %1720 = vmatpush1.msra.mxu0 %v661
    %1721 = vmatprep.mubr.f32.mxu0 %v76
    %1722 = vmatmul.mubr.f32.gmra.mrb[0].mxu0 %v75
    %v1723 = vpop.f32.mrb[0].mxu0
    %v1724 = vadd.f32 %v1647, %v1723
    %v1725 = vpop.f32.mrb[0].mxu0
    %v1726 = vadd.f32 %v1649, %v1725
    %1727 = vmatprep.mubr.f32.mxu0 %v84
    %1728 = vmatmul.mubr.f32.gmra.mrb[0].mxu0 %v83
    %v1729 = vpop.f32.mrb[0].mxu0
    %v1730 = vadd.f32 %v1653, %v1729
    %v1731 = vpop.f32.mrb[0].mxu0
    %v1732 = vadd.f32 %v1655, %v1731
    %1733 = vdwg.mxu0
    %1734 = vmatprep.subr.mxu0 %v668
    %1735 = vmatpush1.msra.mxu0 %v667
    %1736 = vmatprep.subr.mxu0 %v674
    %1737 = vmatpush1.msra.mxu0 %v673
    %1738 = vmatprep.subr.mxu0 %v680
    %1739 = vmatpush1.msra.mxu0 %v679
    %1740 = vmatprep.subr.mxu0 %v686
    %1741 = vmatpush1.msra.mxu0 %v685
    %1742 = vmatprep.subr.mxu0 %v692
    %1743 = vmatpush1.msra.mxu0 %v691
    %1744 = vmatprep.subr.mxu0 %v698
    %1745 = vmatpush1.msra.mxu0 %v697
    %1746 = vmatprep.subr.mxu0 %v704
    %1747 = vmatpush1.msra.mxu0 %v703
    %1748 = vmatprep.subr.mxu0 %v710
    %1749 = vmatpush1.msra.mxu0 %v709
    %1750 = vmatprep.subr.mxu0 %v716
    %1751 = vmatpush1.msra.mxu0 %v715
    %1752 = vmatprep.subr.mxu0 %v722
    %1753 = vmatpush1.msra.mxu0 %v721
    %1754 = vmatprep.subr.mxu0 %v728
    %1755 = vmatpush1.msra.mxu0 %v727
    %1756 = vmatprep.subr.mxu0 %v734
    %1757 = vmatpush1.msra.mxu0 %v733
    %1758 = vmatprep.subr.mxu0 %v740
    %1759 = vmatpush1.msra.mxu0 %v739
    %1760 = vmatprep.subr.mxu0 %v746
    %1761 = vmatpush1.msra.mxu0 %v745
    %1762 = vmatprep.subr.mxu0 %v752
    %1763 = vmatpush1.msra.mxu0 %v751
    %1764 = vmatprep.subr.mxu0 %v758
    %1765 = vmatpush1.msra.mxu0 %v757
    %1766 = vmatprep.subr.mxu0 %v764
    %1767 = vmatpush1.msra.mxu0 %v763
    %1768 = vmatprep.subr.mxu0 %v770
    %1769 = vmatpush1.msra.mxu0 %v769
    %1770 = vmatprep.subr.mxu0 %v776
    %1771 = vmatpush1.msra.mxu0 %v775
    %1772 = vmatprep.subr.mxu0 %v782
    %1773 = vmatpush1.msra.mxu0 %v781
    %1774 = vmatprep.subr.mxu0 %v788
    %1775 = vmatpush1.msra.mxu0 %v787
    %1776 = vmatprep.subr.mxu0 %v794
    %1777 = vmatpush1.msra.mxu0 %v793
    %1778 = vmatprep.subr.mxu0 %v800
    %1779 = vmatpush1.msra.mxu0 %v799
    %1780 = vmatprep.subr.mxu0 %v806
    %1781 = vmatpush1.msra.mxu0 %v805
    %1782 = vmatprep.subr.mxu0 %v812
    %1783 = vmatpush1.msra.mxu0 %v811
    %1784 = vmatprep.subr.mxu0 %v818
    %1785 = vmatpush1.msra.mxu0 %v817
    %1786 = vmatprep.subr.mxu0 %v824
    %1787 = vmatpush1.msra.mxu0 %v823
    %1788 = vmatprep.subr.mxu0 %v830
    %1789 = vmatpush1.msra.mxu0 %v829
    %1790 = vmatprep.subr.mxu0 %v836
    %1791 = vmatpush1.msra.mxu0 %v835
    %1792 = vmatprep.subr.mxu0 %v842
    %1793 = vmatpush1.msra.mxu0 %v841
    %1794 = vmatprep.subr.mxu0 %v848
    %1795 = vmatpush1.msra.mxu0 %v847
    %1796 = vmatprep.subr.mxu0 %v854
    %1797 = vmatpush1.msra.mxu0 %v853
    %1798 = vmatprep.mubr.f32.mxu0 %v78
    %1799 = vmatmul.mubr.f32.gmra.mrb[0].mxu0 %v77
    %v1800 = vpop.f32.mrb[0].mxu0
    %v1801 = vadd.f32 %v1724, %v1800
    %v1802 = vpop.f32.mrb[0].mxu0
    %v1803 = vadd.f32 %v1726, %v1802
    %1804 = vmatprep.mubr.f32.mxu0 %v86
    %1805 = vmatmul.mubr.f32.gmra.mrb[0].mxu0 %v85
    %v1806 = vpop.f32.mrb[0].mxu0
    %v1807 = vadd.f32 %v1730, %v1806
    %v1808 = vpop.f32.mrb[0].mxu0
    %v1809 = vadd.f32 %v1732, %v1808
    %1810 = vdwg.mxu0
    %v1811 = vld [vmem:[#allocation8] sm:$0xff]
    %v1812 = vld [vmem:[#allocation8 + $0x8] sm:$0xff]
    %v1813 = vld [vmem:[#allocation8 + $0x10] sm:$0xff]
    %v1814 = vld [vmem:[#allocation8 + $0x18] sm:$0xff]
    %v1815 = vld [vmem:[#allocation8 + $0x20] sm:$0xff]
    %v1816 = vld [vmem:[#allocation8 + $0x28] sm:$0xff]
    %v1817 = vld [vmem:[#allocation8 + $0x30] sm:$0xff]
    %v1818 = vld [vmem:[#allocation8 + $0x38] sm:$0xff]
    %v1819 = vld [vmem:[#allocation8 + $0x40] sm:$0xff]
    %v1820 = vld [vmem:[#allocation8 + $0x48] sm:$0xff]
    %v1821 = vld [vmem:[#allocation8 + $0x50] sm:$0xff]
    %v1822 = vld [vmem:[#allocation8 + $0x58] sm:$0xff]
    %v1823 = vld [vmem:[#allocation8 + $0x60] sm:$0xff]
    %v1824 = vld [vmem:[#allocation8 + $0x68] sm:$0xff]
    %v1825 = vld [vmem:[#allocation8 + $0x70] sm:$0xff]
    %v1826 = vld [vmem:[#allocation8 + $0x78] sm:$0xff]
    %v1827 = vld [vmem:[#allocation8 + $0x80] sm:$0xff]
    %v1828 = vld [vmem:[#allocation8 + $0x88] sm:$0xff]
    %v1829 = vld [vmem:[#allocation8 + $0x90] sm:$0xff]
    %v1830 = vld [vmem:[#allocation8 + $0x98] sm:$0xff]
    %v1831 = vld [vmem:[#allocation8 + $0xa0] sm:$0xff]
    %v1832 = vld [vmem:[#allocation8 + $0xa8] sm:$0xff]
    %v1833 = vld [vmem:[#allocation8 + $0xb0] sm:$0xff]
    %v1834 = vld [vmem:[#allocation8 + $0xb8] sm:$0xff]
    %v1835 = vld [vmem:[#allocation8 + $0xc0] sm:$0xff]
    %v1836 = vld [vmem:[#allocation8 + $0xc8] sm:$0xff]
    %v1837 = vld [vmem:[#allocation8 + $0xd0] sm:$0xff]
    %v1838 = vld [vmem:[#allocation8 + $0xd8] sm:$0xff]
    %v1839 = vld [vmem:[#allocation8 + $0xe0] sm:$0xff]
    %v1840 = vld [vmem:[#allocation8 + $0xe8] sm:$0xff]
    %v1841 = vld [vmem:[#allocation8 + $0xf0] sm:$0xff]
    %v1842 = vld [vmem:[#allocation8 + $0xf8] sm:$0xff]
    %v1843 = vld [vmem:[#allocation8 + $0x100] sm:$0xff]
    %v1844 = vld [vmem:[#allocation8 + $0x108] sm:$0xff]
    %v1845 = vld [vmem:[#allocation8 + $0x110] sm:$0xff]
    %v1846 = vld [vmem:[#allocation8 + $0x118] sm:$0xff]
    %v1847 = vld [vmem:[#allocation8 + $0x120] sm:$0xff]
    %v1848 = vld [vmem:[#allocation8 + $0x128] sm:$0xff]
    %v1849 = vld [vmem:[#allocation8 + $0x130] sm:$0xff]
    %v1850 = vld [vmem:[#allocation8 + $0x138] sm:$0xff]
    %v1851 = vld [vmem:[#allocation8 + $0x140] sm:$0xff]
    %v1852 = vld [vmem:[#allocation8 + $0x148] sm:$0xff]
    %v1853 = vld [vmem:[#allocation8 + $0x150] sm:$0xff]
    %v1854 = vld [vmem:[#allocation8 + $0x158] sm:$0xff]
    %v1855 = vld [vmem:[#allocation8 + $0x160] sm:$0xff]
    %v1856 = vld [vmem:[#allocation8 + $0x168] sm:$0xff]
    %v1857 = vld [vmem:[#allocation8 + $0x170] sm:$0xff]
    %v1858 = vld [vmem:[#allocation8 + $0x178] sm:$0xff]
    %v1859 = vld [vmem:[#allocation8 + $0x180] sm:$0xff]
    %v1860 = vld [vmem:[#allocation8 + $0x188] sm:$0xff]
    %v1861 = vld [vmem:[#allocation8 + $0x190] sm:$0xff]
    %v1862 = vld [vmem:[#allocation8 + $0x198] sm:$0xff]
    %v1863 = vld [vmem:[#allocation8 + $0x1a0] sm:$0xff]
    %v1864 = vld [vmem:[#allocation8 + $0x1a8] sm:$0xff]
    %v1865 = vld [vmem:[#allocation8 + $0x1b0] sm:$0xff]
    %v1866 = vld [vmem:[#allocation8 + $0x1b8] sm:$0xff]
    %v1867 = vld [vmem:[#allocation8 + $0x1c0] sm:$0xff]
    %v1868 = vld [vmem:[#allocation8 + $0x1c8] sm:$0xff]
    %v1869 = vld [vmem:[#allocation8 + $0x1d0] sm:$0xff]
    %v1870 = vld [vmem:[#allocation8 + $0x1d8] sm:$0xff]
    %v1871 = vld [vmem:[#allocation8 + $0x1e0] sm:$0xff]
    %v1872 = vld [vmem:[#allocation8 + $0x1e8] sm:$0xff]
    %v1873 = vld [vmem:[#allocation8 + $0x1f0] sm:$0xff]
    %v1874 = vld [vmem:[#allocation8 + $0x1f8] sm:$0xff]
    %v1875 = vld [vmem:[#allocation8 + $0x200] sm:$0xff]
    %v1876 = vld [vmem:[#allocation8 + $0x208] sm:$0xff]
    %v1877 = vld [vmem:[#allocation8 + $0x210] sm:$0xff]
    %v1878 = vld [vmem:[#allocation8 + $0x218] sm:$0xff]
    %v1879 = vld [vmem:[#allocation8 + $0x220] sm:$0xff]
    %v1880 = vld [vmem:[#allocation8 + $0x228] sm:$0xff]
    %v1881 = vld [vmem:[#allocation8 + $0x230] sm:$0xff]
    %v1882 = vld [vmem:[#allocation8 + $0x238] sm:$0xff]
    %v1883 = vld [vmem:[#allocation8 + $0x240] sm:$0xff]
    %v1884 = vld [vmem:[#allocation8 + $0x248] sm:$0xff]
    %v1885 = vld [vmem:[#allocation8 + $0x250] sm:$0xff]
    %v1886 = vld [vmem:[#allocation8 + $0x258] sm:$0xff]
    %v1887 = vld [vmem:[#allocation8 + $0x260] sm:$0xff]
    %v1888 = vld [vmem:[#allocation8 + $0x268] sm:$0xff]
    %v1889 = vld [vmem:[#allocation8 + $0x270] sm:$0xff]
    %v1890 = vld [vmem:[#allocation8 + $0x278] sm:$0xff]
    %v1891 = vld [vmem:[#allocation8 + $0x280] sm:$0xff]
    %v1892 = vld [vmem:[#allocation8 + $0x288] sm:$0xff]
    %v1893 = vld [vmem:[#allocation8 + $0x290] sm:$0xff]
    %v1894 = vld [vmem:[#allocation8 + $0x298] sm:$0xff]
    %v1895 = vld [vmem:[#allocation8 + $0x2a0] sm:$0xff]
    %v1896 = vld [vmem:[#allocation8 + $0x2a8] sm:$0xff]
    %v1897 = vld [vmem:[#allocation8 + $0x2b0] sm:$0xff]
    %v1898 = vld [vmem:[#allocation8 + $0x2b8] sm:$0xff]
    %v1899 = vld [vmem:[#allocation8 + $0x2c0] sm:$0xff]
    %v1900 = vld [vmem:[#allocation8 + $0x2c8] sm:$0xff]
    %v1901 = vld [vmem:[#allocation8 + $0x2d0] sm:$0xff]
    %v1902 = vld [vmem:[#allocation8 + $0x2d8] sm:$0xff]
    %v1903 = vld [vmem:[#allocation8 + $0x2e0] sm:$0xff]
    %v1904 = vld [vmem:[#allocation8 + $0x2e8] sm:$0xff]
    %v1905 = vld [vmem:[#allocation8 + $0x2f0] sm:$0xff]
    %v1906 = vld [vmem:[#allocation8 + $0x2f8] sm:$0xff]
    %v1907 = vld [vmem:[#allocation8 + $0x300] sm:$0xff]
    %v1908 = vld [vmem:[#allocation8 + $0x308] sm:$0xff]
    %v1909 = vld [vmem:[#allocation8 + $0x310] sm:$0xff]
    %v1910 = vld [vmem:[#allocation8 + $0x318] sm:$0xff]
    %v1911 = vld [vmem:[#allocation8 + $0x320] sm:$0xff]
    %v1912 = vld [vmem:[#allocation8 + $0x328] sm:$0xff]
    %v1913 = vld [vmem:[#allocation8 + $0x330] sm:$0xff]
    %v1914 = vld [vmem:[#allocation8 + $0x338] sm:$0xff]
    %v1915 = vld [vmem:[#allocation8 + $0x340] sm:$0xff]
    %v1916 = vld [vmem:[#allocation8 + $0x348] sm:$0xff]
    %v1917 = vld [vmem:[#allocation8 + $0x350] sm:$0xff]
    %v1918 = vld [vmem:[#allocation8 + $0x358] sm:$0xff]
    %v1919 = vld [vmem:[#allocation8 + $0x360] sm:$0xff]
    %v1920 = vld [vmem:[#allocation8 + $0x368] sm:$0xff]
    %v1921 = vld [vmem:[#allocation8 + $0x370] sm:$0xff]
    %v1922 = vld [vmem:[#allocation8 + $0x378] sm:$0xff]
    %v1923 = vld [vmem:[#allocation8 + $0x380] sm:$0xff]
    %v1924 = vld [vmem:[#allocation8 + $0x388] sm:$0xff]
    %v1925 = vld [vmem:[#allocation8 + $0x390] sm:$0xff]
    %v1926 = vld [vmem:[#allocation8 + $0x398] sm:$0xff]
    %v1927 = vld [vmem:[#allocation8 + $0x3a0] sm:$0xff]
    %v1928 = vld [vmem:[#allocation8 + $0x3a8] sm:$0xff]
    %v1929 = vld [vmem:[#allocation8 + $0x3b0] sm:$0xff]
    %v1930 = vld [vmem:[#allocation8 + $0x3b8] sm:$0xff]
    %v1931 = vld [vmem:[#allocation8 + $0x3c0] sm:$0xff]
    %v1932 = vld [vmem:[#allocation8 + $0x3c8] sm:$0xff]
    %v1933 = vld [vmem:[#allocation8 + $0x3d0] sm:$0xff]
    %v1934 = vld [vmem:[#allocation8 + $0x3d8] sm:$0xff]
    %v1935 = vld [vmem:[#allocation8 + $0x3e0] sm:$0xff]
    %v1936 = vld [vmem:[#allocation8 + $0x3e8] sm:$0xff]
    %v1937 = vld [vmem:[#allocation8 + $0x3f0] sm:$0xff]
    %v1938 = vld [vmem:[#allocation8 + $0x3f8] sm:$0xff]
    %v1939 = vld [vmem:[#allocation8 + $0x400] sm:$0xff]
    %v1940 = vld [vmem:[#allocation8 + $0x408] sm:$0xff]
    %v1941 = vld [vmem:[#allocation8 + $0x410] sm:$0xff]
    %v1942 = vld [vmem:[#allocation8 + $0x418] sm:$0xff]
    %v1943 = vld [vmem:[#allocation8 + $0x420] sm:$0xff]
    %v1944 = vld [vmem:[#allocation8 + $0x428] sm:$0xff]
    %v1945 = vld [vmem:[#allocation8 + $0x430] sm:$0xff]
    %v1946 = vld [vmem:[#allocation8 + $0x438] sm:$0xff]
    %v1947 = vld [vmem:[#allocation8 + $0x440] sm:$0xff]
    %v1948 = vld [vmem:[#allocation8 + $0x448] sm:$0xff]
    %v1949 = vld [vmem:[#allocation8 + $0x450] sm:$0xff]
    %v1950 = vld [vmem:[#allocation8 + $0x458] sm:$0xff]
    %v1951 = vld [vmem:[#allocation8 + $0x460] sm:$0xff]
    %v1952 = vld [vmem:[#allocation8 + $0x468] sm:$0xff]
    %v1953 = vld [vmem:[#allocation8 + $0x470] sm:$0xff]
    %v1954 = vld [vmem:[#allocation8 + $0x478] sm:$0xff]
    %v1955 = vld [vmem:[#allocation8 + $0x480] sm:$0xff]
    %v1956 = vld [vmem:[#allocation8 + $0x488] sm:$0xff]
    %v1957 = vld [vmem:[#allocation8 + $0x490] sm:$0xff]
    %v1958 = vld [vmem:[#allocation8 + $0x498] sm:$0xff]
    %v1959 = vld [vmem:[#allocation8 + $0x4a0] sm:$0xff]
    %v1960 = vld [vmem:[#allocation8 + $0x4a8] sm:$0xff]
    %v1961 = vld [vmem:[#allocation8 + $0x4b0] sm:$0xff]
    %v1962 = vld [vmem:[#allocation8 + $0x4b8] sm:$0xff]
    %v1963 = vld [vmem:[#allocation8 + $0x4c0] sm:$0xff]
    %v1964 = vld [vmem:[#allocation8 + $0x4c8] sm:$0xff]
    %v1965 = vld [vmem:[#allocation8 + $0x4d0] sm:$0xff]
    %v1966 = vld [vmem:[#allocation8 + $0x4d8] sm:$0xff]
    %v1967 = vld [vmem:[#allocation8 + $0x4e0] sm:$0xff]
    %v1968 = vld [vmem:[#allocation8 + $0x4e8] sm:$0xff]
    %v1969 = vld [vmem:[#allocation8 + $0x4f0] sm:$0xff]
    %v1970 = vld [vmem:[#allocation8 + $0x4f8] sm:$0xff]
    %v1971 = vld [vmem:[#allocation8 + $0x500] sm:$0xff]
    %v1972 = vld [vmem:[#allocation8 + $0x508] sm:$0xff]
    %v1973 = vld [vmem:[#allocation8 + $0x510] sm:$0xff]
    %v1974 = vld [vmem:[#allocation8 + $0x518] sm:$0xff]
    %v1975 = vld [vmem:[#allocation8 + $0x520] sm:$0xff]
    %v1976 = vld [vmem:[#allocation8 + $0x528] sm:$0xff]
    %v1977 = vld [vmem:[#allocation8 + $0x530] sm:$0xff]
    %v1978 = vld [vmem:[#allocation8 + $0x538] sm:$0xff]
    %v1979 = vld [vmem:[#allocation8 + $0x540] sm:$0xff]
    %v1980 = vld [vmem:[#allocation8 + $0x548] sm:$0xff]
    %v1981 = vld [vmem:[#allocation8 + $0x550] sm:$0xff]
    %v1982 = vld [vmem:[#allocation8 + $0x558] sm:$0xff]
    %v1983 = vld [vmem:[#allocation8 + $0x560] sm:$0xff]
    %v1984 = vld [vmem:[#allocation8 + $0x568] sm:$0xff]
    %v1985 = vld [vmem:[#allocation8 + $0x570] sm:$0xff]
    %v1986 = vld [vmem:[#allocation8 + $0x578] sm:$0xff]
    %v1987 = vld [vmem:[#allocation8 + $0x580] sm:$0xff]
    %v1988 = vld [vmem:[#allocation8 + $0x588] sm:$0xff]
    %v1989 = vld [vmem:[#allocation8 + $0x590] sm:$0xff]
    %v1990 = vld [vmem:[#allocation8 + $0x598] sm:$0xff]
    %v1991 = vld [vmem:[#allocation8 + $0x5a0] sm:$0xff]
    %v1992 = vld [vmem:[#allocation8 + $0x5a8] sm:$0xff]
    %v1993 = vld [vmem:[#allocation8 + $0x5b0] sm:$0xff]
    %v1994 = vld [vmem:[#allocation8 + $0x5b8] sm:$0xff]
    %v1995 = vld [vmem:[#allocation8 + $0x5c0] sm:$0xff]
    %v1996 = vld [vmem:[#allocation8 + $0x5c8] sm:$0xff]
    %v1997 = vld [vmem:[#allocation8 + $0x5d0] sm:$0xff]
    %v1998 = vld [vmem:[#allocation8 + $0x5d8] sm:$0xff]
    %v1999 = vld [vmem:[#allocation8 + $0x5e0] sm:$0xff]
    %v2000 = vld [vmem:[#allocation8 + $0x5e8] sm:$0xff]
    %v2001 = vld [vmem:[#allocation8 + $0x5f0] sm:$0xff]
    %v2002 = vld [vmem:[#allocation8 + $0x5f8] sm:$0xff]
    %v2003 = vld [vmem:[#allocation8 + $0x600] sm:$0xff]
    %v2004 = vld [vmem:[#allocation8 + $0x608] sm:$0xff]
    %v2005 = vld [vmem:[#allocation8 + $0x610] sm:$0xff]
    %v2006 = vld [vmem:[#allocation8 + $0x618] sm:$0xff]
    %v2007 = vld [vmem:[#allocation8 + $0x620] sm:$0xff]
    %v2008 = vld [vmem:[#allocation8 + $0x628] sm:$0xff]
    %v2009 = vld [vmem:[#allocation8 + $0x630] sm:$0xff]
    %v2010 = vld [vmem:[#allocation8 + $0x638] sm:$0xff]
    %v2011 = vld [vmem:[#allocation8 + $0x640] sm:$0xff]
    %v2012 = vld [vmem:[#allocation8 + $0x648] sm:$0xff]
    %v2013 = vld [vmem:[#allocation8 + $0x650] sm:$0xff]
    %v2014 = vld [vmem:[#allocation8 + $0x658] sm:$0xff]
    %v2015 = vld [vmem:[#allocation8 + $0x660] sm:$0xff]
    %v2016 = vld [vmem:[#allocation8 + $0x668] sm:$0xff]
    %v2017 = vld [vmem:[#allocation8 + $0x670] sm:$0xff]
    %v2018 = vld [vmem:[#allocation8 + $0x678] sm:$0xff]
    %v2019 = vld [vmem:[#allocation8 + $0x680] sm:$0xff]
    %v2020 = vld [vmem:[#allocation8 + $0x688] sm:$0xff]
    %v2021 = vld [vmem:[#allocation8 + $0x690] sm:$0xff]
    %v2022 = vld [vmem:[#allocation8 + $0x698] sm:$0xff]
    %v2023 = vld [vmem:[#allocation8 + $0x6a0] sm:$0xff]
    %v2024 = vld [vmem:[#allocation8 + $0x6a8] sm:$0xff]
    %v2025 = vld [vmem:[#allocation8 + $0x6b0] sm:$0xff]
    %v2026 = vld [vmem:[#allocation8 + $0x6b8] sm:$0xff]
    %v2027 = vld [vmem:[#allocation8 + $0x6c0] sm:$0xff]
    %v2028 = vld [vmem:[#allocation8 + $0x6c8] sm:$0xff]
    %v2029 = vld [vmem:[#allocation8 + $0x6d0] sm:$0xff]
    %v2030 = vld [vmem:[#allocation8 + $0x6d8] sm:$0xff]
    %v2031 = vld [vmem:[#allocation8 + $0x6e0] sm:$0xff]
    %v2032 = vld [vmem:[#allocation8 + $0x6e8] sm:$0xff]
    %v2033 = vld [vmem:[#allocation8 + $0x6f0] sm:$0xff]
    %v2034 = vld [vmem:[#allocation8 + $0x6f8] sm:$0xff]
    %v2035 = vld [vmem:[#allocation8 + $0x700] sm:$0xff]
    %v2036 = vld [vmem:[#allocation8 + $0x708] sm:$0xff]
    %v2037 = vld [vmem:[#allocation8 + $0x710] sm:$0xff]
    %v2038 = vld [vmem:[#allocation8 + $0x718] sm:$0xff]
    %v2039 = vld [vmem:[#allocation8 + $0x720] sm:$0xff]
    %v2040 = vld [vmem:[#allocation8 + $0x728] sm:$0xff]
    %v2041 = vld [vmem:[#allocation8 + $0x730] sm:$0xff]
    %v2042 = vld [vmem:[#allocation8 + $0x738] sm:$0xff]
    %v2043 = vld [vmem:[#allocation8 + $0x740] sm:$0xff]
    %v2044 = vld [vmem:[#allocation8 + $0x748] sm:$0xff]
    %v2045 = vld [vmem:[#allocation8 + $0x750] sm:$0xff]
    %v2046 = vld [vmem:[#allocation8 + $0x758] sm:$0xff]
    %v2047 = vld [vmem:[#allocation8 + $0x760] sm:$0xff]
    %v2048 = vld [vmem:[#allocation8 + $0x768] sm:$0xff]
    %v2049 = vld [vmem:[#allocation8 + $0x770] sm:$0xff]
    %v2050 = vld [vmem:[#allocation8 + $0x778] sm:$0xff]
    %v2051 = vld [vmem:[#allocation8 + $0x780] sm:$0xff]
    %v2052 = vld [vmem:[#allocation8 + $0x788] sm:$0xff]
    %v2053 = vld [vmem:[#allocation8 + $0x790] sm:$0xff]
    %v2054 = vld [vmem:[#allocation8 + $0x798] sm:$0xff]
    %v2055 = vld [vmem:[#allocation8 + $0x7a0] sm:$0xff]
    %v2056 = vld [vmem:[#allocation8 + $0x7a8] sm:$0xff]
    %v2057 = vld [vmem:[#allocation8 + $0x7b0] sm:$0xff]
    %v2058 = vld [vmem:[#allocation8 + $0x7b8] sm:$0xff]
    %v2059 = vld [vmem:[#allocation8 + $0x7c0] sm:$0xff]
    %v2060 = vld [vmem:[#allocation8 + $0x7c8] sm:$0xff]
    %v2061 = vld [vmem:[#allocation8 + $0x7d0] sm:$0xff]
    %v2062 = vld [vmem:[#allocation8 + $0x7d8] sm:$0xff]
    %v2063 = vld [vmem:[#allocation8 + $0x7e0] sm:$0xff]
    %v2064 = vld [vmem:[#allocation8 + $0x7e8] sm:$0xff]
    %v2065 = vld [vmem:[#allocation8 + $0x7f0] sm:$0xff]
    %v2066 = vld [vmem:[#allocation8 + $0x7f8] sm:$0xff]
    %v2067 = vld [vmem:[#allocation8 + $0x800] sm:$0xff]
    %v2068 = vld [vmem:[#allocation8 + $0x808] sm:$0xff]
    %v2069 = vld [vmem:[#allocation8 + $0x810] sm:$0xff]
    %v2070 = vld [vmem:[#allocation8 + $0x818] sm:$0xff]
    %v2071 = vld [vmem:[#allocation8 + $0x820] sm:$0xff]
    %v2072 = vld [vmem:[#allocation8 + $0x828] sm:$0xff]
    %v2073 = vld [vmem:[#allocation8 + $0x830] sm:$0xff]
    %v2074 = vld [vmem:[#allocation8 + $0x838] sm:$0xff]
    %v2075 = vld [vmem:[#allocation8 + $0x840] sm:$0xff]
    %v2076 = vld [vmem:[#allocation8 + $0x848] sm:$0xff]
    %v2077 = vld [vmem:[#allocation8 + $0x850] sm:$0xff]
    %v2078 = vld [vmem:[#allocation8 + $0x858] sm:$0xff]
    %v2079 = vld [vmem:[#allocation8 + $0x860] sm:$0xff]
    %v2080 = vld [vmem:[#allocation8 + $0x868] sm:$0xff]
    %v2081 = vld [vmem:[#allocation8 + $0x870] sm:$0xff]
    %v2082 = vld [vmem:[#allocation8 + $0x878] sm:$0xff]
    %v2083 = vld [vmem:[#allocation8 + $0x880] sm:$0xff]
    %v2084 = vld [vmem:[#allocation8 + $0x888] sm:$0xff]
    %v2085 = vld [vmem:[#allocation8 + $0x890] sm:$0xff]
    %v2086 = vld [vmem:[#allocation8 + $0x898] sm:$0xff]
    %v2087 = vld [vmem:[#allocation8 + $0x8a0] sm:$0xff]
    %v2088 = vld [vmem:[#allocation8 + $0x8a8] sm:$0xff]
    %v2089 = vld [vmem:[#allocation8 + $0x8b0] sm:$0xff]
    %v2090 = vld [vmem:[#allocation8 + $0x8b8] sm:$0xff]
    %v2091 = vld [vmem:[#allocation8 + $0x8c0] sm:$0xff]
    %v2092 = vld [vmem:[#allocation8 + $0x8c8] sm:$0xff]
    %v2093 = vld [vmem:[#allocation8 + $0x8d0] sm:$0xff]
    %v2094 = vld [vmem:[#allocation8 + $0x8d8] sm:$0xff]
    %v2095 = vld [vmem:[#allocation8 + $0x8e0] sm:$0xff]
    %v2096 = vld [vmem:[#allocation8 + $0x8e8] sm:$0xff]
    %v2097 = vld [vmem:[#allocation8 + $0x8f0] sm:$0xff]
    %v2098 = vld [vmem:[#allocation8 + $0x8f8] sm:$0xff]
    %v2099 = vld [vmem:[#allocation8 + $0x900] sm:$0xff]
    %v2100 = vld [vmem:[#allocation8 + $0x908] sm:$0xff]
    %v2101 = vld [vmem:[#allocation8 + $0x910] sm:$0xff]
    %v2102 = vld [vmem:[#allocation8 + $0x918] sm:$0xff]
    %v2103 = vld [vmem:[#allocation8 + $0x920] sm:$0xff]
    %v2104 = vld [vmem:[#allocation8 + $0x928] sm:$0xff]
    %v2105 = vld [vmem:[#allocation8 + $0x930] sm:$0xff]
    %v2106 = vld [vmem:[#allocation8 + $0x938] sm:$0xff]
    %v2107 = vld [vmem:[#allocation8 + $0x940] sm:$0xff]
    %v2108 = vld [vmem:[#allocation8 + $0x948] sm:$0xff]
    %v2109 = vld [vmem:[#allocation8 + $0x950] sm:$0xff]
    %v2110 = vld [vmem:[#allocation8 + $0x958] sm:$0xff]
    %v2111 = vld [vmem:[#allocation8 + $0x960] sm:$0xff]
    %v2112 = vld [vmem:[#allocation8 + $0x968] sm:$0xff]
    %v2113 = vld [vmem:[#allocation8 + $0x970] sm:$0xff]
    %v2114 = vld [vmem:[#allocation8 + $0x978] sm:$0xff]
    %v2115 = vld [vmem:[#allocation8 + $0x980] sm:$0xff]
    %v2116 = vld [vmem:[#allocation8 + $0x988] sm:$0xff]
    %v2117 = vld [vmem:[#allocation8 + $0x990] sm:$0xff]
    %v2118 = vld [vmem:[#allocation8 + $0x998] sm:$0xff]
    %v2119 = vld [vmem:[#allocation8 + $0x9a0] sm:$0xff]
    %v2120 = vld [vmem:[#allocation8 + $0x9a8] sm:$0xff]
    %v2121 = vld [vmem:[#allocation8 + $0x9b0] sm:$0xff]
    %v2122 = vld [vmem:[#allocation8 + $0x9b8] sm:$0xff]
    %v2123 = vld [vmem:[#allocation8 + $0x9c0] sm:$0xff]
    %v2124 = vld [vmem:[#allocation8 + $0x9c8] sm:$0xff]
    %v2125 = vld [vmem:[#allocation8 + $0x9d0] sm:$0xff]
    %v2126 = vld [vmem:[#allocation8 + $0x9d8] sm:$0xff]
    %v2127 = vld [vmem:[#allocation8 + $0x9e0] sm:$0xff]
    %v2128 = vld [vmem:[#allocation8 + $0x9e8] sm:$0xff]
    %v2129 = vld [vmem:[#allocation8 + $0x9f0] sm:$0xff]
    %v2130 = vld [vmem:[#allocation8 + $0x9f8] sm:$0xff]
    %v2131 = vld [vmem:[#allocation8 + $0xa00] sm:$0xff]
    %v2132 = vld [vmem:[#allocation8 + $0xa08] sm:$0xff]
    %v2133 = vld [vmem:[#allocation8 + $0xa10] sm:$0xff]
    %v2134 = vld [vmem:[#allocation8 + $0xa18] sm:$0xff]
    %v2135 = vld [vmem:[#allocation8 + $0xa20] sm:$0xff]
    %v2136 = vld [vmem:[#allocation8 + $0xa28] sm:$0xff]
    %v2137 = vld [vmem:[#allocation8 + $0xa30] sm:$0xff]
    %v2138 = vld [vmem:[#allocation8 + $0xa38] sm:$0xff]
    %v2139 = vld [vmem:[#allocation8 + $0xa40] sm:$0xff]
    %v2140 = vld [vmem:[#allocation8 + $0xa48] sm:$0xff]
    %v2141 = vld [vmem:[#allocation8 + $0xa50] sm:$0xff]
    %v2142 = vld [vmem:[#allocation8 + $0xa58] sm:$0xff]
    %v2143 = vld [vmem:[#allocation8 + $0xa60] sm:$0xff]
    %v2144 = vld [vmem:[#allocation8 + $0xa68] sm:$0xff]
    %v2145 = vld [vmem:[#allocation8 + $0xa70] sm:$0xff]
    %v2146 = vld [vmem:[#allocation8 + $0xa78] sm:$0xff]
    %v2147 = vld [vmem:[#allocation8 + $0xa80] sm:$0xff]
    %v2148 = vld [vmem:[#allocation8 + $0xa88] sm:$0xff]
    %v2149 = vld [vmem:[#allocation8 + $0xa90] sm:$0xff]
    %v2150 = vld [vmem:[#allocation8 + $0xa98] sm:$0xff]
    %v2151 = vld [vmem:[#allocation8 + $0xaa0] sm:$0xff]
    %v2152 = vld [vmem:[#allocation8 + $0xaa8] sm:$0xff]
    %v2153 = vld [vmem:[#allocation8 + $0xab0] sm:$0xff]
    %v2154 = vld [vmem:[#allocation8 + $0xab8] sm:$0xff]
    %v2155 = vld [vmem:[#allocation8 + $0xac0] sm:$0xff]
    %v2156 = vld [vmem:[#allocation8 + $0xac8] sm:$0xff]
    %v2157 = vld [vmem:[#allocation8 + $0xad0] sm:$0xff]
    %v2158 = vld [vmem:[#allocation8 + $0xad8] sm:$0xff]
    %v2159 = vld [vmem:[#allocation8 + $0xae0] sm:$0xff]
    %v2160 = vld [vmem:[#allocation8 + $0xae8] sm:$0xff]
    %v2161 = vld [vmem:[#allocation8 + $0xaf0] sm:$0xff]
    %v2162 = vld [vmem:[#allocation8 + $0xaf8] sm:$0xff]
    %v2163 = vld [vmem:[#allocation8 + $0xb00] sm:$0xff]
    %v2164 = vld [vmem:[#allocation8 + $0xb08] sm:$0xff]
    %v2165 = vld [vmem:[#allocation8 + $0xb10] sm:$0xff]
    %v2166 = vld [vmem:[#allocation8 + $0xb18] sm:$0xff]
    %v2167 = vld [vmem:[#allocation8 + $0xb20] sm:$0xff]
    %v2168 = vld [vmem:[#allocation8 + $0xb28] sm:$0xff]
    %v2169 = vld [vmem:[#allocation8 + $0xb30] sm:$0xff]
    %v2170 = vld [vmem:[#allocation8 + $0xb38] sm:$0xff]
    %v2171 = vld [vmem:[#allocation8 + $0xb40] sm:$0xff]
    %v2172 = vld [vmem:[#allocation8 + $0xb48] sm:$0xff]
    %v2173 = vld [vmem:[#allocation8 + $0xb50] sm:$0xff]
    %v2174 = vld [vmem:[#allocation8 + $0xb58] sm:$0xff]
    %v2175 = vld [vmem:[#allocation8 + $0xb60] sm:$0xff]
    %v2176 = vld [vmem:[#allocation8 + $0xb68] sm:$0xff]
    %v2177 = vld [vmem:[#allocation8 + $0xb70] sm:$0xff]
    %v2178 = vld [vmem:[#allocation8 + $0xb78] sm:$0xff]
    %v2179 = vld [vmem:[#allocation8 + $0xb80] sm:$0xff]
    %v2180 = vld [vmem:[#allocation8 + $0xb88] sm:$0xff]
    %v2181 = vld [vmem:[#allocation8 + $0xb90] sm:$0xff]
    %v2182 = vld [vmem:[#allocation8 + $0xb98] sm:$0xff]
    %v2183 = vld [vmem:[#allocation8 + $0xba0] sm:$0xff]
    %v2184 = vld [vmem:[#allocation8 + $0xba8] sm:$0xff]
    %v2185 = vld [vmem:[#allocation8 + $0xbb0] sm:$0xff]
    %v2186 = vld [vmem:[#allocation8 + $0xbb8] sm:$0xff]
    %v2187 = vld [vmem:[#allocation8 + $0xbc0] sm:$0xff]
    %v2188 = vld [vmem:[#allocation8 + $0xbc8] sm:$0xff]
    %v2189 = vld [vmem:[#allocation8 + $0xbd0] sm:$0xff]
    %v2190 = vld [vmem:[#allocation8 + $0xbd8] sm:$0xff]
    %v2191 = vld [vmem:[#allocation8 + $0xbe0] sm:$0xff]
    %v2192 = vld [vmem:[#allocation8 + $0xbe8] sm:$0xff]
    %v2193 = vld [vmem:[#allocation8 + $0xbf0] sm:$0xff]
    %v2194 = vld [vmem:[#allocation8 + $0xbf8] sm:$0xff]
    %v2195 = vld [vmem:[#allocation8 + $0xc00] sm:$0xff]
    %v2196 = vld [vmem:[#allocation8 + $0xc08] sm:$0xff]
    %v2197 = vld [vmem:[#allocation8 + $0xc10] sm:$0xff]
    %v2198 = vld [vmem:[#allocation8 + $0xc18] sm:$0xff]
    %v2199 = vld [vmem:[#allocation8 + $0xc20] sm:$0xff]
    %v2200 = vld [vmem:[#allocation8 + $0xc28] sm:$0xff]
    %v2201 = vld [vmem:[#allocation8 + $0xc30] sm:$0xff]
    %v2202 = vld [vmem:[#allocation8 + $0xc38] sm:$0xff]
    %v2203 = vld [vmem:[#allocation8 + $0xc40] sm:$0xff]
    %v2204 = vld [vmem:[#allocation8 + $0xc48] sm:$0xff]
    %v2205 = vld [vmem:[#allocation8 + $0xc50] sm:$0xff]
    %v2206 = vld [vmem:[#allocation8 + $0xc58] sm:$0xff]
    %v2207 = vld [vmem:[#allocation8 + $0xc60] sm:$0xff]
    %v2208 = vld [vmem:[#allocation8 + $0xc68] sm:$0xff]
    %v2209 = vld [vmem:[#allocation8 + $0xc70] sm:$0xff]
    %v2210 = vld [vmem:[#allocation8 + $0xc78] sm:$0xff]
    %v2211 = vld [vmem:[#allocation8 + $0xc80] sm:$0xff]
    %v2212 = vld [vmem:[#allocation8 + $0xc88] sm:$0xff]
    %v2213 = vld [vmem:[#allocation8 + $0xc90] sm:$0xff]
    %v2214 = vld [vmem:[#allocation8 + $0xc98] sm:$0xff]
    %v2215 = vld [vmem:[#allocation8 + $0xca0] sm:$0xff]
    %v2216 = vld [vmem:[#allocation8 + $0xca8] sm:$0xff]
    %v2217 = vld [vmem:[#allocation8 + $0xcb0] sm:$0xff]
    %v2218 = vld [vmem:[#allocation8 + $0xcb8] sm:$0xff]
    %v2219 = vld [vmem:[#allocation8 + $0xcc0] sm:$0xff]
    %v2220 = vld [vmem:[#allocation8 + $0xcc8] sm:$0xff]
    %v2221 = vld [vmem:[#allocation8 + $0xcd0] sm:$0xff]
    %v2222 = vld [vmem:[#allocation8 + $0xcd8] sm:$0xff]
    %v2223 = vld [vmem:[#allocation8 + $0xce0] sm:$0xff]
    %v2224 = vld [vmem:[#allocation8 + $0xce8] sm:$0xff]
    %v2225 = vld [vmem:[#allocation8 + $0xcf0] sm:$0xff]
    %v2226 = vld [vmem:[#allocation8 + $0xcf8] sm:$0xff]
    %v2227 = vld [vmem:[#allocation8 + $0xd00] sm:$0xff]
    %v2228 = vld [vmem:[#allocation8 + $0xd08] sm:$0xff]
    %v2229 = vld [vmem:[#allocation8 + $0xd10] sm:$0xff]
    %v2230 = vld [vmem:[#allocation8 + $0xd18] sm:$0xff]
    %v2231 = vld [vmem:[#allocation8 + $0xd20] sm:$0xff]
    %v2232 = vld [vmem:[#allocation8 + $0xd28] sm:$0xff]
    %v2233 = vld [vmem:[#allocation8 + $0xd30] sm:$0xff]
    %v2234 = vld [vmem:[#allocation8 + $0xd38] sm:$0xff]
    %v2235 = vld [vmem:[#allocation8 + $0xd40] sm:$0xff]
    %v2236 = vld [vmem:[#allocation8 + $0xd48] sm:$0xff]
    %v2237 = vld [vmem:[#allocation8 + $0xd50] sm:$0xff]
    %v2238 = vld [vmem:[#allocation8 + $0xd58] sm:$0xff]
    %v2239 = vld [vmem:[#allocation8 + $0xd60] sm:$0xff]
    %v2240 = vld [vmem:[#allocation8 + $0xd68] sm:$0xff]
    %v2241 = vld [vmem:[#allocation8 + $0xd70] sm:$0xff]
    %v2242 = vld [vmem:[#allocation8 + $0xd78] sm:$0xff]
    %v2243 = vld [vmem:[#allocation8 + $0xd80] sm:$0xff]
    %v2244 = vld [vmem:[#allocation8 + $0xd88] sm:$0xff]
    %v2245 = vld [vmem:[#allocation8 + $0xd90] sm:$0xff]
    %v2246 = vld [vmem:[#allocation8 + $0xd98] sm:$0xff]
    %v2247 = vld [vmem:[#allocation8 + $0xda0] sm:$0xff]
    %v2248 = vld [vmem:[#allocation8 + $0xda8] sm:$0xff]
    %v2249 = vld [vmem:[#allocation8 + $0xdb0] sm:$0xff]
    %v2250 = vld [vmem:[#allocation8 + $0xdb8] sm:$0xff]
    %v2251 = vld [vmem:[#allocation8 + $0xdc0] sm:$0xff]
    %v2252 = vld [vmem:[#allocation8 + $0xdc8] sm:$0xff]
    %v2253 = vld [vmem:[#allocation8 + $0xdd0] sm:$0xff]
    %v2254 = vld [vmem:[#allocation8 + $0xdd8] sm:$0xff]
    %v2255 = vld [vmem:[#allocation8 + $0xde0] sm:$0xff]
    %v2256 = vld [vmem:[#allocation8 + $0xde8] sm:$0xff]
    %v2257 = vld [vmem:[#allocation8 + $0xdf0] sm:$0xff]
    %v2258 = vld [vmem:[#allocation8 + $0xdf8] sm:$0xff]
    %v2259 = vld [vmem:[#allocation8 + $0xe00] sm:$0xff]
    %v2260 = vld [vmem:[#allocation8 + $0xe08] sm:$0xff]
    %v2261 = vld [vmem:[#allocation8 + $0xe10] sm:$0xff]
    %v2262 = vld [vmem:[#allocation8 + $0xe18] sm:$0xff]
    %v2263 = vld [vmem:[#allocation8 + $0xe20] sm:$0xff]
    %v2264 = vld [vmem:[#allocation8 + $0xe28] sm:$0xff]
    %v2265 = vld [vmem:[#allocation8 + $0xe30] sm:$0xff]
    %v2266 = vld [vmem:[#allocation8 + $0xe38] sm:$0xff]
    %v2267 = vld [vmem:[#allocation8 + $0xe40] sm:$0xff]
    %v2268 = vld [vmem:[#allocation8 + $0xe48] sm:$0xff]
    %v2269 = vld [vmem:[#allocation8 + $0xe50] sm:$0xff]
    %v2270 = vld [vmem:[#allocation8 + $0xe58] sm:$0xff]
    %v2271 = vld [vmem:[#allocation8 + $0xe60] sm:$0xff]
    %v2272 = vld [vmem:[#allocation8 + $0xe68] sm:$0xff]
    %v2273 = vld [vmem:[#allocation8 + $0xe70] sm:$0xff]
    %v2274 = vld [vmem:[#allocation8 + $0xe78] sm:$0xff]
    %v2275 = vld [vmem:[#allocation8 + $0xe80] sm:$0xff]
    %v2276 = vld [vmem:[#allocation8 + $0xe88] sm:$0xff]
    %v2277 = vld [vmem:[#allocation8 + $0xe90] sm:$0xff]
    %v2278 = vld [vmem:[#allocation8 + $0xe98] sm:$0xff]
    %v2279 = vld [vmem:[#allocation8 + $0xea0] sm:$0xff]
    %v2280 = vld [vmem:[#allocation8 + $0xea8] sm:$0xff]
    %v2281 = vld [vmem:[#allocation8 + $0xeb0] sm:$0xff]
    %v2282 = vld [vmem:[#allocation8 + $0xeb8] sm:$0xff]
    %v2283 = vld [vmem:[#allocation8 + $0xec0] sm:$0xff]
    %v2284 = vld [vmem:[#allocation8 + $0xec8] sm:$0xff]
    %v2285 = vld [vmem:[#allocation8 + $0xed0] sm:$0xff]
    %v2286 = vld [vmem:[#allocation8 + $0xed8] sm:$0xff]
    %v2287 = vld [vmem:[#allocation8 + $0xee0] sm:$0xff]
    %v2288 = vld [vmem:[#allocation8 + $0xee8] sm:$0xff]
    %v2289 = vld [vmem:[#allocation8 + $0xef0] sm:$0xff]
    %v2290 = vld [vmem:[#allocation8 + $0xef8] sm:$0xff]
    %v2291 = vld [vmem:[#allocation8 + $0xf00] sm:$0xff]
    %v2292 = vld [vmem:[#allocation8 + $0xf08] sm:$0xff]
    %v2293 = vld [vmem:[#allocation8 + $0xf10] sm:$0xff]
    %v2294 = vld [vmem:[#allocation8 + $0xf18] sm:$0xff]
    %v2295 = vld [vmem:[#allocation8 + $0xf20] sm:$0xff]
    %v2296 = vld [vmem:[#allocation8 + $0xf28] sm:$0xff]
    %v2297 = vld [vmem:[#allocation8 + $0xf30] sm:$0xff]
    %v2298 = vld [vmem:[#allocation8 + $0xf38] sm:$0xff]
    %v2299 = vld [vmem:[#allocation8 + $0xf40] sm:$0xff]
    %v2300 = vld [vmem:[#allocation8 + $0xf48] sm:$0xff]
    %v2301 = vld [vmem:[#allocation8 + $0xf50] sm:$0xff]
    %v2302 = vld [vmem:[#allocation8 + $0xf58] sm:$0xff]
    %v2303 = vld [vmem:[#allocation8 + $0xf60] sm:$0xff]
    %v2304 = vld [vmem:[#allocation8 + $0xf68] sm:$0xff]
    %v2305 = vld [vmem:[#allocation8 + $0xf70] sm:$0xff]
    %v2306 = vld [vmem:[#allocation8 + $0xf78] sm:$0xff]
    %v2307 = vld [vmem:[#allocation8 + $0xf80] sm:$0xff]
    %v2308 = vld [vmem:[#allocation8 + $0xf88] sm:$0xff]
    %v2309 = vld [vmem:[#allocation8 + $0xf90] sm:$0xff]
    %v2310 = vld [vmem:[#allocation8 + $0xf98] sm:$0xff]
    %v2311 = vld [vmem:[#allocation8 + $0xfa0] sm:$0xff]
    %v2312 = vld [vmem:[#allocation8 + $0xfa8] sm:$0xff]
    %v2313 = vld [vmem:[#allocation8 + $0xfb0] sm:$0xff]
    %v2314 = vld [vmem:[#allocation8 + $0xfb8] sm:$0xff]
    %v2315 = vld [vmem:[#allocation8 + $0xfc0] sm:$0xff]
    %v2316 = vld [vmem:[#allocation8 + $0xfc8] sm:$0xff]
    %v2317 = vld [vmem:[#allocation8 + $0xfd0] sm:$0xff]
    %v2318 = vld [vmem:[#allocation8 + $0xfd8] sm:$0xff]
    %v2319 = vld [vmem:[#allocation8 + $0xfe0] sm:$0xff]
    %v2320 = vld [vmem:[#allocation8 + $0xfe8] sm:$0xff]
    %v2321 = vld [vmem:[#allocation8 + $0xff0] sm:$0xff]
    %v2322 = vld [vmem:[#allocation8 + $0xff8] sm:$0xff]
    %v2323 = vld [vmem:[#allocation8 + $0x1000] sm:$0xff]
    %v2324 = vld [vmem:[#allocation8 + $0x1008] sm:$0xff]
    %v2325 = vld [vmem:[#allocation8 + $0x1010] sm:$0xff]
    %v2326 = vld [vmem:[#allocation8 + $0x1018] sm:$0xff]
    %v2327 = vld [vmem:[#allocation8 + $0x1020] sm:$0xff]
    %v2328 = vld [vmem:[#allocation8 + $0x1028] sm:$0xff]
    %v2329 = vld [vmem:[#allocation8 + $0x1030] sm:$0xff]
    %v2330 = vld [vmem:[#allocation8 + $0x1038] sm:$0xff]
    %v2331 = vld [vmem:[#allocation8 + $0x1040] sm:$0xff]
    %v2332 = vld [vmem:[#allocation8 + $0x1048] sm:$0xff]
    %v2333 = vld [vmem:[#allocation8 + $0x1050] sm:$0xff]
    %v2334 = vld [vmem:[#allocation8 + $0x1058] sm:$0xff]
    %v2335 = vld [vmem:[#allocation8 + $0x1060] sm:$0xff]
    %v2336 = vld [vmem:[#allocation8 + $0x1068] sm:$0xff]
    %v2337 = vld [vmem:[#allocation8 + $0x1070] sm:$0xff]
    %v2338 = vld [vmem:[#allocation8 + $0x1078] sm:$0xff]
    %v2339 = vld [vmem:[#allocation8 + $0x1080] sm:$0xff]
    %v2340 = vld [vmem:[#allocation8 + $0x1088] sm:$0xff]
    %v2341 = vld [vmem:[#allocation8 + $0x1090] sm:$0xff]
    %v2342 = vld [vmem:[#allocation8 + $0x1098] sm:$0xff]
    %v2343 = vld [vmem:[#allocation8 + $0x10a0] sm:$0xff]
    %v2344 = vld [vmem:[#allocation8 + $0x10a8] sm:$0xff]
    %v2345 = vld [vmem:[#allocation8 + $0x10b0] sm:$0xff]
    %v2346 = vld [vmem:[#allocation8 + $0x10b8] sm:$0xff]
    %v2347 = vld [vmem:[#allocation8 + $0x10c0] sm:$0xff]
    %v2348 = vld [vmem:[#allocation8 + $0x10c8] sm:$0xff]
    %v2349 = vld [vmem:[#allocation8 + $0x10d0] sm:$0xff]
    %v2350 = vld [vmem:[#allocation8 + $0x10d8] sm:$0xff]
    %v2351 = vld [vmem:[#allocation8 + $0x10e0] sm:$0xff]
    %v2352 = vld [vmem:[#allocation8 + $0x10e8] sm:$0xff]
    %v2353 = vld [vmem:[#allocation8 + $0x10f0] sm:$0xff]
    %v2354 = vld [vmem:[#allocation8 + $0x10f8] sm:$0xff]
    %v2355 = vld [vmem:[#allocation8 + $0x1100] sm:$0xff]
    %v2356 = vld [vmem:[#allocation8 + $0x1108] sm:$0xff]
    %v2357 = vld [vmem:[#allocation8 + $0x1110] sm:$0xff]
    %v2358 = vld [vmem:[#allocation8 + $0x1118] sm:$0xff]
    %v2359 = vld [vmem:[#allocation8 + $0x1120] sm:$0xff]
    %v2360 = vld [vmem:[#allocation8 + $0x1128] sm:$0xff]
    %v2361 = vld [vmem:[#allocation8 + $0x1130] sm:$0xff]
    %v2362 = vld [vmem:[#allocation8 + $0x1138] sm:$0xff]
    %v2363 = vld [vmem:[#allocation8 + $0x1140] sm:$0xff]
    %v2364 = vld [vmem:[#allocation8 + $0x1148] sm:$0xff]
    %v2365 = vld [vmem:[#allocation8 + $0x1150] sm:$0xff]
    %v2366 = vld [vmem:[#allocation8 + $0x1158] sm:$0xff]
    %v2367 = vld [vmem:[#allocation8 + $0x1160] sm:$0xff]
    %v2368 = vld [vmem:[#allocation8 + $0x1168] sm:$0xff]
    %v2369 = vld [vmem:[#allocation8 + $0x1170] sm:$0xff]
    %v2370 = vld [vmem:[#allocation8 + $0x1178] sm:$0xff]
    %v2371 = vld [vmem:[#allocation8 + $0x1180] sm:$0xff]
    %v2372 = vld [vmem:[#allocation8 + $0x1188] sm:$0xff]
    %v2373 = vld [vmem:[#allocation8 + $0x1190] sm:$0xff]
    %v2374 = vld [vmem:[#allocation8 + $0x1198] sm:$0xff]
    %v2375 = vld [vmem:[#allocation8 + $0x11a0] sm:$0xff]
    %v2376 = vld [vmem:[#allocation8 + $0x11a8] sm:$0xff]
    %v2377 = vld [vmem:[#allocation8 + $0x11b0] sm:$0xff]
    %v2378 = vld [vmem:[#allocation8 + $0x11b8] sm:$0xff]
    %v2379 = vld [vmem:[#allocation8 + $0x11c0] sm:$0xff]
    %v2380 = vld [vmem:[#allocation8 + $0x11c8] sm:$0xff]
    %v2381 = vld [vmem:[#allocation8 + $0x11d0] sm:$0xff]
    %v2382 = vld [vmem:[#allocation8 + $0x11d8] sm:$0xff]
    %v2383 = vld [vmem:[#allocation8 + $0x11e0] sm:$0xff]
    %v2384 = vld [vmem:[#allocation8 + $0x11e8] sm:$0xff]
    %v2385 = vld [vmem:[#allocation8 + $0x11f0] sm:$0xff]
    %v2386 = vld [vmem:[#allocation8 + $0x11f8] sm:$0xff]
    %s2387 = scalar_lea.vmem [#allocation7], 1
    %v2388 = vld [vmem:[%s2387] ss:$2 sm:$0x3f]
    %v2390 = vlaneseq
    %v2391 = vshrl.u32 %v2390, 7
    %v2392 = vsub.s32 0, %v2391
    %v2393 = vrot.slane %v2388, %v2392
    %v2394 = vlaneseq
    %v2395 = vshrl.u32 %v2394, 7
    %v2396 = vsub.s32 1, %v2395
    %v2397 = vrot.slane %v2388, %v2396
    %v2398 = vlaneseq
    %v2399 = vshrl.u32 %v2398, 7
    %v2400 = vsub.s32 2, %v2399
    %v2401 = vrot.slane %v2388, %v2400
    %v2402 = vlaneseq
    %v2403 = vshrl.u32 %v2402, 7
    %v2404 = vsub.s32 3, %v2403
    %v2405 = vrot.slane %v2388, %v2404
    %v2406 = vlaneseq
    %v2407 = vshrl.u32 %v2406, 7
    %v2408 = vsub.s32 4, %v2407
    %v2409 = vrot.slane %v2388, %v2408
    %v2410 = vlaneseq
    %v2411 = vshrl.u32 %v2410, 7
    %v2412 = vsub.s32 5, %v2411
    %v2413 = vrot.slane %v2388, %v2412
    %2420 = vmatprep.subr.mxu0 %v1812
    %2421 = vmatpush1.msra.mxu0 %v1811
    %2422 = vmatprep.subr.mxu0 %v1818
    %2423 = vmatpush1.msra.mxu0 %v1817
    %2424 = vmatprep.subr.mxu0 %v1824
    %2425 = vmatpush1.msra.mxu0 %v1823
    %2426 = vmatprep.subr.mxu0 %v1830
    %2427 = vmatpush1.msra.mxu0 %v1829
    %2428 = vmatprep.subr.mxu0 %v1836
    %2429 = vmatpush1.msra.mxu0 %v1835
    %2430 = vmatprep.subr.mxu0 %v1842
    %2431 = vmatpush1.msra.mxu0 %v1841
    %2432 = vmatprep.subr.mxu0 %v1848
    %2433 = vmatpush1.msra.mxu0 %v1847
    %2434 = vmatprep.subr.mxu0 %v1854
    %2435 = vmatpush1.msra.mxu0 %v1853
    %2436 = vmatprep.subr.mxu0 %v1860
    %2437 = vmatpush1.msra.mxu0 %v1859
    %2438 = vmatprep.subr.mxu0 %v1866
    %2439 = vmatpush1.msra.mxu0 %v1865
    %2440 = vmatprep.subr.mxu0 %v1872
    %2441 = vmatpush1.msra.mxu0 %v1871
    %2442 = vmatprep.subr.mxu0 %v1878
    %2443 = vmatpush1.msra.mxu0 %v1877
    %2444 = vmatprep.subr.mxu0 %v1884
    %2445 = vmatpush1.msra.mxu0 %v1883
    %2446 = vmatprep.subr.mxu0 %v1890
    %2447 = vmatpush1.msra.mxu0 %v1889
    %2448 = vmatprep.subr.mxu0 %v1896
    %2449 = vmatpush1.msra.mxu0 %v1895
    %2450 = vmatprep.subr.mxu0 %v1902
    %2451 = vmatpush1.msra.mxu0 %v1901
    %2452 = vmatprep.subr.mxu0 %v1908
    %2453 = vmatpush1.msra.mxu0 %v1907
    %2454 = vmatprep.subr.mxu0 %v1914
    %2455 = vmatpush1.msra.mxu0 %v1913
    %2456 = vmatprep.subr.mxu0 %v1920
    %2457 = vmatpush1.msra.mxu0 %v1919
    %2458 = vmatprep.subr.mxu0 %v1926
    %2459 = vmatpush1.msra.mxu0 %v1925
    %2460 = vmatprep.subr.mxu0 %v1932
    %2461 = vmatpush1.msra.mxu0 %v1931
    %2462 = vmatprep.subr.mxu0 %v1938
    %2463 = vmatpush1.msra.mxu0 %v1937
    %2464 = vmatprep.subr.mxu0 %v1944
    %2465 = vmatpush1.msra.mxu0 %v1943
    %2466 = vmatprep.subr.mxu0 %v1950
    %2467 = vmatpush1.msra.mxu0 %v1949
    %2468 = vmatprep.subr.mxu0 %v1956
    %2469 = vmatpush1.msra.mxu0 %v1955
    %2470 = vmatprep.subr.mxu0 %v1962
    %2471 = vmatpush1.msra.mxu0 %v1961
    %2472 = vmatprep.subr.mxu0 %v1968
    %2473 = vmatpush1.msra.mxu0 %v1967
    %2474 = vmatprep.subr.mxu0 %v1974
    %2475 = vmatpush1.msra.mxu0 %v1973
    %2476 = vmatprep.subr.mxu0 %v1980
    %2477 = vmatpush1.msra.mxu0 %v1979
    %2478 = vmatprep.subr.mxu0 %v1986
    %2479 = vmatpush1.msra.mxu0 %v1985
    %2480 = vmatprep.subr.mxu0 %v1992
    %2481 = vmatpush1.msra.mxu0 %v1991
    %2482 = vmatprep.subr.mxu0 %v1998
    %2483 = vmatpush1.msra.mxu0 %v1997
    %2484 = vmatprep.mubr.f32.mxu0 %v1187
    %2485 = vmatmul.mubr.f32.gmra.mrb[0].mxu0 %v1185
    %v2486 = vpop.f32.mrb[0].mxu0
    %v2487 = vadd.f32 %v2393, %v2486
    %v2488 = vpop.f32.mrb[0].mxu0
    %v2489 = vadd.f32 %v2397, %v2488
    %2490 = vmatprep.mubr.f32.mxu0 %v1193
    %2491 = vmatmul.mubr.f32.gmra.mrb[0].mxu0 %v1191
    %v2492 = vpop.f32.mrb[0].mxu0
    %v2493 = vadd.f32 %v2393, %v2492
    %v2494 = vpop.f32.mrb[0].mxu0
    %v2495 = vadd.f32 %v2397, %v2494
    %2496 = vdwg.mxu0
    %2497 = vmatprep.subr.mxu0 %v2004
    %2498 = vmatpush1.msra.mxu0 %v2003
    %2499 = vmatprep.subr.mxu0 %v2010
    %2500 = vmatpush1.msra.mxu0 %v2009
    %2501 = vmatprep.subr.mxu0 %v2016
    %2502 = vmatpush1.msra.mxu0 %v2015
    %2503 = vmatprep.subr.mxu0 %v2022
    %2504 = vmatpush1.msra.mxu0 %v2021
    %2505 = vmatprep.subr.mxu0 %v2028
    %2506 = vmatpush1.msra.mxu0 %v2027
    %2507 = vmatprep.subr.mxu0 %v2034
    %2508 = vmatpush1.msra.mxu0 %v2033
    %2509 = vmatprep.subr.mxu0 %v2040
    %2510 = vmatpush1.msra.mxu0 %v2039
    %2511 = vmatprep.subr.mxu0 %v2046
    %2512 = vmatpush1.msra.mxu0 %v2045
    %2513 = vmatprep.subr.mxu0 %v2052
    %2514 = vmatpush1.msra.mxu0 %v2051
    %2515 = vmatprep.subr.mxu0 %v2058
    %2516 = vmatpush1.msra.mxu0 %v2057
    %2517 = vmatprep.subr.mxu0 %v2064
    %2518 = vmatpush1.msra.mxu0 %v2063
    %2519 = vmatprep.subr.mxu0 %v2070
    %2520 = vmatpush1.msra.mxu0 %v2069
    %2521 = vmatprep.subr.mxu0 %v2076
    %2522 = vmatpush1.msra.mxu0 %v2075
    %2523 = vmatprep.subr.mxu0 %v2082
    %2524 = vmatpush1.msra.mxu0 %v2081
    %2525 = vmatprep.subr.mxu0 %v2088
    %2526 = vmatpush1.msra.mxu0 %v2087
    %2527 = vmatprep.subr.mxu0 %v2094
    %2528 = vmatpush1.msra.mxu0 %v2093
    %2529 = vmatprep.subr.mxu0 %v2100
    %2530 = vmatpush1.msra.mxu0 %v2099
    %2531 = vmatprep.subr.mxu0 %v2106
    %2532 = vmatpush1.msra.mxu0 %v2105
    %2533 = vmatprep.subr.mxu0 %v2112
    %2534 = vmatpush1.msra.mxu0 %v2111
    %2535 = vmatprep.subr.mxu0 %v2118
    %2536 = vmatpush1.msra.mxu0 %v2117
    %2537 = vmatprep.subr.mxu0 %v2124
    %2538 = vmatpush1.msra.mxu0 %v2123
    %2539 = vmatprep.subr.mxu0 %v2130
    %2540 = vmatpush1.msra.mxu0 %v2129
    %2541 = vmatprep.subr.mxu0 %v2136
    %2542 = vmatpush1.msra.mxu0 %v2135
    %2543 = vmatprep.subr.mxu0 %v2142
    %2544 = vmatpush1.msra.mxu0 %v2141
    %2545 = vmatprep.subr.mxu0 %v2148
    %2546 = vmatpush1.msra.mxu0 %v2147
    %2547 = vmatprep.subr.mxu0 %v2154
    %2548 = vmatpush1.msra.mxu0 %v2153
    %2549 = vmatprep.subr.mxu0 %v2160
    %2550 = vmatpush1.msra.mxu0 %v2159
    %2551 = vmatprep.subr.mxu0 %v2166
    %2552 = vmatpush1.msra.mxu0 %v2165
    %2553 = vmatprep.subr.mxu0 %v2172
    %2554 = vmatpush1.msra.mxu0 %v2171
    %2555 = vmatprep.subr.mxu0 %v2178
    %2556 = vmatpush1.msra.mxu0 %v2177
    %2557 = vmatprep.subr.mxu0 %v2184
    %2558 = vmatpush1.msra.mxu0 %v2183
    %2559 = vmatprep.subr.mxu0 %v2190
    %2560 = vmatpush1.msra.mxu0 %v2189
    %2561 = vmatprep.mubr.f32.mxu0 %v1495
    %2562 = vmatmul.mubr.f32.gmra.mrb[0].mxu0 %v1493
    %v2563 = vpop.f32.mrb[0].mxu0
    %v2564 = vadd.f32 %v2487, %v2563
    %v2565 = vpop.f32.mrb[0].mxu0
    %v2566 = vadd.f32 %v2489, %v2565
    %2567 = vmatprep.mubr.f32.mxu0 %v1501
    %2568 = vmatmul.mubr.f32.gmra.mrb[0].mxu0 %v1499
    %v2569 = vpop.f32.mrb[0].mxu0
    %v2570 = vadd.f32 %v2493, %v2569
    %v2571 = vpop.f32.mrb[0].mxu0
    %v2572 = vadd.f32 %v2495, %v2571
    %2573 = vdwg.mxu0
    %2574 = vmatprep.subr.mxu0 %v2196
    %2575 = vmatpush1.msra.mxu0 %v2195
    %2576 = vmatprep.subr.mxu0 %v2202
    %2577 = vmatpush1.msra.mxu0 %v2201
    %2578 = vmatprep.subr.mxu0 %v2208
    %2579 = vmatpush1.msra.mxu0 %v2207
    %2580 = vmatprep.subr.mxu0 %v2214
    %2581 = vmatpush1.msra.mxu0 %v2213
    %2582 = vmatprep.subr.mxu0 %v2220
    %2583 = vmatpush1.msra.mxu0 %v2219
    %2584 = vmatprep.subr.mxu0 %v2226
    %2585 = vmatpush1.msra.mxu0 %v2225
    %2586 = vmatprep.subr.mxu0 %v2232
    %2587 = vmatpush1.msra.mxu0 %v2231
    %2588 = vmatprep.subr.mxu0 %v2238
    %2589 = vmatpush1.msra.mxu0 %v2237
    %2590 = vmatprep.subr.mxu0 %v2244
    %2591 = vmatpush1.msra.mxu0 %v2243
    %2592 = vmatprep.subr.mxu0 %v2250
    %2593 = vmatpush1.msra.mxu0 %v2249
    %2594 = vmatprep.subr.mxu0 %v2256
    %2595 = vmatpush1.msra.mxu0 %v2255
    %2596 = vmatprep.subr.mxu0 %v2262
    %2597 = vmatpush1.msra.mxu0 %v2261
    %2598 = vmatprep.subr.mxu0 %v2268
    %2599 = vmatpush1.msra.mxu0 %v2267
    %2600 = vmatprep.subr.mxu0 %v2274
    %2601 = vmatpush1.msra.mxu0 %v2273
    %2602 = vmatprep.subr.mxu0 %v2280
    %2603 = vmatpush1.msra.mxu0 %v2279
    %2604 = vmatprep.subr.mxu0 %v2286
    %2605 = vmatpush1.msra.mxu0 %v2285
    %2606 = vmatprep.subr.mxu0 %v2292
    %2607 = vmatpush1.msra.mxu0 %v2291
    %2608 = vmatprep.subr.mxu0 %v2298
    %2609 = vmatpush1.msra.mxu0 %v2297
    %2610 = vmatprep.subr.mxu0 %v2304
    %2611 = vmatpush1.msra.mxu0 %v2303
    %2612 = vmatprep.subr.mxu0 %v2310
    %2613 = vmatpush1.msra.mxu0 %v2309
    %2614 = vmatprep.subr.mxu0 %v2316
    %2615 = vmatpush1.msra.mxu0 %v2315
    %2616 = vmatprep.subr.mxu0 %v2322
    %2617 = vmatpush1.msra.mxu0 %v2321
    %2618 = vmatprep.subr.mxu0 %v2328
    %2619 = vmatpush1.msra.mxu0 %v2327
    %2620 = vmatprep.subr.mxu0 %v2334
    %2621 = vmatpush1.msra.mxu0 %v2333
    %2622 = vmatprep.subr.mxu0 %v2340
    %2623 = vmatpush1.msra.mxu0 %v2339
    %2624 = vmatprep.subr.mxu0 %v2346
    %2625 = vmatpush1.msra.mxu0 %v2345
    %2626 = vmatprep.subr.mxu0 %v2352
    %2627 = vmatpush1.msra.mxu0 %v2351
    %2628 = vmatprep.subr.mxu0 %v2358
    %2629 = vmatpush1.msra.mxu0 %v2357
    %2630 = vmatprep.subr.mxu0 %v2364
    %2631 = vmatpush1.msra.mxu0 %v2363
    %2632 = vmatprep.subr.mxu0 %v2370
    %2633 = vmatpush1.msra.mxu0 %v2369
    %2634 = vmatprep.subr.mxu0 %v2376
    %2635 = vmatpush1.msra.mxu0 %v2375
    %2636 = vmatprep.subr.mxu0 %v2382
    %2637 = vmatpush1.msra.mxu0 %v2381
    %2638 = vmatprep.mubr.f32.mxu0 %v1803
    %2639 = vmatmul.mubr.f32.gmra.mrb[0].mxu0 %v1801
    %v2640 = vpop.f32.mrb[0].mxu0
    %v2641 = vadd.f32 %v2564, %v2640
    %v2642 = vpop.f32.mrb[0].mxu0
    %v2643 = vadd.f32 %v2566, %v2642
    %2644 = vmatprep.mubr.f32.mxu0 %v1809
    %2645 = vmatmul.mubr.f32.gmra.mrb[0].mxu0 %v1807
    %v2646 = vpop.f32.mrb[0].mxu0
    %v2647 = vadd.f32 %v2570, %v2646
    %v2648 = vpop.f32.mrb[0].mxu0
    %v2649 = vadd.f32 %v2572, %v2648
    %2650 = vdwg.mxu0
    %2651 = vmatprep.subr.mxu0 %v1814
    %2652 = vmatpush1.msra.mxu0 %v1813
    %2653 = vmatprep.subr.mxu0 %v1820
    %2654 = vmatpush1.msra.mxu0 %v1819
    %2655 = vmatprep.subr.mxu0 %v1826
    %2656 = vmatpush1.msra.mxu0 %v1825
    %2657 = vmatprep.subr.mxu0 %v1832
    %2658 = vmatpush1.msra.mxu0 %v1831
    %2659 = vmatprep.subr.mxu0 %v1838
    %2660 = vmatpush1.msra.mxu0 %v1837
    %2661 = vmatprep.subr.mxu0 %v1844
    %2662 = vmatpush1.msra.mxu0 %v1843
    %2663 = vmatprep.subr.mxu0 %v1850
    %2664 = vmatpush1.msra.mxu0 %v1849
    %2665 = vmatprep.subr.mxu0 %v1856
    %2666 = vmatpush1.msra.mxu0 %v1855
    %2667 = vmatprep.subr.mxu0 %v1862
    %2668 = vmatpush1.msra.mxu0 %v1861
    %2669 = vmatprep.subr.mxu0 %v1868
    %2670 = vmatpush1.msra.mxu0 %v1867
    %2671 = vmatprep.subr.mxu0 %v1874
    %2672 = vmatpush1.msra.mxu0 %v1873
    %2673 = vmatprep.subr.mxu0 %v1880
    %2674 = vmatpush1.msra.mxu0 %v1879
    %2675 = vmatprep.subr.mxu0 %v1886
    %2676 = vmatpush1.msra.mxu0 %v1885
    %2677 = vmatprep.subr.mxu0 %v1892
    %2678 = vmatpush1.msra.mxu0 %v1891
    %2679 = vmatprep.subr.mxu0 %v1898
    %2680 = vmatpush1.msra.mxu0 %v1897
    %2681 = vmatprep.subr.mxu0 %v1904
    %2682 = vmatpush1.msra.mxu0 %v1903
    %2683 = vmatprep.subr.mxu0 %v1910
    %2684 = vmatpush1.msra.mxu0 %v1909
    %2685 = vmatprep.subr.mxu0 %v1916
    %2686 = vmatpush1.msra.mxu0 %v1915
    %2687 = vmatprep.subr.mxu0 %v1922
    %2688 = vmatpush1.msra.mxu0 %v1921
    %2689 = vmatprep.subr.mxu0 %v1928
    %2690 = vmatpush1.msra.mxu0 %v1927
    %2691 = vmatprep.subr.mxu0 %v1934
    %2692 = vmatpush1.msra.mxu0 %v1933
    %2693 = vmatprep.subr.mxu0 %v1940
    %2694 = vmatpush1.msra.mxu0 %v1939
    %2695 = vmatprep.subr.mxu0 %v1946
    %2696 = vmatpush1.msra.mxu0 %v1945
    %2697 = vmatprep.subr.mxu0 %v1952
    %2698 = vmatpush1.msra.mxu0 %v1951
    %2699 = vmatprep.subr.mxu0 %v1958
    %2700 = vmatpush1.msra.mxu0 %v1957
    %2701 = vmatprep.subr.mxu0 %v1964
    %2702 = vmatpush1.msra.mxu0 %v1963
    %2703 = vmatprep.subr.mxu0 %v1970
    %2704 = vmatpush1.msra.mxu0 %v1969
    %2705 = vmatprep.subr.mxu0 %v1976
    %2706 = vmatpush1.msra.mxu0 %v1975
    %2707 = vmatprep.subr.mxu0 %v1982
    %2708 = vmatpush1.msra.mxu0 %v1981
    %2709 = vmatprep.subr.mxu0 %v1988
    %2710 = vmatpush1.msra.mxu0 %v1987
    %2711 = vmatprep.subr.mxu0 %v1994
    %2712 = vmatpush1.msra.mxu0 %v1993
    %2713 = vmatprep.subr.mxu0 %v2000
    %2714 = vmatpush1.msra.mxu0 %v1999
    %2715 = vmatprep.mubr.f32.mxu0 %v1187
    %2716 = vmatmul.mubr.f32.gmra.mrb[0].mxu0 %v1185
    %v2717 = vpop.f32.mrb[0].mxu0
    %v2718 = vadd.f32 %v2401, %v2717
    %v2719 = vpop.f32.mrb[0].mxu0
    %v2720 = vadd.f32 %v2405, %v2719
    %2721 = vmatprep.mubr.f32.mxu0 %v1193
    %2722 = vmatmul.mubr.f32.gmra.mrb[0].mxu0 %v1191
    %v2723 = vpop.f32.mrb[0].mxu0
    %v2724 = vadd.f32 %v2401, %v2723
    %v2725 = vpop.f32.mrb[0].mxu0
    %v2726 = vadd.f32 %v2405, %v2725
    %2727 = vdwg.mxu0
    %2728 = vmatprep.subr.mxu0 %v2006
    %2729 = vmatpush1.msra.mxu0 %v2005
    %2730 = vmatprep.subr.mxu0 %v2012
    %2731 = vmatpush1.msra.mxu0 %v2011
    %2732 = vmatprep.subr.mxu0 %v2018
    %2733 = vmatpush1.msra.mxu0 %v2017
    %2734 = vmatprep.subr.mxu0 %v2024
    %2735 = vmatpush1.msra.mxu0 %v2023
    %2736 = vmatprep.subr.mxu0 %v2030
    %2737 = vmatpush1.msra.mxu0 %v2029
    %2738 = vmatprep.subr.mxu0 %v2036
    %2739 = vmatpush1.msra.mxu0 %v2035
    %2740 = vmatprep.subr.mxu0 %v2042
    %2741 = vmatpush1.msra.mxu0 %v2041
    %2742 = vmatprep.subr.mxu0 %v2048
    %2743 = vmatpush1.msra.mxu0 %v2047
    %2744 = vmatprep.subr.mxu0 %v2054
    %2745 = vmatpush1.msra.mxu0 %v2053
    %2746 = vmatprep.subr.mxu0 %v2060
    %2747 = vmatpush1.msra.mxu0 %v2059
    %2748 = vmatprep.subr.mxu0 %v2066
    %2749 = vmatpush1.msra.mxu0 %v2065
    %2750 = vmatprep.subr.mxu0 %v2072
    %2751 = vmatpush1.msra.mxu0 %v2071
    %2752 = vmatprep.subr.mxu0 %v2078
    %2753 = vmatpush1.msra.mxu0 %v2077
    %2754 = vmatprep.subr.mxu0 %v2084
    %2755 = vmatpush1.msra.mxu0 %v2083
    %2756 = vmatprep.subr.mxu0 %v2090
    %2757 = vmatpush1.msra.mxu0 %v2089
    %2758 = vmatprep.subr.mxu0 %v2096
    %2759 = vmatpush1.msra.mxu0 %v2095
    %2760 = vmatprep.subr.mxu0 %v2102
    %2761 = vmatpush1.msra.mxu0 %v2101
    %2762 = vmatprep.subr.mxu0 %v2108
    %2763 = vmatpush1.msra.mxu0 %v2107
    %2764 = vmatprep.subr.mxu0 %v2114
    %2765 = vmatpush1.msra.mxu0 %v2113
    %2766 = vmatprep.subr.mxu0 %v2120
    %2767 = vmatpush1.msra.mxu0 %v2119
    %2768 = vmatprep.subr.mxu0 %v2126
    %2769 = vmatpush1.msra.mxu0 %v2125
    %2770 = vmatprep.subr.mxu0 %v2132
    %2771 = vmatpush1.msra.mxu0 %v2131
    %2772 = vmatprep.subr.mxu0 %v2138
    %2773 = vmatpush1.msra.mxu0 %v2137
    %2774 = vmatprep.subr.mxu0 %v2144
    %2775 = vmatpush1.msra.mxu0 %v2143
    %2776 = vmatprep.subr.mxu0 %v2150
    %2777 = vmatpush1.msra.mxu0 %v2149
    %2778 = vmatprep.subr.mxu0 %v2156
    %2779 = vmatpush1.msra.mxu0 %v2155
    %2780 = vmatprep.subr.mxu0 %v2162
    %2781 = vmatpush1.msra.mxu0 %v2161
    %2782 = vmatprep.subr.mxu0 %v2168
    %2783 = vmatpush1.msra.mxu0 %v2167
    %2784 = vmatprep.subr.mxu0 %v2174
    %2785 = vmatpush1.msra.mxu0 %v2173
    %2786 = vmatprep.subr.mxu0 %v2180
    %2787 = vmatpush1.msra.mxu0 %v2179
    %2788 = vmatprep.subr.mxu0 %v2186
    %2789 = vmatpush1.msra.mxu0 %v2185
    %2790 = vmatprep.subr.mxu0 %v2192
    %2791 = vmatpush1.msra.mxu0 %v2191
    %2792 = vmatprep.mubr.f32.mxu0 %v1495
    %2793 = vmatmul.mubr.f32.gmra.mrb[0].mxu0 %v1493
    %v2794 = vpop.f32.mrb[0].mxu0
    %v2795 = vadd.f32 %v2718, %v2794
    %v2796 = vpop.f32.mrb[0].mxu0
    %v2797 = vadd.f32 %v2720, %v2796
    %2798 = vmatprep.mubr.f32.mxu0 %v1501
    %2799 = vmatmul.mubr.f32.gmra.mrb[0].mxu0 %v1499
    %v2800 = vpop.f32.mrb[0].mxu0
    %v2801 = vadd.f32 %v2724, %v2800
    %v2802 = vpop.f32.mrb[0].mxu0
    %v2803 = vadd.f32 %v2726, %v2802
    %2804 = vdwg.mxu0
    %2805 = vmatprep.subr.mxu0 %v2198
    %2806 = vmatpush1.msra.mxu0 %v2197
    %2807 = vmatprep.subr.mxu0 %v2204
    %2808 = vmatpush1.msra.mxu0 %v2203
    %2809 = vmatprep.subr.mxu0 %v2210
    %2810 = vmatpush1.msra.mxu0 %v2209
    %2811 = vmatprep.subr.mxu0 %v2216
    %2812 = vmatpush1.msra.mxu0 %v2215
    %2813 = vmatprep.subr.mxu0 %v2222
    %2814 = vmatpush1.msra.mxu0 %v2221
    %2815 = vmatprep.subr.mxu0 %v2228
    %2816 = vmatpush1.msra.mxu0 %v2227
    %2817 = vmatprep.subr.mxu0 %v2234
    %2818 = vmatpush1.msra.mxu0 %v2233
    %2819 = vmatprep.subr.mxu0 %v2240
    %2820 = vmatpush1.msra.mxu0 %v2239
    %2821 = vmatprep.subr.mxu0 %v2246
    %2822 = vmatpush1.msra.mxu0 %v2245
    %2823 = vmatprep.subr.mxu0 %v2252
    %2824 = vmatpush1.msra.mxu0 %v2251
    %2825 = vmatprep.subr.mxu0 %v2258
    %2826 = vmatpush1.msra.mxu0 %v2257
    %2827 = vmatprep.subr.mxu0 %v2264
    %2828 = vmatpush1.msra.mxu0 %v2263
    %2829 = vmatprep.subr.mxu0 %v2270
    %2830 = vmatpush1.msra.mxu0 %v2269
    %2831 = vmatprep.subr.mxu0 %v2276
    %2832 = vmatpush1.msra.mxu0 %v2275
    %2833 = vmatprep.subr.mxu0 %v2282
    %2834 = vmatpush1.msra.mxu0 %v2281
    %2835 = vmatprep.subr.mxu0 %v2288
    %2836 = vmatpush1.msra.mxu0 %v2287
    %2837 = vmatprep.subr.mxu0 %v2294
    %2838 = vmatpush1.msra.mxu0 %v2293
    %2839 = vmatprep.subr.mxu0 %v2300
    %2840 = vmatpush1.msra.mxu0 %v2299
    %2841 = vmatprep.subr.mxu0 %v2306
    %2842 = vmatpush1.msra.mxu0 %v2305
    %2843 = vmatprep.subr.mxu0 %v2312
    %2844 = vmatpush1.msra.mxu0 %v2311
    %2845 = vmatprep.subr.mxu0 %v2318
    %2846 = vmatpush1.msra.mxu0 %v2317
    %2847 = vmatprep.subr.mxu0 %v2324
    %2848 = vmatpush1.msra.mxu0 %v2323
    %2849 = vmatprep.subr.mxu0 %v2330
    %2850 = vmatpush1.msra.mxu0 %v2329
    %2851 = vmatprep.subr.mxu0 %v2336
    %2852 = vmatpush1.msra.mxu0 %v2335
    %2853 = vmatprep.subr.mxu0 %v2342
    %2854 = vmatpush1.msra.mxu0 %v2341
    %2855 = vmatprep.subr.mxu0 %v2348
    %2856 = vmatpush1.msra.mxu0 %v2347
    %2857 = vmatprep.subr.mxu0 %v2354
    %2858 = vmatpush1.msra.mxu0 %v2353
    %2859 = vmatprep.subr.mxu0 %v2360
    %2860 = vmatpush1.msra.mxu0 %v2359
    %2861 = vmatprep.subr.mxu0 %v2366
    %2862 = vmatpush1.msra.mxu0 %v2365
    %2863 = vmatprep.subr.mxu0 %v2372
    %2864 = vmatpush1.msra.mxu0 %v2371
    %2865 = vmatprep.subr.mxu0 %v2378
    %2866 = vmatpush1.msra.mxu0 %v2377
    %2867 = vmatprep.subr.mxu0 %v2384
    %2868 = vmatpush1.msra.mxu0 %v2383
    %2869 = vmatprep.mubr.f32.mxu0 %v1803
    %2870 = vmatmul.mubr.f32.gmra.mrb[0].mxu0 %v1801
    %v2871 = vpop.f32.mrb[0].mxu0
    %v2872 = vadd.f32 %v2795, %v2871
    %v2873 = vpop.f32.mrb[0].mxu0
    %v2874 = vadd.f32 %v2797, %v2873
    %2875 = vmatprep.mubr.f32.mxu0 %v1809
    %2876 = vmatmul.mubr.f32.gmra.mrb[0].mxu0 %v1807
    %v2877 = vpop.f32.mrb[0].mxu0
    %v2878 = vadd.f32 %v2801, %v2877
    %v2879 = vpop.f32.mrb[0].mxu0
    %v2880 = vadd.f32 %v2803, %v2879
    %2881 = vdwg.mxu0
    %2882 = vmatprep.subr.mxu0 %v1816
    %2883 = vmatpush1.msra.mxu0 %v1815
    %2884 = vmatprep.subr.mxu0 %v1822
    %2885 = vmatpush1.msra.mxu0 %v1821
    %2886 = vmatprep.subr.mxu0 %v1828
    %2887 = vmatpush1.msra.mxu0 %v1827
    %2888 = vmatprep.subr.mxu0 %v1834
    %2889 = vmatpush1.msra.mxu0 %v1833
    %2890 = vmatprep.subr.mxu0 %v1840
    %2891 = vmatpush1.msra.mxu0 %v1839
    %2892 = vmatprep.subr.mxu0 %v1846
    %2893 = vmatpush1.msra.mxu0 %v1845
    %2894 = vmatprep.subr.mxu0 %v1852
    %2895 = vmatpush1.msra.mxu0 %v1851
    %2896 = vmatprep.subr.mxu0 %v1858
    %2897 = vmatpush1.msra.mxu0 %v1857
    %2898 = vmatprep.subr.mxu0 %v1864
    %2899 = vmatpush1.msra.mxu0 %v1863
    %2900 = vmatprep.subr.mxu0 %v1870
    %2901 = vmatpush1.msra.mxu0 %v1869
    %2902 = vmatprep.subr.mxu0 %v1876
    %2903 = vmatpush1.msra.mxu0 %v1875
    %2904 = vmatprep.subr.mxu0 %v1882
    %2905 = vmatpush1.msra.mxu0 %v1881
    %2906 = vmatprep.subr.mxu0 %v1888
    %2907 = vmatpush1.msra.mxu0 %v1887
    %2908 = vmatprep.subr.mxu0 %v1894
    %2909 = vmatpush1.msra.mxu0 %v1893
    %2910 = vmatprep.subr.mxu0 %v1900
    %2911 = vmatpush1.msra.mxu0 %v1899
    %2912 = vmatprep.subr.mxu0 %v1906
    %2913 = vmatpush1.msra.mxu0 %v1905
    %2914 = vmatprep.subr.mxu0 %v1912
    %2915 = vmatpush1.msra.mxu0 %v1911
    %2916 = vmatprep.subr.mxu0 %v1918
    %2917 = vmatpush1.msra.mxu0 %v1917
    %2918 = vmatprep.subr.mxu0 %v1924
    %2919 = vmatpush1.msra.mxu0 %v1923
    %2920 = vmatprep.subr.mxu0 %v1930
    %2921 = vmatpush1.msra.mxu0 %v1929
    %2922 = vmatprep.subr.mxu0 %v1936
    %2923 = vmatpush1.msra.mxu0 %v1935
    %2924 = vmatprep.subr.mxu0 %v1942
    %2925 = vmatpush1.msra.mxu0 %v1941
    %2926 = vmatprep.subr.mxu0 %v1948
    %2927 = vmatpush1.msra.mxu0 %v1947
    %2928 = vmatprep.subr.mxu0 %v1954
    %2929 = vmatpush1.msra.mxu0 %v1953
    %2930 = vmatprep.subr.mxu0 %v1960
    %2931 = vmatpush1.msra.mxu0 %v1959
    %2932 = vmatprep.subr.mxu0 %v1966
    %2933 = vmatpush1.msra.mxu0 %v1965
    %2934 = vmatprep.subr.mxu0 %v1972
    %2935 = vmatpush1.msra.mxu0 %v1971
    %2936 = vmatprep.subr.mxu0 %v1978
    %2937 = vmatpush1.msra.mxu0 %v1977
    %2938 = vmatprep.subr.mxu0 %v1984
    %2939 = vmatpush1.msra.mxu0 %v1983
    %2940 = vmatprep.subr.mxu0 %v1990
    %2941 = vmatpush1.msra.mxu0 %v1989
    %2942 = vmatprep.subr.mxu0 %v1996
    %2943 = vmatpush1.msra.mxu0 %v1995
    %2944 = vmatprep.subr.mxu0 %v2002
    %2945 = vmatpush1.msra.mxu0 %v2001
    %2946 = vmatprep.mubr.f32.mxu0 %v1187
    %2947 = vmatmul.mubr.f32.gmra.mrb[0].mxu0 %v1185
    %v2948 = vpop.f32.mrb[0].mxu0
    %v2949 = vadd.f32 %v2409, %v2948
    %v2950 = vpop.f32.mrb[0].mxu0
    %v2951 = vadd.f32 %v2413, %v2950
    %2952 = vmatprep.mubr.f32.mxu0 %v1193
    %2953 = vmatmul.mubr.f32.gmra.mrb[0].mxu0 %v1191
    %v2954 = vpop.f32.mrb[0].mxu0
    %v2955 = vadd.f32 %v2409, %v2954
    %v2956 = vpop.f32.mrb[0].mxu0
    %v2957 = vadd.f32 %v2413, %v2956
    %2958 = vdwg.mxu0
    %2959 = vmatprep.subr.mxu0 %v2008
    %2960 = vmatpush1.msra.mxu0 %v2007
    %2961 = vmatprep.subr.mxu0 %v2014
    %2962 = vmatpush1.msra.mxu0 %v2013
    %2963 = vmatprep.subr.mxu0 %v2020
    %2964 = vmatpush1.msra.mxu0 %v2019
    %2965 = vmatprep.subr.mxu0 %v2026
    %2966 = vmatpush1.msra.mxu0 %v2025
    %2967 = vmatprep.subr.mxu0 %v2032
    %2968 = vmatpush1.msra.mxu0 %v2031
    %2969 = vmatprep.subr.mxu0 %v2038
    %2970 = vmatpush1.msra.mxu0 %v2037
    %2971 = vmatprep.subr.mxu0 %v2044
    %2972 = vmatpush1.msra.mxu0 %v2043
    %2973 = vmatprep.subr.mxu0 %v2050
    %2974 = vmatpush1.msra.mxu0 %v2049
    %2975 = vmatprep.subr.mxu0 %v2056
    %2976 = vmatpush1.msra.mxu0 %v2055
    %2977 = vmatprep.subr.mxu0 %v2062
    %2978 = vmatpush1.msra.mxu0 %v2061
    %2979 = vmatprep.subr.mxu0 %v2068
    %2980 = vmatpush1.msra.mxu0 %v2067
    %2981 = vmatprep.subr.mxu0 %v2074
    %2982 = vmatpush1.msra.mxu0 %v2073
    %2983 = vmatprep.subr.mxu0 %v2080
    %2984 = vmatpush1.msra.mxu0 %v2079
    %2985 = vmatprep.subr.mxu0 %v2086
    %2986 = vmatpush1.msra.mxu0 %v2085
    %2987 = vmatprep.subr.mxu0 %v2092
    %2988 = vmatpush1.msra.mxu0 %v2091
    %2989 = vmatprep.subr.mxu0 %v2098
    %2990 = vmatpush1.msra.mxu0 %v2097
    %2991 = vmatprep.subr.mxu0 %v2104
    %2992 = vmatpush1.msra.mxu0 %v2103
    %2993 = vmatprep.subr.mxu0 %v2110
    %2994 = vmatpush1.msra.mxu0 %v2109
    %2995 = vmatprep.subr.mxu0 %v2116
    %2996 = vmatpush1.msra.mxu0 %v2115
    %2997 = vmatprep.subr.mxu0 %v2122
    %2998 = vmatpush1.msra.mxu0 %v2121
    %2999 = vmatprep.subr.mxu0 %v2128
    %3000 = vmatpush1.msra.mxu0 %v2127
    %3001 = vmatprep.subr.mxu0 %v2134
    %3002 = vmatpush1.msra.mxu0 %v2133
    %3003 = vmatprep.subr.mxu0 %v2140
    %3004 = vmatpush1.msra.mxu0 %v2139
    %3005 = vmatprep.subr.mxu0 %v2146
    %3006 = vmatpush1.msra.mxu0 %v2145
    %3007 = vmatprep.subr.mxu0 %v2152
    %3008 = vmatpush1.msra.mxu0 %v2151
    %3009 = vmatprep.subr.mxu0 %v2158
    %3010 = vmatpush1.msra.mxu0 %v2157
    %3011 = vmatprep.subr.mxu0 %v2164
    %3012 = vmatpush1.msra.mxu0 %v2163
    %3013 = vmatprep.subr.mxu0 %v2170
    %3014 = vmatpush1.msra.mxu0 %v2169
    %3015 = vmatprep.subr.mxu0 %v2176
    %3016 = vmatpush1.msra.mxu0 %v2175
    %3017 = vmatprep.subr.mxu0 %v2182
    %3018 = vmatpush1.msra.mxu0 %v2181
    %3019 = vmatprep.subr.mxu0 %v2188
    %3020 = vmatpush1.msra.mxu0 %v2187
    %3021 = vmatprep.subr.mxu0 %v2194
    %3022 = vmatpush1.msra.mxu0 %v2193
    %3023 = vmatprep.mubr.f32.mxu0 %v1495
    %3024 = vmatmul.mubr.f32.gmra.mrb[0].mxu0 %v1493
    %v3025 = vpop.f32.mrb[0].mxu0
    %v3026 = vadd.f32 %v2949, %v3025
    %v3027 = vpop.f32.mrb[0].mxu0
    %v3028 = vadd.f32 %v2951, %v3027
    %3029 = vmatprep.mubr.f32.mxu0 %v1501
    %3030 = vmatmul.mubr.f32.gmra.mrb[0].mxu0 %v1499
    %v3031 = vpop.f32.mrb[0].mxu0
    %v3032 = vadd.f32 %v2955, %v3031
    %v3033 = vpop.f32.mrb[0].mxu0
    %v3034 = vadd.f32 %v2957, %v3033
    %3035 = vdwg.mxu0
    %3036 = vmatprep.subr.mxu0 %v2200
    %3037 = vmatpush1.msra.mxu0 %v2199
    %3038 = vmatprep.subr.mxu0 %v2206
    %3039 = vmatpush1.msra.mxu0 %v2205
    %3040 = vmatprep.subr.mxu0 %v2212
    %3041 = vmatpush1.msra.mxu0 %v2211
    %3042 = vmatprep.subr.mxu0 %v2218
    %3043 = vmatpush1.msra.mxu0 %v2217
    %3044 = vmatprep.subr.mxu0 %v2224
    %3045 = vmatpush1.msra.mxu0 %v2223
    %3046 = vmatprep.subr.mxu0 %v2230
    %3047 = vmatpush1.msra.mxu0 %v2229
    %3048 = vmatprep.subr.mxu0 %v2236
    %3049 = vmatpush1.msra.mxu0 %v2235
    %3050 = vmatprep.subr.mxu0 %v2242
    %3051 = vmatpush1.msra.mxu0 %v2241
    %3052 = vmatprep.subr.mxu0 %v2248
    %3053 = vmatpush1.msra.mxu0 %v2247
    %3054 = vmatprep.subr.mxu0 %v2254
    %3055 = vmatpush1.msra.mxu0 %v2253
    %3056 = vmatprep.subr.mxu0 %v2260
    %3057 = vmatpush1.msra.mxu0 %v2259
    %3058 = vmatprep.subr.mxu0 %v2266
    %3059 = vmatpush1.msra.mxu0 %v2265
    %3060 = vmatprep.subr.mxu0 %v2272
    %3061 = vmatpush1.msra.mxu0 %v2271
    %3062 = vmatprep.subr.mxu0 %v2278
    %3063 = vmatpush1.msra.mxu0 %v2277
    %3064 = vmatprep.subr.mxu0 %v2284
    %3065 = vmatpush1.msra.mxu0 %v2283
    %3066 = vmatprep.subr.mxu0 %v2290
    %3067 = vmatpush1.msra.mxu0 %v2289
    %3068 = vmatprep.subr.mxu0 %v2296
    %3069 = vmatpush1.msra.mxu0 %v2295
    %3070 = vmatprep.subr.mxu0 %v2302
    %3071 = vmatpush1.msra.mxu0 %v2301
    %3072 = vmatprep.subr.mxu0 %v2308
    %3073 = vmatpush1.msra.mxu0 %v2307
    %3074 = vmatprep.subr.mxu0 %v2314
    %3075 = vmatpush1.msra.mxu0 %v2313
    %3076 = vmatprep.subr.mxu0 %v2320
    %3077 = vmatpush1.msra.mxu0 %v2319
    %3078 = vmatprep.subr.mxu0 %v2326
    %3079 = vmatpush1.msra.mxu0 %v2325
    %3080 = vmatprep.subr.mxu0 %v2332
    %3081 = vmatpush1.msra.mxu0 %v2331
    %3082 = vmatprep.subr.mxu0 %v2338
    %3083 = vmatpush1.msra.mxu0 %v2337
    %3084 = vmatprep.subr.mxu0 %v2344
    %3085 = vmatpush1.msra.mxu0 %v2343
    %3086 = vmatprep.subr.mxu0 %v2350
    %3087 = vmatpush1.msra.mxu0 %v2349
    %3088 = vmatprep.subr.mxu0 %v2356
    %3089 = vmatpush1.msra.mxu0 %v2355
    %3090 = vmatprep.subr.mxu0 %v2362
    %3091 = vmatpush1.msra.mxu0 %v2361
    %3092 = vmatprep.subr.mxu0 %v2368
    %3093 = vmatpush1.msra.mxu0 %v2367
    %3094 = vmatprep.subr.mxu0 %v2374
    %3095 = vmatpush1.msra.mxu0 %v2373
    %3096 = vmatprep.subr.mxu0 %v2380
    %3097 = vmatpush1.msra.mxu0 %v2379
    %3098 = vmatprep.subr.mxu0 %v2386
    %3099 = vmatpush1.msra.mxu0 %v2385
    %3100 = vmatprep.mubr.f32.mxu0 %v1803
    %3101 = vmatmul.mubr.f32.gmra.mrb[0].mxu0 %v1801
    %v3102 = vpop.f32.mrb[0].mxu0
    %v3103 = vadd.f32 %v3026, %v3102
    %v3104 = vpop.f32.mrb[0].mxu0
    %v3105 = vadd.f32 %v3028, %v3104
    %3106 = vmatprep.mubr.f32.mxu0 %v1809
    %3107 = vmatmul.mubr.f32.gmra.mrb[0].mxu0 %v1807
    %v3108 = vpop.f32.mrb[0].mxu0
    %v3109 = vadd.f32 %v3032, %v3108
    %v3110 = vpop.f32.mrb[0].mxu0
    %v3111 = vadd.f32 %v3034, %v3110
    %3112 = vdwg.mxu0
    %v3113 = vtanh.pop %v2641
    %v3114 = vtanh.pop %v2643
    %v3115 = vtanh.pop %v2872
    %v3116 = vtanh.pop %v2874
    %v3117 = vtanh.pop %v3103
    %v3118 = vtanh.pop %v3105
    %v3119 = vtanh.pop %v2647
    %v3120 = vtanh.pop %v2649
    %v3121 = vtanh.pop %v2878
    %v3122 = vtanh.pop %v2880
    %v3123 = vtanh.pop %v3109
    %v3124 = vtanh.pop %v3111
    %3125 = vst [vmem:[#allocation10] sm:$0xff] %v3113
    %3126 = vst [vmem:[#allocation10 + $0x8] sm:$0xff] %v3114
    %3127 = vst [vmem:[#allocation10 + $0x10] sm:$0xff] %v3115
    %3128 = vst [vmem:[#allocation10 + $0x18] sm:$0xff] %v3116
    %3129 = vst [vmem:[#allocation10 + $0x20] sm:$0xff] %v3117
    %3130 = vst [vmem:[#allocation10 + $0x28] sm:$0xff] %v3118
    %3131 = vst [vmem:[#allocation10 + $0x30] sm:$0xff] %v3119
    %3132 = vst [vmem:[#allocation10 + $0x38] sm:$0xff] %v3120
    %3133 = vst [vmem:[#allocation10 + $0x40] sm:$0xff] %v3121
    %3134 = vst [vmem:[#allocation10 + $0x48] sm:$0xff] %v3122
    %3135 = vst [vmem:[#allocation10 + $0x50] sm:$0xff] %v3123
    %3136 = vst [vmem:[#allocation10 + $0x58] sm:$0xff] %v3124
    // Predicated region
    $region34: #{tpu_custom_call.1} parent=1 // pred_check
      _
    $region35: #{tpu_custom_call.1} parent=1 // pred_check_branch
      %3138 = sbr.rel (0) target = $region37
    $region36: #{tpu_custom_call.1} parent=1 // pred_region
      %s3140 = ssub.s32 1536, 1536
      %3141 = vsyncadd [#allocation4], %s3140
      %s3142 = sshll.u32 [#allocation10], 4
      %s3143 = int_to_ptr.vmem [resolvable:$true] %s3142
      %3148 = dma.vmem_to_hbm [thread:$0]  %s3143, 1536, %s4, [#allocation4], 768, 768, 48
    $region37: #{tpu_custom_call.1} parent=1 // pred_fallthru
      _
    // Predicated region
    $region38: #{tpu_custom_call.1} parent=1 // pred_check
      _
    $region39: #{tpu_custom_call.1} parent=1 // pred_check_branch
      %3150 = sbr.rel (0) target = $region41
    $region40: #{tpu_custom_call.1} parent=1 // pred_region
      %3151 = dma.done [#allocation4], 1536
    $region41: #{tpu_custom_call.1} parent=1 // pred_fallthru
      _
    %3152 = vsyncpa [#allocation3], 1
    %3153 = vsyncpa [#allocation6], 1
    %3154 = vsyncpa [#allocation9], 1
    %3155 = vsyncpa [#allocation4], 1

</llo_original>
